<compile_context>
chip_gen: v6e
topology: v6e:2x2x1
jax: 0.10.0
libtpu: 0.0.40
codegen_flags: <defaults>
</compile_context>

<pallas_src>
import functools

import jax
import jax.numpy as jnp
from jax.experimental import pallas as pl
from jax.experimental.pallas import tpu as pltpu

# MXU input precision.  float32 preserves PyTorch-parity numerics.  On v6e/v7x
# this can be set to jnp.bfloat16 for ~2x VMEM/HBM bytes (the bias/BN/act
# epilogue below always runs in f32 regardless).
MXU_DTYPE = jnp.float32


# ----------------------------- Pallas kernels -----------------------------

def _conv_bn_act_kernel(*refs, bn, act, eps):
    """out = act(BN?(W @ patches + b));  W:(OC,K)  patches:(K,M)  out:(OC,M)."""
    if bn:
        w_ref, p_ref, b_ref, g_ref, bt_ref, o_ref = refs
    else:
        w_ref, p_ref, b_ref, o_ref = refs
        g_ref = bt_ref = None

    y = jnp.dot(w_ref[...], p_ref[...], preferred_element_type=jnp.float32)
    y = y + b_ref[...]                                   # (OC,1) broadcasts over lanes

    if bn:
        # Per-channel batch statistics over all (n, h, w) columns (lane reduce).
        mean = jnp.mean(y, axis=1, keepdims=True)
        var = jnp.mean(jnp.square(y - mean), axis=1, keepdims=True)   # biased var
        y = (y - mean) * jax.lax.rsqrt(var + eps) * g_ref[...] + bt_ref[...]

    if act == "relu":
        y = jnp.maximum(y, 0.0)
    elif act == "sigmoid":
        y = jax.nn.sigmoid(y)
    o_ref[...] = y.astype(o_ref.dtype)


def _mlp2_kernel(x_ref, w1_ref, b1_ref, w2_ref, b2_ref, o_ref, *, act1, act2):
    """Two fused linear layers:  act2(W2 @ act1(W1 @ x + b1) + b2)."""
    h = jnp.dot(w1_ref[...], x_ref[...], preferred_element_type=jnp.float32)
    h = h + b1_ref[...]
    if act1 == "relu":
        h = jnp.maximum(h, 0.0)
    y = jnp.dot(w2_ref[...], h, preferred_element_type=jnp.float32)
    y = y + b2_ref[...]
    if act2 == "relu":
        y = jnp.maximum(y, 0.0)
    o_ref[...] = y.astype(o_ref.dtype)


# --------------------------- pallas_call wrappers ---------------------------

def conv_matmul(wm, patches, bias, *, act, bn_params=None, eps=1e-5):
    """act(BN?(wm @ patches + bias)).  wm:(OC,K), patches:(K,M) -> (OC,M).

    grid=(1,): the whole problem fits comfortably in VMEM at these sizes.
    For large batches, tile M with a grid axis marked "parallel" (v7x: 2 TCs,
    64 MiB VMEM) instead of a single block.
    """
    OC, K = wm.shape
    K2, M = patches.shape
    assert K == K2
    bn = bn_params is not None

    operands = [wm.astype(MXU_DTYPE), patches.astype(MXU_DTYPE),
                bias.reshape(OC, 1).astype(jnp.float32)]
    in_specs = [
        pl.BlockSpec((OC, K), lambda i: (0, 0)),
        pl.BlockSpec((K, M), lambda i: (0, 0)),
        pl.BlockSpec((OC, 1), lambda i: (0, 0)),
    ]
    if bn:
        gamma, beta = bn_params
        operands += [gamma.reshape(OC, 1).astype(jnp.float32),
                     beta.reshape(OC, 1).astype(jnp.float32)]
        in_specs += [pl.BlockSpec((OC, 1), lambda i: (0, 0)),
                     pl.BlockSpec((OC, 1), lambda i: (0, 0))]

    kernel = functools.partial(_conv_bn_act_kernel, bn=bn, act=act, eps=eps)
    return pl.pallas_call(
        kernel,
        grid=(1,),
        in_specs=in_specs,
        out_specs=pl.BlockSpec((OC, M), lambda i: (0, 0)),
        out_shape=jax.ShapeDtypeStruct((OC, M), jnp.float32),
        compiler_params=pltpu.CompilerParams(dimension_semantics=("arbitrary",)),
    )(*operands)


def mlp2(x, w1, b1, w2, b2, *, act1, act2):
    """Fused 2-layer MLP.  x:(in,N), w1:(h,in), w2:(out,h) -> (out,N)."""
    in1, N = x.shape
    o1 = w1.shape[0]
    o2 = w2.shape[0]
    kernel = functools.partial(_mlp2_kernel, act1=act1, act2=act2)
    return pl.pallas_call(
        kernel,
        grid=(1,),
        in_specs=[
            pl.BlockSpec((in1, N), lambda i: (0, 0)),
            pl.BlockSpec((o1, in1), lambda i: (0, 0)),
            pl.BlockSpec((o1, 1), lambda i: (0, 0)),
            pl.BlockSpec((o2, o1), lambda i: (0, 0)),
            pl.BlockSpec((o2, 1), lambda i: (0, 0)),
        ],
        out_specs=pl.BlockSpec((o2, N), lambda i: (0, 0)),
        out_shape=jax.ShapeDtypeStruct((o2, N), jnp.float32),
        compiler_params=pltpu.CompilerParams(dimension_semantics=("arbitrary",)),
    )(x.astype(MXU_DTYPE), w1.astype(MXU_DTYPE),
      b1.reshape(o1, 1).astype(jnp.float32),
      w2.astype(MXU_DTYPE), b2.reshape(o2, 1).astype(jnp.float32))


# ------------------------------ JAX glue (tiny) -----------------------------

def _im2col_chwn(x, k, stride, pad_lo, pad_hi):
    """x: (C,H,W,N) -> patches (k*k*C, oh*ow*N), row index = (i*k + j)*C + c."""
    C, H, W, N = x.shape
    xp = jnp.pad(x, ((0, 0), (pad_lo, pad_hi), (pad_lo, pad_hi), (0, 0)))
    Hp, Wp = H + pad_lo + pad_hi, W + pad_lo + pad_hi
    oh = (Hp - k) // stride + 1
    ow = (Wp - k) // stride + 1
    taps = []
    for i in range(k):
        for j in range(k):
            taps.append(xp[:, i:i + stride * oh:stride, j:j + stride * ow:stride, :])
    p = jnp.stack(taps, axis=0)                       # (k*k, C, oh, ow, N)
    return p.reshape(k * k * C, oh * ow * N), oh, ow


def _dilate_chwn(x, stride):
    if stride == 1:
        return x
    C, H, W, N = x.shape
    out = jnp.zeros((C, (H - 1) * stride + 1, (W - 1) * stride + 1, N), x.dtype)
    return out.at[:, ::stride, ::stride, :].set(x)


def conv2d_chwn(x, wm, b, *, k, stride, pad, act, bn_params=None):
    patches, oh, ow = _im2col_chwn(x, k, stride, pad, pad)
    out = conv_matmul(wm, patches, b, act=act, bn_params=bn_params)
    return out.reshape(wm.shape[0], oh, ow, x.shape[3])


def conv_transpose2d_chwn(x, wm, b, *, k, stride, pad, out_pad, act, bn_params=None):
    xd = _dilate_chwn(x, stride)
    pad_lo = k - 1 - pad
    pad_hi = k - 1 - pad + out_pad
    patches, oh, ow = _im2col_chwn(xd, k, 1, pad_lo, pad_hi)
    out = conv_matmul(wm, patches, b, act=act, bn_params=bn_params)
    return out.reshape(wm.shape[0], oh, ow, x.shape[3])


# --------------------------- parameters & forward --------------------------

def init_params(key, encoded_space_dim):
    """Parameters in native PyTorch layouts."""
    ks = jax.random.split(key, 20)
    n = lambda k, s, sc=0.1: jax.random.normal(k, s, jnp.float32) * sc
    d = encoded_space_dim
    p = {}
    # Encoder conv stack (out_c, in_c, kh, kw)
    p["ec1_w"], p["ec1_b"] = n(ks[0], (8, 3, 3, 3)), n(ks[1], (8,), 0.01)
    p["ec2_w"], p["ec2_b"] = n(ks[2], (16, 8, 3, 3)), n(ks[3], (16,), 0.01)
    p["ebn2_g"], p["ebn2_b"] = jnp.ones((16,), jnp.float32), jnp.zeros((16,), jnp.float32)
    p["ec3_w"], p["ec3_b"] = n(ks[4], (32, 16, 3, 3)), n(ks[5], (32,), 0.01)
    # Linear layers in PyTorch (out, in) layout
    p["el1_w"], p["el1_b"] = n(ks[6], (128, 288)), n(ks[7], (128,), 0.01)
    p["el2_w"], p["el2_b"] = n(ks[8], (d, 128)), n(ks[9], (d,), 0.01)
    p["dl1_w"], p["dl1_b"] = n(ks[10], (128, d)), n(ks[11], (128,), 0.01)
    p["dl2_w"], p["dl2_b"] = n(ks[12], (288, 128)), n(ks[13], (288,), 0.01)
    # Decoder conv-transpose stack (in_c, out_c, kh, kw)
    p["dc1_w"], p["dc1_b"] = n(ks[14], (32, 16, 3, 3)), n(ks[15], (16,), 0.01)
    p["dbn1_g"], p["dbn1_b"] = jnp.ones((16,), jnp.float32), jnp.zeros((16,), jnp.float32)
    p["dc2_w"], p["dc2_b"] = n(ks[16], (16, 8, 3, 3)), n(ks[17], (8,), 0.01)
    p["dbn2_g"], p["dbn2_b"] = jnp.ones((8,), jnp.float32), jnp.zeros((8,), jnp.float32)
    p["dc3_w"], p["dc3_b"] = n(ks[18], (8, 3, 3, 3)), n(ks[19], (3,), 0.01)
    return p


def _conv_w_to_matmul(w):
    """Conv2d (oc, ic, kh, kw) -> (oc, kh*kw*ic) matching im2col row order."""
    oc, ic, kh, kw = w.shape
    return jnp.transpose(w, (0, 2, 3, 1)).reshape(oc, kh * kw * ic)


def _convT_w_to_matmul(w):
    """ConvTranspose2d (ic, oc, kh, kw) -> flipped-kernel conv (oc, kh*kw*ic)."""
    ic, oc, kh, kw = w.shape
    wf = w[:, :, ::-1, ::-1]
    return jnp.transpose(wf, (1, 2, 3, 0)).reshape(oc, kh * kw * ic)


def prepare_params(p):
    """One-time (outside jit) conversion of conv weights to matmul form."""
    q = {k: v for k, v in p.items() if not k.endswith("_w") or k[:2] in ("el", "dl")}
    for name in ("ec1", "ec2", "ec3"):
        q[name + "_wm"] = _conv_w_to_matmul(p[name + "_w"])
    for name in ("dc1", "dc2", "dc3"):
        q[name + "_wm"] = _convT_w_to_matmul(p[name + "_w"])
    return q


def autoencoder_forward(params, x_nchw):
    p = params
    N = x_nchw.shape[0]
    # NCHW -> CHWN: channels on sublanes, spatial*batch on lanes everywhere.
    x = jnp.transpose(x_nchw, (1, 2, 3, 0)).astype(jnp.float32)      # (3,28,28,N)

    # ---- Encoder ----
    x = conv2d_chwn(x, p["ec1_wm"], p["ec1_b"], k=3, stride=2, pad=1,
                    act="relu")                                      # (8,14,14,N)
    x = conv2d_chwn(x, p["ec2_wm"], p["ec2_b"], k=3, stride=2, pad=1,
                    act="relu", bn_params=(p["ebn2_g"], p["ebn2_b"]))  # (16,7,7,N)
    x = conv2d_chwn(x, p["ec3_wm"], p["ec3_b"], k=3, stride=2, pad=0,
                    act="relu")                                      # (32,3,3,N)
    # PyTorch NCHW flatten (c*9 + h*3 + w) is a pure reshape in CHWN layout.
    xf = x.reshape(32 * 3 * 3, N)
    z = mlp2(xf, p["el1_w"], p["el1_b"], p["el2_w"], p["el2_b"],
             act1="relu", act2="none")                               # (d, N)

    # ---- Decoder ----
    y = mlp2(z, p["dl1_w"], p["dl1_b"], p["dl2_w"], p["dl2_b"],
             act1="relu", act2="relu")                               # (288, N)
    y = y.reshape(32, 3, 3, N)                                       # Unflatten
    y = conv_transpose2d_chwn(y, p["dc1_wm"], p["dc1_b"], k=3, stride=2, pad=0,
                              out_pad=0, act="relu",
                              bn_params=(p["dbn1_g"], p["dbn1_b"]))  # (16,7,7,N)
    y = conv_transpose2d_chwn(y, p["dc2_wm"], p["dc2_b"], k=3, stride=2, pad=1,
                              out_pad=1, act="relu",
                              bn_params=(p["dbn2_g"], p["dbn2_b"]))  # (8,14,14,N)
    y = conv_transpose2d_chwn(y, p["dc3_wm"], p["dc3_b"], k=3, stride=2, pad=1,
                              out_pad=1, act="sigmoid")              # (3,28,28,N)
    return jnp.transpose(y, (3, 0, 1, 2))                            # -> NCHW


# --------------------------------- main ------------------------------------

if __name__ == "__main__":
    encoded_space_dim = 16
    key = jax.random.PRNGKey(0)
    k_param, k_x = jax.random.split(key)
    params = prepare_params(init_params(k_param, encoded_space_dim))
    # Spatial size 28 is forced by the 3*3*32 flatten in the module.
    x = jax.random.normal(k_x, (2, 3, 28, 28), jnp.float32)

    fwd = jax.jit(autoencoder_forward)
    out = jax.block_until_ready(fwd(params, x))

    assert out.shape == (2, 3, 28, 28), out.shape
    assert bool(jnp.all(jnp.isfinite(out)))
    assert bool(jnp.all((out >= 0.0) & (out <= 1.0)))   # sigmoid output range
    print("KERNEL_OK")
</pallas_src>

<mosaic_0001>
module attributes {stable_mosaic.version = 11 : i64} {
  func.func @_conv_bn_act_kernel(%arg0: i32, %arg1: memref<8x27xf32, #tpu.memory_space<vmem>>, %arg2: memref<27x392xf32, #tpu.memory_space<vmem>>, %arg3: memref<8x1xf32, #tpu.memory_space<vmem>>, %arg4: memref<8x392xf32, #tpu.memory_space<vmem>>) attributes {dimension_semantics = [#tpu.dimension_semantics<arbitrary>], iteration_bounds = array<i64: 1>, scalar_prefetch = 0 : i64, scratch_operands = 0 : i64, tpu.core_type = #tpu.core_type<tc>, window_params = [{pipeline_mode = #tpu.pipeline_mode<synchronous>, transform_indices = @transform_0, window_bounds = array<i64: 8, 27>}, {pipeline_mode = #tpu.pipeline_mode<synchronous>, transform_indices = @transform_1, window_bounds = array<i64: 27, 392>}, {pipeline_mode = #tpu.pipeline_mode<synchronous>, transform_indices = @transform_2, window_bounds = array<i64: 8, 1>}, {pipeline_mode = #tpu.pipeline_mode<synchronous>, transform_indices = @transform_3, window_bounds = array<i64: 8, 392>}]} {
    %c0 = arith.constant 0 : index
    %c0_0 = arith.constant 0 : index
    %0 = vector.load %arg1[%c0, %c0_0] : memref<8x27xf32, #tpu.memory_space<vmem>>, vector<8x27xf32>
    %c0_1 = arith.constant 0 : index
    %c0_2 = arith.constant 0 : index
    %1 = vector.load %arg2[%c0_1, %c0_2] : memref<27x392xf32, #tpu.memory_space<vmem>>, vector<27x392xf32>
    %cst = arith.constant dense<0.000000e+00> : vector<8x392xf32>
    %2 = tpu.matmul %0, %1, %cst {dimension_numbers = #tpu.dot_dimension_numbers<[1], [0], [0], [1], [0, 0, 1, 1], [], []>} : vector<8x27xf32>, vector<27x392xf32>, vector<8x392xf32> -> vector<8x392xf32>
    %c0_3 = arith.constant 0 : index
    %c0_4 = arith.constant 0 : index
    %3 = vector.load %arg3[%c0_3, %c0_4] : memref<8x1xf32, #tpu.memory_space<vmem>>, vector<8x1xf32>
    %4 = vector.broadcast %3 : vector<8x1xf32> to vector<8x392xf32>
    %5 = arith.addf %2, %4 : vector<8x392xf32>
    %cst_5 = arith.constant 0.000000e+00 : f32
    %6 = vector.broadcast %cst_5 : f32 to vector<8x392xf32>
    %7 = arith.maximumf %5, %6 : vector<8x392xf32>
    %c0_6 = arith.constant 0 : index
    %c0_7 = arith.constant 0 : index
    %8 = vector.load %arg4[%c0_6, %c0_7] : memref<8x392xf32, #tpu.memory_space<vmem>>, vector<8x392xf32>
    tpu.vector_store %arg4[%c0_6, %c0_7], %7 {strides = array<i32>} : memref<8x392xf32, #tpu.memory_space<vmem>>, vector<8x392xf32>,
    return
  }
  func.func @transform_0(%arg0: i32) -> (i32, i32) {
    %c0_i32 = arith.constant 0 : i32
    %c0_i32_0 = arith.constant 0 : i32
    %c0_i32_1 = arith.constant 0 : i32
    return %c0_i32, %c0_i32_0 : i32, i32
  }
  func.func @transform_1(%arg0: i32) -> (i32, i32) {
    %c0_i32 = arith.constant 0 : i32
    %c0_i32_0 = arith.constant 0 : i32
    %c0_i32_1 = arith.constant 0 : i32
    return %c0_i32, %c0_i32_0 : i32, i32
  }
  func.func @transform_2(%arg0: i32) -> (i32, i32) {
    %c0_i32 = arith.constant 0 : i32
    %c0_i32_0 = arith.constant 0 : i32
    %c0_i32_1 = arith.constant 0 : i32
    return %c0_i32, %c0_i32_0 : i32, i32
  }
  func.func @transform_3(%arg0: i32) -> (i32, i32) {
    %c0_i32 = arith.constant 0 : i32
    %c0_i32_0 = arith.constant 0 : i32
    %c0_i32_1 = arith.constant 0 : i32
    return %c0_i32, %c0_i32_0 : i32, i32
  }
}

module attributes {stable_mosaic.version = 11 : i64} {
  func.func @_conv_bn_act_kernel(%arg0: i32, %arg1: memref<16x72xf32, #tpu.memory_space<vmem>>, %arg2: memref<72x98xf32, #tpu.memory_space<vmem>>, %arg3: memref<16x1xf32, #tpu.memory_space<vmem>>, %arg4: memref<16x1xf32, #tpu.memory_space<vmem>>, %arg5: memref<16x1xf32, #tpu.memory_space<vmem>>, %arg6: memref<16x98xf32, #tpu.memory_space<vmem>>) attributes {dimension_semantics = [#tpu.dimension_semantics<arbitrary>], iteration_bounds = array<i64: 1>, scalar_prefetch = 0 : i64, scratch_operands = 0 : i64, tpu.core_type = #tpu.core_type<tc>, window_params = [{pipeline_mode = #tpu.pipeline_mode<synchronous>, transform_indices = @transform_0, window_bounds = array<i64: 16, 72>}, {pipeline_mode = #tpu.pipeline_mode<synchronous>, transform_indices = @transform_1, window_bounds = array<i64: 72, 98>}, {pipeline_mode = #tpu.pipeline_mode<synchronous>, transform_indices = @transform_2, window_bounds = array<i64: 16, 1>}, {pipeline_mode = #tpu.pipeline_mode<synchronous>, transform_indices = @transform_3, window_bounds = array<i64: 16, 1>}, {pipeline_mode = #tpu.pipeline_mode<synchronous>, transform_indices = @transform_4, window_bounds = array<i64: 16, 1>}, {pipeline_mode = #tpu.pipeline_mode<synchronous>, transform_indices = @transform_5, window_bounds = array<i64: 16, 98>}]} {
    %c0 = arith.constant 0 : index
    %c0_0 = arith.constant 0 : index
    %0 = vector.load %arg1[%c0, %c0_0] : memref<16x72xf32, #tpu.memory_space<vmem>>, vector<16x72xf32>
    %c0_1 = arith.constant 0 : index
    %c0_2 = arith.constant 0 : index
    %1 = vector.load %arg2[%c0_1, %c0_2] : memref<72x98xf32, #tpu.memory_space<vmem>>, vector<72x98xf32>
    %cst = arith.constant dense<0.000000e+00> : vector<16x98xf32>
    %2 = tpu.matmul %0, %1, %cst {dimension_numbers = #tpu.dot_dimension_numbers<[1], [0], [0], [1], [0, 0, 1, 1], [], []>} : vector<16x72xf32>, vector<72x98xf32>, vector<16x98xf32> -> vector<16x98xf32>
    %c0_3 = arith.constant 0 : index
    %c0_4 = arith.constant 0 : index
    %3 = vector.load %arg3[%c0_3, %c0_4] : memref<16x1xf32, #tpu.memory_space<vmem>>, vector<16x1xf32>
    %4 = vector.broadcast %3 : vector<16x1xf32> to vector<16x98xf32>
    %5 = arith.addf %2, %4 : vector<16x98xf32>
    %cst_5 = arith.constant dense<0.000000e+00> : vector<16xf32>
    %6 = vector.multi_reduction <add>, %5, %cst_5 [1] : vector<16x98xf32> to vector<16xf32>
    %7 = vector.shape_cast %6 : vector<16xf32> to vector<16x1xf32>
    %cst_6 = arith.constant 9.800000e+01 : f32
    %8 = vector.broadcast %cst_6 : f32 to vector<16x1xf32>
    %9 = arith.divf %7, %8 : vector<16x1xf32>
    %10 = vector.broadcast %9 : vector<16x1xf32> to vector<16x98xf32>
    %11 = arith.subf %5, %10 : vector<16x98xf32>
    %12 = arith.mulf %11, %11 : vector<16x98xf32>
    %cst_7 = arith.constant dense<0.000000e+00> : vector<16xf32>
    %13 = vector.multi_reduction <add>, %12, %cst_7 [1] : vector<16x98xf32> to vector<16xf32>
    %14 = vector.shape_cast %13 : vector<16xf32> to vector<16x1xf32>
    %cst_8 = arith.constant 9.800000e+01 : f32
    %15 = vector.broadcast %cst_8 : f32 to vector<16x1xf32>
    %16 = arith.divf %14, %15 : vector<16x1xf32>
    %17 = vector.broadcast %9 : vector<16x1xf32> to vector<16x98xf32>
    %18 = arith.subf %5, %17 : vector<16x98xf32>
    %cst_9 = arith.constant 9.99999974E-6 : f32
    %19 = vector.broadcast %cst_9 : f32 to vector<16x1xf32>
    %20 = arith.addf %16, %19 : vector<16x1xf32>
    %21 = math.rsqrt %20 : vector<16x1xf32>
    %22 = vector.broadcast %21 : vector<16x1xf32> to vector<16x98xf32>
    %23 = arith.mulf %18, %22 : vector<16x98xf32>
    %c0_10 = arith.constant 0 : index
    %c0_11 = arith.constant 0 : index
    %24 = vector.load %arg4[%c0_10, %c0_11] : memref<16x1xf32, #tpu.memory_space<vmem>>, vector<16x1xf32>
    %25 = vector.broadcast %24 : vector<16x1xf32> to vector<16x98xf32>
    %26 = arith.mulf %23, %25 : vector<16x98xf32>
    %c0_12 = arith.constant 0 : index
    %c0_13 = arith.constant 0 : index
    %27 = vector.load %arg5[%c0_12, %c0_13] : memref<16x1xf32, #tpu.memory_space<vmem>>, vector<16x1xf32>
    %28 = vector.broadcast %27 : vector<16x1xf32> to vector<16x98xf32>
    %29 = arith.addf %26, %28 : vector<16x98xf32>
    %cst_14 = arith.constant 0.000000e+00 : f32
    %30 = vector.broadcast %cst_14 : f32 to vector<16x98xf32>
    %31 = arith.maximumf %29, %30 : vector<16x98xf32>
    %c0_15 = arith.constant 0 : index
    %c0_16 = arith.constant 0 : index
    %32 = vector.load %arg6[%c0_15, %c0_16] : memref<16x98xf32, #tpu.memory_space<vmem>>, vector<16x98xf32>
    tpu.vector_store %arg6[%c0_15, %c0_16], %31 {strides = array<i32>} : memref<16x98xf32, #tpu.memory_space<vmem>>, vector<16x98xf32>,
    return
  }
  func.func @transform_0(%arg0: i32) -> (i32, i32) {
    %c0_i32 = arith.constant 0 : i32
    %c0_i32_0 = arith.constant 0 : i32
    %c0_i32_1 = arith.constant 0 : i32
    return %c0_i32, %c0_i32_0 : i32, i32
  }
  func.func @transform_1(%arg0: i32) -> (i32, i32) {
    %c0_i32 = arith.constant 0 : i32
    %c0_i32_0 = arith.constant 0 : i32
    %c0_i32_1 = arith.constant 0 : i32
    return %c0_i32, %c0_i32_0 : i32, i32
  }
  func.func @transform_2(%arg0: i32) -> (i32, i32) {
    %c0_i32 = arith.constant 0 : i32
    %c0_i32_0 = arith.constant 0 : i32
    %c0_i32_1 = arith.constant 0 : i32
    return %c0_i32, %c0_i32_0 : i32, i32
  }
  func.func @transform_3(%arg0: i32) -> (i32, i32) {
    %c0_i32 = arith.constant 0 : i32
    %c0_i32_0 = arith.constant 0 : i32
    %c0_i32_1 = arith.constant 0 : i32
    return %c0_i32, %c0_i32_0 : i32, i32
  }
  func.func @transform_4(%arg0: i32) -> (i32, i32) {
    %c0_i32 = arith.constant 0 : i32
    %c0_i32_0 = arith.constant 0 : i32
    %c0_i32_1 = arith.constant 0 : i32
    return %c0_i32, %c0_i32_0 : i32, i32
  }
  func.func @transform_5(%arg0: i32) -> (i32, i32) {
    %c0_i32 = arith.constant 0 : i32
    %c0_i32_0 = arith.constant 0 : i32
    %c0_i32_1 = arith.constant 0 : i32
    return %c0_i32, %c0_i32_0 : i32, i32
  }
}

module attributes {stable_mosaic.version = 11 : i64} {
  func.func @_conv_bn_act_kernel(%arg0: i32, %arg1: memref<32x144xf32, #tpu.memory_space<vmem>>, %arg2: memref<144x18xf32, #tpu.memory_space<vmem>>, %arg3: memref<32x1xf32, #tpu.memory_space<vmem>>, %arg4: memref<32x18xf32, #tpu.memory_space<vmem>>) attributes {dimension_semantics = [#tpu.dimension_semantics<arbitrary>], iteration_bounds = array<i64: 1>, scalar_prefetch = 0 : i64, scratch_operands = 0 : i64, tpu.core_type = #tpu.core_type<tc>, window_params = [{pipeline_mode = #tpu.pipeline_mode<synchronous>, transform_indices = @transform_0, window_bounds = array<i64: 32, 144>}, {pipeline_mode = #tpu.pipeline_mode<synchronous>, transform_indices = @transform_1, window_bounds = array<i64: 144, 18>}, {pipeline_mode = #tpu.pipeline_mode<synchronous>, transform_indices = @transform_2, window_bounds = array<i64: 32, 1>}, {pipeline_mode = #tpu.pipeline_mode<synchronous>, transform_indices = @transform_3, window_bounds = array<i64: 32, 18>}]} {
    %c0 = arith.constant 0 : index
    %c0_0 = arith.constant 0 : index
    %0 = vector.load %arg1[%c0, %c0_0] : memref<32x144xf32, #tpu.memory_space<vmem>>, vector<32x144xf32>
    %c0_1 = arith.constant 0 : index
    %c0_2 = arith.constant 0 : index
    %1 = vector.load %arg2[%c0_1, %c0_2] : memref<144x18xf32, #tpu.memory_space<vmem>>, vector<144x18xf32>
    %cst = arith.constant dense<0.000000e+00> : vector<32x18xf32>
    %2 = tpu.matmul %0, %1, %cst {dimension_numbers = #tpu.dot_dimension_numbers<[1], [0], [0], [1], [0, 0, 1, 1], [], []>} : vector<32x144xf32>, vector<144x18xf32>, vector<32x18xf32> -> vector<32x18xf32>
    %c0_3 = arith.constant 0 : index
    %c0_4 = arith.constant 0 : index
    %3 = vector.load %arg3[%c0_3, %c0_4] : memref<32x1xf32, #tpu.memory_space<vmem>>, vector<32x1xf32>
    %4 = vector.broadcast %3 : vector<32x1xf32> to vector<32x18xf32>
    %5 = arith.addf %2, %4 : vector<32x18xf32>
    %cst_5 = arith.constant 0.000000e+00 : f32
    %6 = vector.broadcast %cst_5 : f32 to vector<32x18xf32>
    %7 = arith.maximumf %5, %6 : vector<32x18xf32>
    %c0_6 = arith.constant 0 : index
    %c0_7 = arith.constant 0 : index
    %8 = vector.load %arg4[%c0_6, %c0_7] : memref<32x18xf32, #tpu.memory_space<vmem>>, vector<32x18xf32>
    tpu.vector_store %arg4[%c0_6, %c0_7], %7 {strides = array<i32>} : memref<32x18xf32, #tpu.memory_space<vmem>>, vector<32x18xf32>,
    return
  }
  func.func @transform_0(%arg0: i32) -> (i32, i32) {
    %c0_i32 = arith.constant 0 : i32
    %c0_i32_0 = arith.constant 0 : i32
    %c0_i32_1 = arith.constant 0 : i32
    return %c0_i32, %c0_i32_0 : i32, i32
  }
  func.func @transform_1(%arg0: i32) -> (i32, i32) {
    %c0_i32 = arith.constant 0 : i32
    %c0_i32_0 = arith.constant 0 : i32
    %c0_i32_1 = arith.constant 0 : i32
    return %c0_i32, %c0_i32_0 : i32, i32
  }
  func.func @transform_2(%arg0: i32) -> (i32, i32) {
    %c0_i32 = arith.constant 0 : i32
    %c0_i32_0 = arith.constant 0 : i32
    %c0_i32_1 = arith.constant 0 : i32
    return %c0_i32, %c0_i32_0 : i32, i32
  }
  func.func @transform_3(%arg0: i32) -> (i32, i32) {
    %c0_i32 = arith.constant 0 : i32
    %c0_i32_0 = arith.constant 0 : i32
    %c0_i32_1 = arith.constant 0 : i32
    return %c0_i32, %c0_i32_0 : i32, i32
  }
}

module attributes {stable_mosaic.version = 11 : i64} {
  func.func @_mlp2_kernel(%arg0: i32, %arg1: memref<288x2xf32, #tpu.memory_space<vmem>>, %arg2: memref<128x288xf32, #tpu.memory_space<vmem>>, %arg3: memref<128x1xf32, #tpu.memory_space<vmem>>, %arg4: memref<16x128xf32, #tpu.memory_space<vmem>>, %arg5: memref<16x1xf32, #tpu.memory_space<vmem>>, %arg6: memref<16x2xf32, #tpu.memory_space<vmem>>) attributes {dimension_semantics = [#tpu.dimension_semantics<arbitrary>], iteration_bounds = array<i64: 1>, scalar_prefetch = 0 : i64, scratch_operands = 0 : i64, tpu.core_type = #tpu.core_type<tc>, window_params = [{pipeline_mode = #tpu.pipeline_mode<synchronous>, transform_indices = @transform_0, window_bounds = array<i64: 288, 2>}, {pipeline_mode = #tpu.pipeline_mode<synchronous>, transform_indices = @transform_1, window_bounds = array<i64: 128, 288>}, {pipeline_mode = #tpu.pipeline_mode<synchronous>, transform_indices = @transform_2, window_bounds = array<i64: 128, 1>}, {pipeline_mode = #tpu.pipeline_mode<synchronous>, transform_indices = @transform_3, window_bounds = array<i64: 16, 128>}, {pipeline_mode = #tpu.pipeline_mode<synchronous>, transform_indices = @transform_4, window_bounds = array<i64: 16, 1>}, {pipeline_mode = #tpu.pipeline_mode<synchronous>, transform_indices = @transform_5, window_bounds = array<i64: 16, 2>}]} {
    %c0 = arith.constant 0 : index
    %c0_0 = arith.constant 0 : index
    %0 = vector.load %arg2[%c0, %c0_0] : memref<128x288xf32, #tpu.memory_space<vmem>>, vector<128x288xf32>
    %c0_1 = arith.constant 0 : index
    %c0_2 = arith.constant 0 : index
    %1 = vector.load %arg1[%c0_1, %c0_2] : memref<288x2xf32, #tpu.memory_space<vmem>>, vector<288x2xf32>
    %cst = arith.constant dense<0.000000e+00> : vector<128x2xf32>
    %2 = tpu.matmul %0, %1, %cst {dimension_numbers = #tpu.dot_dimension_numbers<[1], [0], [0], [1], [0, 0, 1, 1], [], []>} : vector<128x288xf32>, vector<288x2xf32>, vector<128x2xf32> -> vector<128x2xf32>
    %c0_3 = arith.constant 0 : index
    %c0_4 = arith.constant 0 : index
    %3 = vector.load %arg3[%c0_3, %c0_4] : memref<128x1xf32, #tpu.memory_space<vmem>>, vector<128x1xf32>
    %4 = vector.broadcast %3 : vector<128x1xf32> to vector<128x2xf32>
    %5 = arith.addf %2, %4 : vector<128x2xf32>
    %cst_5 = arith.constant 0.000000e+00 : f32
    %6 = vector.broadcast %cst_5 : f32 to vector<128x2xf32>
    %7 = arith.maximumf %5, %6 : vector<128x2xf32>
    %c0_6 = arith.constant 0 : index
    %c0_7 = arith.constant 0 : index
    %8 = vector.load %arg4[%c0_6, %c0_7] : memref<16x128xf32, #tpu.memory_space<vmem>>, vector<16x128xf32>
    %cst_8 = arith.constant dense<0.000000e+00> : vector<16x2xf32>
    %9 = tpu.matmul %8, %7, %cst_8 {dimension_numbers = #tpu.dot_dimension_numbers<[1], [0], [0], [1], [0, 0, 1, 1], [], []>} : vector<16x128xf32>, vector<128x2xf32>, vector<16x2xf32> -> vector<16x2xf32>
    %c0_9 = arith.constant 0 : index
    %c0_10 = arith.constant 0 : index
    %10 = vector.load %arg5[%c0_9, %c0_10] : memref<16x1xf32, #tpu.memory_space<vmem>>, vector<16x1xf32>
    %11 = vector.broadcast %10 : vector<16x1xf32> to vector<16x2xf32>
    %12 = arith.addf %9, %11 : vector<16x2xf32>
    %c0_11 = arith.constant 0 : index
    %c0_12 = arith.constant 0 : index
    %13 = vector.load %arg6[%c0_11, %c0_12] : memref<16x2xf32, #tpu.memory_space<vmem>>, vector<16x2xf32>
    tpu.vector_store %arg6[%c0_11, %c0_12], %12 {strides = array<i32>} : memref<16x2xf32, #tpu.memory_space<vmem>>, vector<16x2xf32>,
    return
  }
  func.func @transform_0(%arg0: i32) -> (i32, i32) {
    %c0_i32 = arith.constant 0 : i32
    %c0_i32_0 = arith.constant 0 : i32
    %c0_i32_1 = arith.constant 0 : i32
    return %c0_i32, %c0_i32_0 : i32, i32
  }
  func.func @transform_1(%arg0: i32) -> (i32, i32) {
    %c0_i32 = arith.constant 0 : i32
    %c0_i32_0 = arith.constant 0 : i32
    %c0_i32_1 = arith.constant 0 : i32
    return %c0_i32, %c0_i32_0 : i32, i32
  }
  func.func @transform_2(%arg0: i32) -> (i32, i32) {
    %c0_i32 = arith.constant 0 : i32
    %c0_i32_0 = arith.constant 0 : i32
    %c0_i32_1 = arith.constant 0 : i32
    return %c0_i32, %c0_i32_0 : i32, i32
  }
  func.func @transform_3(%arg0: i32) -> (i32, i32) {
    %c0_i32 = arith.constant 0 : i32
    %c0_i32_0 = arith.constant 0 : i32
    %c0_i32_1 = arith.constant 0 : i32
    return %c0_i32, %c0_i32_0 : i32, i32
  }
  func.func @transform_4(%arg0: i32) -> (i32, i32) {
    %c0_i32 = arith.constant 0 : i32
    %c0_i32_0 = arith.constant 0 : i32
    %c0_i32_1 = arith.constant 0 : i32
    return %c0_i32, %c0_i32_0 : i32, i32
  }
  func.func @transform_5(%arg0: i32) -> (i32, i32) {
    %c0_i32 = arith.constant 0 : i32
    %c0_i32_0 = arith.constant 0 : i32
    %c0_i32_1 = arith.constant 0 : i32
    return %c0_i32, %c0_i32_0 : i32, i32
  }
}

module attributes {stable_mosaic.version = 11 : i64} {
  func.func @_mlp2_kernel(%arg0: i32, %arg1: memref<16x2xf32, #tpu.memory_space<vmem>>, %arg2: memref<128x16xf32, #tpu.memory_space<vmem>>, %arg3: memref<128x1xf32, #tpu.memory_space<vmem>>, %arg4: memref<288x128xf32, #tpu.memory_space<vmem>>, %arg5: memref<288x1xf32, #tpu.memory_space<vmem>>, %arg6: memref<288x2xf32, #tpu.memory_space<vmem>>) attributes {dimension_semantics = [#tpu.dimension_semantics<arbitrary>], iteration_bounds = array<i64: 1>, scalar_prefetch = 0 : i64, scratch_operands = 0 : i64, tpu.core_type = #tpu.core_type<tc>, window_params = [{pipeline_mode = #tpu.pipeline_mode<synchronous>, transform_indices = @transform_0, window_bounds = array<i64: 16, 2>}, {pipeline_mode = #tpu.pipeline_mode<synchronous>, transform_indices = @transform_1, window_bounds = array<i64: 128, 16>}, {pipeline_mode = #tpu.pipeline_mode<synchronous>, transform_indices = @transform_2, window_bounds = array<i64: 128, 1>}, {pipeline_mode = #tpu.pipeline_mode<synchronous>, transform_indices = @transform_3, window_bounds = array<i64: 288, 128>}, {pipeline_mode = #tpu.pipeline_mode<synchronous>, transform_indices = @transform_4, window_bounds = array<i64: 288, 1>}, {pipeline_mode = #tpu.pipeline_mode<synchronous>, transform_indices = @transform_5, window_bounds = array<i64: 288, 2>}]} {
    %c0 = arith.constant 0 : index
    %c0_0 = arith.constant 0 : index
    %0 = vector.load %arg2[%c0, %c0_0] : memref<128x16xf32, #tpu.memory_space<vmem>>, vector<128x16xf32>
    %c0_1 = arith.constant 0 : index
    %c0_2 = arith.constant 0 : index
    %1 = vector.load %arg1[%c0_1, %c0_2] : memref<16x2xf32, #tpu.memory_space<vmem>>, vector<16x2xf32>
    %cst = arith.constant dense<0.000000e+00> : vector<128x2xf32>
    %2 = tpu.matmul %0, %1, %cst {dimension_numbers = #tpu.dot_dimension_numbers<[1], [0], [0], [1], [0, 0, 1, 1], [], []>} : vector<128x16xf32>, vector<16x2xf32>, vector<128x2xf32> -> vector<128x2xf32>
    %c0_3 = arith.constant 0 : index
    %c0_4 = arith.constant 0 : index
    %3 = vector.load %arg3[%c0_3, %c0_4] : memref<128x1xf32, #tpu.memory_space<vmem>>, vector<128x1xf32>
    %4 = vector.broadcast %3 : vector<128x1xf32> to vector<128x2xf32>
    %5 = arith.addf %2, %4 : vector<128x2xf32>
    %cst_5 = arith.constant 0.000000e+00 : f32
    %6 = vector.broadcast %cst_5 : f32 to vector<128x2xf32>
    %7 = arith.maximumf %5, %6 : vector<128x2xf32>
    %c0_6 = arith.constant 0 : index
    %c0_7 = arith.constant 0 : index
    %8 = vector.load %arg4[%c0_6, %c0_7] : memref<288x128xf32, #tpu.memory_space<vmem>>, vector<288x128xf32>
    %cst_8 = arith.constant dense<0.000000e+00> : vector<288x2xf32>
    %9 = tpu.matmul %8, %7, %cst_8 {dimension_numbers = #tpu.dot_dimension_numbers<[1], [0], [0], [1], [0, 0, 1, 1], [], []>} : vector<288x128xf32>, vector<128x2xf32>, vector<288x2xf32> -> vector<288x2xf32>
    %c0_9 = arith.constant 0 : index
    %c0_10 = arith.constant 0 : index
    %10 = vector.load %arg5[%c0_9, %c0_10] : memref<288x1xf32, #tpu.memory_space<vmem>>, vector<288x1xf32>
    %11 = vector.broadcast %10 : vector<288x1xf32> to vector<288x2xf32>
    %12 = arith.addf %9, %11 : vector<288x2xf32>
    %cst_11 = arith.constant 0.000000e+00 : f32
    %13 = vector.broadcast %cst_11 : f32 to vector<288x2xf32>
    %14 = arith.maximumf %12, %13 : vector<288x2xf32>
    %c0_12 = arith.constant 0 : index
    %c0_13 = arith.constant 0 : index
    %15 = vector.load %arg6[%c0_12, %c0_13] : memref<288x2xf32, #tpu.memory_space<vmem>>, vector<288x2xf32>
    tpu.vector_store %arg6[%c0_12, %c0_13], %14 {strides = array<i32>} : memref<288x2xf32, #tpu.memory_space<vmem>>, vector<288x2xf32>,
    return
  }
  func.func @transform_0(%arg0: i32) -> (i32, i32) {
    %c0_i32 = arith.constant 0 : i32
    %c0_i32_0 = arith.constant 0 : i32
    %c0_i32_1 = arith.constant 0 : i32
    return %c0_i32, %c0_i32_0 : i32, i32
  }
  func.func @transform_1(%arg0: i32) -> (i32, i32) {
    %c0_i32 = arith.constant 0 : i32
    %c0_i32_0 = arith.constant 0 : i32
    %c0_i32_1 = arith.constant 0 : i32
    return %c0_i32, %c0_i32_0 : i32, i32
  }
  func.func @transform_2(%arg0: i32) -> (i32, i32) {
    %c0_i32 = arith.constant 0 : i32
    %c0_i32_0 = arith.constant 0 : i32
    %c0_i32_1 = arith.constant 0 : i32
    return %c0_i32, %c0_i32_0 : i32, i32
  }
  func.func @transform_3(%arg0: i32) -> (i32, i32) {
    %c0_i32 = arith.constant 0 : i32
    %c0_i32_0 = arith.constant 0 : i32
    %c0_i32_1 = arith.constant 0 : i32
    return %c0_i32, %c0_i32_0 : i32, i32
  }
  func.func @transform_4(%arg0: i32) -> (i32, i32) {
    %c0_i32 = arith.constant 0 : i32
    %c0_i32_0 = arith.constant 0 : i32
    %c0_i32_1 = arith.constant 0 : i32
    return %c0_i32, %c0_i32_0 : i32, i32
  }
  func.func @transform_5(%arg0: i32) -> (i32, i32) {
    %c0_i32 = arith.constant 0 : i32
    %c0_i32_0 = arith.constant 0 : i32
    %c0_i32_1 = arith.constant 0 : i32
    return %c0_i32, %c0_i32_0 : i32, i32
  }
}

module attributes {stable_mosaic.version = 11 : i64} {
  func.func @_conv_bn_act_kernel(%arg0: i32, %arg1: memref<16x288xf32, #tpu.memory_space<vmem>>, %arg2: memref<288x98xf32, #tpu.memory_space<vmem>>, %arg3: memref<16x1xf32, #tpu.memory_space<vmem>>, %arg4: memref<16x1xf32, #tpu.memory_space<vmem>>, %arg5: memref<16x1xf32, #tpu.memory_space<vmem>>, %arg6: memref<16x98xf32, #tpu.memory_space<vmem>>) attributes {dimension_semantics = [#tpu.dimension_semantics<arbitrary>], iteration_bounds = array<i64: 1>, scalar_prefetch = 0 : i64, scratch_operands = 0 : i64, tpu.core_type = #tpu.core_type<tc>, window_params = [{pipeline_mode = #tpu.pipeline_mode<synchronous>, transform_indices = @transform_0, window_bounds = array<i64: 16, 288>}, {pipeline_mode = #tpu.pipeline_mode<synchronous>, transform_indices = @transform_1, window_bounds = array<i64: 288, 98>}, {pipeline_mode = #tpu.pipeline_mode<synchronous>, transform_indices = @transform_2, window_bounds = array<i64: 16, 1>}, {pipeline_mode = #tpu.pipeline_mode<synchronous>, transform_indices = @transform_3, window_bounds = array<i64: 16, 1>}, {pipeline_mode = #tpu.pipeline_mode<synchronous>, transform_indices = @transform_4, window_bounds = array<i64: 16, 1>}, {pipeline_mode = #tpu.pipeline_mode<synchronous>, transform_indices = @transform_5, window_bounds = array<i64: 16, 98>}]} {
    %c0 = arith.constant 0 : index
    %c0_0 = arith.constant 0 : index
    %0 = vector.load %arg1[%c0, %c0_0] : memref<16x288xf32, #tpu.memory_space<vmem>>, vector<16x288xf32>
    %c0_1 = arith.constant 0 : index
    %c0_2 = arith.constant 0 : index
    %1 = vector.load %arg2[%c0_1, %c0_2] : memref<288x98xf32, #tpu.memory_space<vmem>>, vector<288x98xf32>
    %cst = arith.constant dense<0.000000e+00> : vector<16x98xf32>
    %2 = tpu.matmul %0, %1, %cst {dimension_numbers = #tpu.dot_dimension_numbers<[1], [0], [0], [1], [0, 0, 1, 1], [], []>} : vector<16x288xf32>, vector<288x98xf32>, vector<16x98xf32> -> vector<16x98xf32>
    %c0_3 = arith.constant 0 : index
    %c0_4 = arith.constant 0 : index
    %3 = vector.load %arg3[%c0_3, %c0_4] : memref<16x1xf32, #tpu.memory_space<vmem>>, vector<16x1xf32>
    %4 = vector.broadcast %3 : vector<16x1xf32> to vector<16x98xf32>
    %5 = arith.addf %2, %4 : vector<16x98xf32>
    %cst_5 = arith.constant dense<0.000000e+00> : vector<16xf32>
    %6 = vector.multi_reduction <add>, %5, %cst_5 [1] : vector<16x98xf32> to vector<16xf32>
    %7 = vector.shape_cast %6 : vector<16xf32> to vector<16x1xf32>
    %cst_6 = arith.constant 9.800000e+01 : f32
    %8 = vector.broadcast %cst_6 : f32 to vector<16x1xf32>
    %9 = arith.divf %7, %8 : vector<16x1xf32>
    %10 = vector.broadcast %9 : vector<16x1xf32> to vector<16x98xf32>
    %11 = arith.subf %5, %10 : vector<16x98xf32>
    %12 = arith.mulf %11, %11 : vector<16x98xf32>
    %cst_7 = arith.constant dense<0.000000e+00> : vector<16xf32>
    %13 = vector.multi_reduction <add>, %12, %cst_7 [1] : vector<16x98xf32> to vector<16xf32>
    %14 = vector.shape_cast %13 : vector<16xf32> to vector<16x1xf32>
    %cst_8 = arith.constant 9.800000e+01 : f32
    %15 = vector.broadcast %cst_8 : f32 to vector<16x1xf32>
    %16 = arith.divf %14, %15 : vector<16x1xf32>
    %17 = vector.broadcast %9 : vector<16x1xf32> to vector<16x98xf32>
    %18 = arith.subf %5, %17 : vector<16x98xf32>
    %cst_9 = arith.constant 9.99999974E-6 : f32
    %19 = vector.broadcast %cst_9 : f32 to vector<16x1xf32>
    %20 = arith.addf %16, %19 : vector<16x1xf32>
    %21 = math.rsqrt %20 : vector<16x1xf32>
    %22 = vector.broadcast %21 : vector<16x1xf32> to vector<16x98xf32>
    %23 = arith.mulf %18, %22 : vector<16x98xf32>
    %c0_10 = arith.constant 0 : index
    %c0_11 = arith.constant 0 : index
    %24 = vector.load %arg4[%c0_10, %c0_11] : memref<16x1xf32, #tpu.memory_space<vmem>>, vector<16x1xf32>
    %25 = vector.broadcast %24 : vector<16x1xf32> to vector<16x98xf32>
    %26 = arith.mulf %23, %25 : vector<16x98xf32>
    %c0_12 = arith.constant 0 : index
    %c0_13 = arith.constant 0 : index
    %27 = vector.load %arg5[%c0_12, %c0_13] : memref<16x1xf32, #tpu.memory_space<vmem>>, vector<16x1xf32>
    %28 = vector.broadcast %27 : vector<16x1xf32> to vector<16x98xf32>
    %29 = arith.addf %26, %28 : vector<16x98xf32>
    %cst_14 = arith.constant 0.000000e+00 : f32
    %30 = vector.broadcast %cst_14 : f32 to vector<16x98xf32>
    %31 = arith.maximumf %29, %30 : vector<16x98xf32>
    %c0_15 = arith.constant 0 : index
    %c0_16 = arith.constant 0 : index
    %32 = vector.load %arg6[%c0_15, %c0_16] : memref<16x98xf32, #tpu.memory_space<vmem>>, vector<16x98xf32>
    tpu.vector_store %arg6[%c0_15, %c0_16], %31 {strides = array<i32>} : memref<16x98xf32, #tpu.memory_space<vmem>>, vector<16x98xf32>,
    return
  }
  func.func @transform_0(%arg0: i32) -> (i32, i32) {
    %c0_i32 = arith.constant 0 : i32
    %c0_i32_0 = arith.constant 0 : i32
    %c0_i32_1 = arith.constant 0 : i32
    return %c0_i32, %c0_i32_0 : i32, i32
  }
  func.func @transform_1(%arg0: i32) -> (i32, i32) {
    %c0_i32 = arith.constant 0 : i32
    %c0_i32_0 = arith.constant 0 : i32
    %c0_i32_1 = arith.constant 0 : i32
    return %c0_i32, %c0_i32_0 : i32, i32
  }
  func.func @transform_2(%arg0: i32) -> (i32, i32) {
    %c0_i32 = arith.constant 0 : i32
    %c0_i32_0 = arith.constant 0 : i32
    %c0_i32_1 = arith.constant 0 : i32
    return %c0_i32, %c0_i32_0 : i32, i32
  }
  func.func @transform_3(%arg0: i32) -> (i32, i32) {
    %c0_i32 = arith.constant 0 : i32
    %c0_i32_0 = arith.constant 0 : i32
    %c0_i32_1 = arith.constant 0 : i32
    return %c0_i32, %c0_i32_0 : i32, i32
  }
  func.func @transform_4(%arg0: i32) -> (i32, i32) {
    %c0_i32 = arith.constant 0 : i32
    %c0_i32_0 = arith.constant 0 : i32
    %c0_i32_1 = arith.constant 0 : i32
    return %c0_i32, %c0_i32_0 : i32, i32
  }
  func.func @transform_5(%arg0: i32) -> (i32, i32) {
    %c0_i32 = arith.constant 0 : i32
    %c0_i32_0 = arith.constant 0 : i32
    %c0_i32_1 = arith.constant 0 : i32
    return %c0_i32, %c0_i32_0 : i32, i32
  }
}

module attributes {stable_mosaic.version = 11 : i64} {
  func.func @_conv_bn_act_kernel(%arg0: i32, %arg1: memref<8x144xf32, #tpu.memory_space<vmem>>, %arg2: memref<144x392xf32, #tpu.memory_space<vmem>>, %arg3: memref<8x1xf32, #tpu.memory_space<vmem>>, %arg4: memref<8x1xf32, #tpu.memory_space<vmem>>, %arg5: memref<8x1xf32, #tpu.memory_space<vmem>>, %arg6: memref<8x392xf32, #tpu.memory_space<vmem>>) attributes {dimension_semantics = [#tpu.dimension_semantics<arbitrary>], iteration_bounds = array<i64: 1>, scalar_prefetch = 0 : i64, scratch_operands = 0 : i64, tpu.core_type = #tpu.core_type<tc>, window_params = [{pipeline_mode = #tpu.pipeline_mode<synchronous>, transform_indices = @transform_0, window_bounds = array<i64: 8, 144>}, {pipeline_mode = #tpu.pipeline_mode<synchronous>, transform_indices = @transform_1, window_bounds = array<i64: 144, 392>}, {pipeline_mode = #tpu.pipeline_mode<synchronous>, transform_indices = @transform_2, window_bounds = array<i64: 8, 1>}, {pipeline_mode = #tpu.pipeline_mode<synchronous>, transform_indices = @transform_3, window_bounds = array<i64: 8, 1>}, {pipeline_mode = #tpu.pipeline_mode<synchronous>, transform_indices = @transform_4, window_bounds = array<i64: 8, 1>}, {pipeline_mode = #tpu.pipeline_mode<synchronous>, transform_indices = @transform_5, window_bounds = array<i64: 8, 392>}]} {
    %c0 = arith.constant 0 : index
    %c0_0 = arith.constant 0 : index
    %0 = vector.load %arg1[%c0, %c0_0] : memref<8x144xf32, #tpu.memory_space<vmem>>, vector<8x144xf32>
    %c0_1 = arith.constant 0 : index
    %c0_2 = arith.constant 0 : index
    %1 = vector.load %arg2[%c0_1, %c0_2] : memref<144x392xf32, #tpu.memory_space<vmem>>, vector<144x392xf32>
    %cst = arith.constant dense<0.000000e+00> : vector<8x392xf32>
    %2 = tpu.matmul %0, %1, %cst {dimension_numbers = #tpu.dot_dimension_numbers<[1], [0], [0], [1], [0, 0, 1, 1], [], []>} : vector<8x144xf32>, vector<144x392xf32>, vector<8x392xf32> -> vector<8x392xf32>
    %c0_3 = arith.constant 0 : index
    %c0_4 = arith.constant 0 : index
    %3 = vector.load %arg3[%c0_3, %c0_4] : memref<8x1xf32, #tpu.memory_space<vmem>>, vector<8x1xf32>
    %4 = vector.broadcast %3 : vector<8x1xf32> to vector<8x392xf32>
    %5 = arith.addf %2, %4 : vector<8x392xf32>
    %cst_5 = arith.constant dense<0.000000e+00> : vector<8xf32>
    %6 = vector.multi_reduction <add>, %5, %cst_5 [1] : vector<8x392xf32> to vector<8xf32>
    %7 = vector.shape_cast %6 : vector<8xf32> to vector<8x1xf32>
    %cst_6 = arith.constant 3.920000e+02 : f32
    %8 = vector.broadcast %cst_6 : f32 to vector<8x1xf32>
    %9 = arith.divf %7, %8 : vector<8x1xf32>
    %10 = vector.broadcast %9 : vector<8x1xf32> to vector<8x392xf32>
    %11 = arith.subf %5, %10 : vector<8x392xf32>
    %12 = arith.mulf %11, %11 : vector<8x392xf32>
    %cst_7 = arith.constant dense<0.000000e+00> : vector<8xf32>
    %13 = vector.multi_reduction <add>, %12, %cst_7 [1] : vector<8x392xf32> to vector<8xf32>
    %14 = vector.shape_cast %13 : vector<8xf32> to vector<8x1xf32>
    %cst_8 = arith.constant 3.920000e+02 : f32
    %15 = vector.broadcast %cst_8 : f32 to vector<8x1xf32>
    %16 = arith.divf %14, %15 : vector<8x1xf32>
    %17 = vector.broadcast %9 : vector<8x1xf32> to vector<8x392xf32>
    %18 = arith.subf %5, %17 : vector<8x392xf32>
    %cst_9 = arith.constant 9.99999974E-6 : f32
    %19 = vector.broadcast %cst_9 : f32 to vector<8x1xf32>
    %20 = arith.addf %16, %19 : vector<8x1xf32>
    %21 = math.rsqrt %20 : vector<8x1xf32>
    %22 = vector.broadcast %21 : vector<8x1xf32> to vector<8x392xf32>
    %23 = arith.mulf %18, %22 : vector<8x392xf32>
    %c0_10 = arith.constant 0 : index
    %c0_11 = arith.constant 0 : index
    %24 = vector.load %arg4[%c0_10, %c0_11] : memref<8x1xf32, #tpu.memory_space<vmem>>, vector<8x1xf32>
    %25 = vector.broadcast %24 : vector<8x1xf32> to vector<8x392xf32>
    %26 = arith.mulf %23, %25 : vector<8x392xf32>
    %c0_12 = arith.constant 0 : index
    %c0_13 = arith.constant 0 : index
    %27 = vector.load %arg5[%c0_12, %c0_13] : memref<8x1xf32, #tpu.memory_space<vmem>>, vector<8x1xf32>
    %28 = vector.broadcast %27 : vector<8x1xf32> to vector<8x392xf32>
    %29 = arith.addf %26, %28 : vector<8x392xf32>
    %cst_14 = arith.constant 0.000000e+00 : f32
    %30 = vector.broadcast %cst_14 : f32 to vector<8x392xf32>
    %31 = arith.maximumf %29, %30 : vector<8x392xf32>
    %c0_15 = arith.constant 0 : index
    %c0_16 = arith.constant 0 : index
    %32 = vector.load %arg6[%c0_15, %c0_16] : memref<8x392xf32, #tpu.memory_space<vmem>>, vector<8x392xf32>
    tpu.vector_store %arg6[%c0_15, %c0_16], %31 {strides = array<i32>} : memref<8x392xf32, #tpu.memory_space<vmem>>, vector<8x392xf32>,
    return
  }
  func.func @transform_0(%arg0: i32) -> (i32, i32) {
    %c0_i32 = arith.constant 0 : i32
    %c0_i32_0 = arith.constant 0 : i32
    %c0_i32_1 = arith.constant 0 : i32
    return %c0_i32, %c0_i32_0 : i32, i32
  }
  func.func @transform_1(%arg0: i32) -> (i32, i32) {
    %c0_i32 = arith.constant 0 : i32
    %c0_i32_0 = arith.constant 0 : i32
    %c0_i32_1 = arith.constant 0 : i32
    return %c0_i32, %c0_i32_0 : i32, i32
  }
  func.func @transform_2(%arg0: i32) -> (i32, i32) {
    %c0_i32 = arith.constant 0 : i32
    %c0_i32_0 = arith.constant 0 : i32
    %c0_i32_1 = arith.constant 0 : i32
    return %c0_i32, %c0_i32_0 : i32, i32
  }
  func.func @transform_3(%arg0: i32) -> (i32, i32) {
    %c0_i32 = arith.constant 0 : i32
    %c0_i32_0 = arith.constant 0 : i32
    %c0_i32_1 = arith.constant 0 : i32
    return %c0_i32, %c0_i32_0 : i32, i32
  }
  func.func @transform_4(%arg0: i32) -> (i32, i32) {
    %c0_i32 = arith.constant 0 : i32
    %c0_i32_0 = arith.constant 0 : i32
    %c0_i32_1 = arith.constant 0 : i32
    return %c0_i32, %c0_i32_0 : i32, i32
  }
  func.func @transform_5(%arg0: i32) -> (i32, i32) {
    %c0_i32 = arith.constant 0 : i32
    %c0_i32_0 = arith.constant 0 : i32
    %c0_i32_1 = arith.constant 0 : i32
    return %c0_i32, %c0_i32_0 : i32, i32
  }
}

module attributes {stable_mosaic.version = 11 : i64} {
  func.func @_conv_bn_act_kernel(%arg0: i32, %arg1: memref<3x72xf32, #tpu.memory_space<vmem>>, %arg2: memref<72x1568xf32, #tpu.memory_space<vmem>>, %arg3: memref<3x1xf32, #tpu.memory_space<vmem>>, %arg4: memref<3x1568xf32, #tpu.memory_space<vmem>>) attributes {dimension_semantics = [#tpu.dimension_semantics<arbitrary>], iteration_bounds = array<i64: 1>, scalar_prefetch = 0 : i64, scratch_operands = 0 : i64, tpu.core_type = #tpu.core_type<tc>, window_params = [{pipeline_mode = #tpu.pipeline_mode<synchronous>, transform_indices = @transform_0, window_bounds = array<i64: 3, 72>}, {pipeline_mode = #tpu.pipeline_mode<synchronous>, transform_indices = @transform_1, window_bounds = array<i64: 72, 1568>}, {pipeline_mode = #tpu.pipeline_mode<synchronous>, transform_indices = @transform_2, window_bounds = array<i64: 3, 1>}, {pipeline_mode = #tpu.pipeline_mode<synchronous>, transform_indices = @transform_3, window_bounds = array<i64: 3, 1568>}]} {
    %c0 = arith.constant 0 : index
    %c0_0 = arith.constant 0 : index
    %0 = vector.load %arg1[%c0, %c0_0] : memref<3x72xf32, #tpu.memory_space<vmem>>, vector<3x72xf32>
    %c0_1 = arith.constant 0 : index
    %c0_2 = arith.constant 0 : index
    %1 = vector.load %arg2[%c0_1, %c0_2] : memref<72x1568xf32, #tpu.memory_space<vmem>>, vector<72x1568xf32>
    %cst = arith.constant dense<0.000000e+00> : vector<3x1568xf32>
    %2 = tpu.matmul %0, %1, %cst {dimension_numbers = #tpu.dot_dimension_numbers<[1], [0], [0], [1], [0, 0, 1, 1], [], []>} : vector<3x72xf32>, vector<72x1568xf32>, vector<3x1568xf32> -> vector<3x1568xf32>
    %c0_3 = arith.constant 0 : index
    %c0_4 = arith.constant 0 : index
    %3 = vector.load %arg3[%c0_3, %c0_4] : memref<3x1xf32, #tpu.memory_space<vmem>>, vector<3x1xf32>
    %4 = vector.broadcast %3 : vector<3x1xf32> to vector<3x1568xf32>
    %5 = arith.addf %2, %4 : vector<3x1568xf32>
    %6 = arith.negf %5 : vector<3x1568xf32>
    %7 = math.exp %6 : vector<3x1568xf32>
    %cst_5 = arith.constant 1.000000e+00 : f32
    %8 = vector.broadcast %cst_5 : f32 to vector<3x1568xf32>
    %9 = arith.addf %8, %7 : vector<3x1568xf32>
    %10 = arith.divf %8, %9 : vector<3x1568xf32>
    %c0_6 = arith.constant 0 : index
    %c0_7 = arith.constant 0 : index
    %11 = vector.load %arg4[%c0_6, %c0_7] : memref<3x1568xf32, #tpu.memory_space<vmem>>, vector<3x1568xf32>
    tpu.vector_store %arg4[%c0_6, %c0_7], %10 {strides = array<i32>} : memref<3x1568xf32, #tpu.memory_space<vmem>>, vector<3x1568xf32>,
    return
  }
  func.func @transform_0(%arg0: i32) -> (i32, i32) {
    %c0_i32 = arith.constant 0 : i32
    %c0_i32_0 = arith.constant 0 : i32
    %c0_i32_1 = arith.constant 0 : i32
    return %c0_i32, %c0_i32_0 : i32, i32
  }
  func.func @transform_1(%arg0: i32) -> (i32, i32) {
    %c0_i32 = arith.constant 0 : i32
    %c0_i32_0 = arith.constant 0 : i32
    %c0_i32_1 = arith.constant 0 : i32
    return %c0_i32, %c0_i32_0 : i32, i32
  }
  func.func @transform_2(%arg0: i32) -> (i32, i32) {
    %c0_i32 = arith.constant 0 : i32
    %c0_i32_0 = arith.constant 0 : i32
    %c0_i32_1 = arith.constant 0 : i32
    return %c0_i32, %c0_i32_0 : i32, i32
  }
  func.func @transform_3(%arg0: i32) -> (i32, i32) {
    %c0_i32 = arith.constant 0 : i32
    %c0_i32_0 = arith.constant 0 : i32
    %c0_i32_1 = arith.constant 0 : i32
    return %c0_i32, %c0_i32_0 : i32, i32
  }
}

</mosaic_0001>

<llo_original>
// kernel: autoencoder_forward.8
$region0: #{autoencoder_forward.8}
  #allocation0 [shape = 'u32[]', space=smem, size = 0x4, offset = 0x4, fixed_abs, tag = 'smem constant byte address 0x4 - core index']
  #allocation1 [shape = 'u32[144,128]{1,0:T(1,128)}', space=vmem, size = 0x12000, scoped, tag = 'internal scratch']
  %s0 = inlined_call_operand.vmem [shape: f32[8,27], index: 0, kind: input, shape index: {}]
  %s1 = inlined_call_operand.vmem [shape: f32[27,392], index: 1, kind: input, shape index: {}]
  %s2 = inlined_call_operand.vmem [shape: f32[8,1], index: 2, kind: input, shape index: {}]
  %s3 = inlined_call_operand.vmem [shape: f32[8,392], index: 3, kind: output, shape index: {}]
  %s4 = sld [smem:[#allocation0]]
  $region22: #{autoencoder_forward.8} parent=0
    _
  %s6 = ssub.s32 1, %s4
  %s7 = scalar_select 0, %s6, %s4
  // Predicated region
  $region2: #{autoencoder_forward.8} parent=0 // pred_check
    _
  $region3: #{autoencoder_forward.8} parent=0 // pred_check_branch
    %9 = sbr.rel (0) target = $region5
  $region4: #{autoencoder_forward.8} parent=0 // pred_region
    _
  $region5: #{autoencoder_forward.8} parent=0 // pred_fallthru
    _
  // Predicated region
  $region6: #{autoencoder_forward.8} parent=0 // pred_check
    _
  $region7: #{autoencoder_forward.8} parent=0 // pred_check_branch
    %11 = sbr.rel (0) target = $region9
  $region8: #{autoencoder_forward.8} parent=0 // pred_region
    _
  $region9: #{autoencoder_forward.8} parent=0 // pred_fallthru
    _
  // Predicated region
  $region10: #{autoencoder_forward.8} parent=0 // pred_check
    _
  $region11: #{autoencoder_forward.8} parent=0 // pred_check_branch
    %13 = sbr.rel (0) target = $region13
  $region12: #{autoencoder_forward.8} parent=0 // pred_region
    _
  $region13: #{autoencoder_forward.8} parent=0 // pred_fallthru
    _
  %v14 = vld [vmem:[%s0] sm:$0xff]
  %v15 = vld [vmem:[%s1] sm:$0xff]
  %v16 = vld [vmem:[%s1 + $0x8] sm:$0xff]
  %v17 = vld [vmem:[%s1 + $0x10] sm:$0xff]
  %v18 = vld [vmem:[%s1 + $0x18] sm:$0xff]
  %v19 = vld [vmem:[%s1 + $0x20] sm:$0xff]
  %v20 = vld [vmem:[%s1 + $0x28] sm:$0xff]
  %v21 = vld [vmem:[%s1 + $0x30] sm:$0xff]
  %v22 = vld [vmem:[%s1 + $0x38] sm:$0xff]
  %v23 = vld [vmem:[%s1 + $0x40] sm:$0xff]
  %v24 = vld [vmem:[%s1 + $0x48] sm:$0xff]
  %v25 = vld [vmem:[%s1 + $0x50] sm:$0xff]
  %v26 = vld [vmem:[%s1 + $0x58] sm:$0xff]
  %v27 = vld [vmem:[%s1 + $0x60] sm:$0x7]
  %v28 = vld [vmem:[%s1 + $0x68] sm:$0x7]
  %v29 = vld [vmem:[%s1 + $0x70] sm:$0x7]
  %v30 = vld [vmem:[%s1 + $0x78] sm:$0x7]
  %v31 = vld [vmem:[%s2] sm:$0xff]
  %33 = vset.pattern.permute.xlu0 0
  %34 = vperm.xlu0 %33, %v31
  %v35 = vpop.permute.xlu0 %34
  %vm37 = vcmask 220160
  %v39 = vsel %vm37, %v14, 0
  %vm41 = vcmask 1042432
  %v43 = vsel %vm41, %v27, 0
  %v46 = vsel %vm41, %v28, 0
  %v49 = vsel %vm41, %v29, 0
  %v52 = vsel %vm41, %v30, 0
  %54 = vmatprep.subr.mxu0 0.0
  %55 = vmatpush1.msra.mxu0 0.0
  %56 = vmatprep.subr.mxu0 0.0
  %57 = vmatpush1.msra.mxu0 0.0
  %58 = vmatprep.subr.mxu0 0.0
  %59 = vmatpush1.msra.mxu0 0.0
  %60 = vmatprep.subr.mxu0 0.0
  %61 = vmatpush1.msra.mxu0 0.0
  %62 = vmatprep.subr.mxu0 0.0
  %63 = vmatpush1.msra.mxu0 0.0
  %64 = vmatprep.subr.mxu0 0.0
  %65 = vmatpush1.msra.mxu0 0.0
  %66 = vmatprep.subr.mxu0 0.0
  %67 = vmatpush1.msra.mxu0 0.0
  %68 = vmatprep.subr.mxu0 0.0
  %69 = vmatpush1.msra.mxu0 0.0
  %70 = vmatprep.subr.mxu0 0.0
  %71 = vmatpush1.msra.mxu0 0.0
  %72 = vmatprep.subr.mxu0 0.0
  %73 = vmatpush1.msra.mxu0 0.0
  %74 = vmatprep.subr.mxu0 0.0
  %75 = vmatpush1.msra.mxu0 0.0
  %76 = vmatprep.subr.mxu0 0.0
  %77 = vmatpush1.msra.mxu0 0.0
  %78 = vmatprep.subr.mxu0 %v46
  %79 = vmatpush1.msra.mxu0 %v43
  %80 = vmatprep.subr.mxu0 %v24
  %81 = vmatpush1.msra.mxu0 %v23
  %82 = vmatprep.subr.mxu0 %v20
  %83 = vmatpush1.msra.mxu0 %v19
  %84 = vmatprep.subr.mxu0 %v16
  %85 = vmatpush1.msra.mxu0 %v15
  %86 = vmatprep.subr.mxu0 0.0
  %87 = vmatpush2.msra.mxu0 0.0
  %88 = vmatprep.subr.mxu0 0.0
  %89 = vmatpush2.msra.mxu0 0.0
  %90 = vmatprep.subr.mxu0 0.0
  %91 = vmatpush2.msra.mxu0 0.0
  %92 = vmatprep.subr.mxu0 0.0
  %93 = vmatpush2.msra.mxu0 0.0
  %94 = vmatprep.subr.mxu0 0.0
  %95 = vmatpush2.msra.mxu0 0.0
  %96 = vmatprep.subr.mxu0 0.0
  %97 = vmatpush2.msra.mxu0 0.0
  %98 = vmatprep.subr.mxu0 0.0
  %99 = vmatpush2.msra.mxu0 0.0
  %100 = vmatprep.subr.mxu0 0.0
  %101 = vmatpush2.msra.mxu0 0.0
  %102 = vmatprep.subr.mxu0 0.0
  %103 = vmatpush2.msra.mxu0 0.0
  %104 = vmatprep.subr.mxu0 0.0
  %105 = vmatpush2.msra.mxu0 0.0
  %106 = vmatprep.subr.mxu0 0.0
  %107 = vmatpush2.msra.mxu0 0.0
  %108 = vmatprep.subr.mxu0 0.0
  %109 = vmatpush2.msra.mxu0 0.0
  %110 = vmatprep.subr.mxu0 0.0
  %111 = vmatpush2.msra.mxu0 0.0
  %112 = vmatprep.subr.mxu0 0.0
  %113 = vmatpush2.msra.mxu0 0.0
  %114 = vmatprep.subr.mxu0 0.0
  %115 = vmatpush2.msra.mxu0 0.0
  %116 = vmatprep.subr.mxu0 0.0
  %117 = vmatpush2.msra.mxu0 0.0
  %118 = vmatprep.mubr.f32.mxu0 0.0
  %119 = vmatmul.mubr.f32.gmra.mxu0 %v39
  %v120 = vpop.f32.mrf.mxu0
  %v121 = vadd.f32 %v35, %v120
  %v122 = vpop.f32.mrf.mxu0
  %v123 = vadd.f32 %v35, %v122
  %124 = vdwg.mxu0
  %125 = vmatprep.subr.mxu0 0.0
  %126 = vmatpush1.msra.mxu0 0.0
  %127 = vmatprep.subr.mxu0 0.0
  %128 = vmatpush1.msra.mxu0 0.0
  %129 = vmatprep.subr.mxu0 0.0
  %130 = vmatpush1.msra.mxu0 0.0
  %131 = vmatprep.subr.mxu0 0.0
  %132 = vmatpush1.msra.mxu0 0.0
  %133 = vmatprep.subr.mxu0 0.0
  %134 = vmatpush1.msra.mxu0 0.0
  %135 = vmatprep.subr.mxu0 0.0
  %136 = vmatpush1.msra.mxu0 0.0
  %137 = vmatprep.subr.mxu0 0.0
  %138 = vmatpush1.msra.mxu0 0.0
  %139 = vmatprep.subr.mxu0 0.0
  %140 = vmatpush1.msra.mxu0 0.0
  %141 = vmatprep.subr.mxu0 0.0
  %142 = vmatpush1.msra.mxu0 0.0
  %143 = vmatprep.subr.mxu0 0.0
  %144 = vmatpush1.msra.mxu0 0.0
  %145 = vmatprep.subr.mxu0 0.0
  %146 = vmatpush1.msra.mxu0 0.0
  %147 = vmatprep.subr.mxu0 0.0
  %148 = vmatpush1.msra.mxu0 0.0
  %149 = vmatprep.subr.mxu0 %v52
  %150 = vmatpush1.msra.mxu0 %v49
  %151 = vmatprep.subr.mxu0 %v26
  %152 = vmatpush1.msra.mxu0 %v25
  %153 = vmatprep.subr.mxu0 %v22
  %154 = vmatpush1.msra.mxu0 %v21
  %155 = vmatprep.subr.mxu0 %v18
  %156 = vmatpush1.msra.mxu0 %v17
  %157 = vmatprep.subr.mxu0 0.0
  %158 = vmatpush2.msra.mxu0 0.0
  %159 = vmatprep.subr.mxu0 0.0
  %160 = vmatpush2.msra.mxu0 0.0
  %161 = vmatprep.subr.mxu0 0.0
  %162 = vmatpush2.msra.mxu0 0.0
  %163 = vmatprep.subr.mxu0 0.0
  %164 = vmatpush2.msra.mxu0 0.0
  %165 = vmatprep.subr.mxu0 0.0
  %166 = vmatpush2.msra.mxu0 0.0
  %167 = vmatprep.subr.mxu0 0.0
  %168 = vmatpush2.msra.mxu0 0.0
  %169 = vmatprep.subr.mxu0 0.0
  %170 = vmatpush2.msra.mxu0 0.0
  %171 = vmatprep.subr.mxu0 0.0
  %172 = vmatpush2.msra.mxu0 0.0
  %173 = vmatprep.subr.mxu0 0.0
  %174 = vmatpush2.msra.mxu0 0.0
  %175 = vmatprep.subr.mxu0 0.0
  %176 = vmatpush2.msra.mxu0 0.0
  %177 = vmatprep.subr.mxu0 0.0
  %178 = vmatpush2.msra.mxu0 0.0
  %179 = vmatprep.subr.mxu0 0.0
  %180 = vmatpush2.msra.mxu0 0.0
  %181 = vmatprep.subr.mxu0 0.0
  %182 = vmatpush2.msra.mxu0 0.0
  %183 = vmatprep.subr.mxu0 0.0
  %184 = vmatpush2.msra.mxu0 0.0
  %185 = vmatprep.subr.mxu0 0.0
  %186 = vmatpush2.msra.mxu0 0.0
  %187 = vmatprep.subr.mxu0 0.0
  %188 = vmatpush2.msra.mxu0 0.0
  %189 = vmatprep.mubr.f32.mxu0 0.0
  %190 = vmatmul.mubr.f32.gmra.mxu0 %v39
  %v191 = vpop.f32.mrf.mxu0
  %v192 = vadd.f32 %v35, %v191
  %v193 = vpop.f32.mrf.mxu0
  %v194 = vadd.f32 %v35, %v193
  %195 = vdwg.mxu0
  %v196 = vmax.f32 %v121, 0.0
  %v197 = vmax.f32 %v123, 0.0
  %v198 = vmax.f32 %v192, 0.0
  %v199 = vmax.f32 %v194, 0.0
  %200 = vst [vmem:[%s3] sm:$0xff] %v196
  %201 = vst [vmem:[%s3 + $0x8] sm:$0xff] %v197
  %202 = vst [vmem:[%s3 + $0x10] sm:$0xff] %v198
  %vm203 = vcmask 64512
  %204 = vst.msk [vmem:[%s3 + $0x18] sm:$0xff] %vm203, %v199
  // Predicated region
  $region14: #{autoencoder_forward.8} parent=0 // pred_check
    _
  $region15: #{autoencoder_forward.8} parent=0 // pred_check_branch
    %206 = sbr.rel (0) target = $region17
  $region16: #{autoencoder_forward.8} parent=0 // pred_region
    _
  $region17: #{autoencoder_forward.8} parent=0 // pred_fallthru
    _
  // Predicated region
  $region18: #{autoencoder_forward.8} parent=0 // pred_check
    _
  $region19: #{autoencoder_forward.8} parent=0 // pred_check_branch
    %208 = sbr.rel (0) target = $region21
  $region20: #{autoencoder_forward.8} parent=0 // pred_region
    _
  $region21: #{autoencoder_forward.8} parent=0 // pred_fallthru
    _

// kernel: autoencoder_forward.9
$region0: #{autoencoder_forward.9}
  #allocation0 [shape = 'u32[]', space=smem, size = 0x4, offset = 0x4, fixed_abs, tag = 'smem constant byte address 0x4 - core index']
  #allocation1 [shape = 'u32[144,128]{1,0:T(1,128)}', space=vmem, size = 0x12000, scoped, tag = 'internal scratch']
  %s0 = inlined_call_operand.vmem [shape: f32[16,72], index: 0, kind: input, shape index: {}]
  %s1 = inlined_call_operand.vmem [shape: f32[72,98], index: 1, kind: input, shape index: {}]
  %s2 = inlined_call_operand.vmem [shape: f32[16,1], index: 2, kind: input, shape index: {}]
  %s3 = inlined_call_operand.vmem [shape: f32[16,1], index: 3, kind: input, shape index: {}]
  %s4 = inlined_call_operand.vmem [shape: f32[16,1], index: 4, kind: input, shape index: {}]
  %s5 = inlined_call_operand.vmem [shape: f32[16,98], index: 5, kind: output, shape index: {}]
  %s6 = sld [smem:[#allocation0]]
  $region30: #{autoencoder_forward.9} parent=0
    _
  %s8 = ssub.s32 1, %s6
  %s9 = scalar_select 0, %s8, %s6
  // Predicated region
  $region2: #{autoencoder_forward.9} parent=0 // pred_check
    _
  $region3: #{autoencoder_forward.9} parent=0 // pred_check_branch
    %11 = sbr.rel (0) target = $region5
  $region4: #{autoencoder_forward.9} parent=0 // pred_region
    _
  $region5: #{autoencoder_forward.9} parent=0 // pred_fallthru
    _
  // Predicated region
  $region6: #{autoencoder_forward.9} parent=0 // pred_check
    _
  $region7: #{autoencoder_forward.9} parent=0 // pred_check_branch
    %13 = sbr.rel (0) target = $region9
  $region8: #{autoencoder_forward.9} parent=0 // pred_region
    _
  $region9: #{autoencoder_forward.9} parent=0 // pred_fallthru
    _
  // Predicated region
  $region10: #{autoencoder_forward.9} parent=0 // pred_check
    _
  $region11: #{autoencoder_forward.9} parent=0 // pred_check_branch
    %15 = sbr.rel (0) target = $region13
  $region12: #{autoencoder_forward.9} parent=0 // pred_region
    _
  $region13: #{autoencoder_forward.9} parent=0 // pred_fallthru
    _
  // Predicated region
  $region14: #{autoencoder_forward.9} parent=0 // pred_check
    _
  $region15: #{autoencoder_forward.9} parent=0 // pred_check_branch
    %17 = sbr.rel (0) target = $region17
  $region16: #{autoencoder_forward.9} parent=0 // pred_region
    _
  $region17: #{autoencoder_forward.9} parent=0 // pred_fallthru
    _
  // Predicated region
  $region18: #{autoencoder_forward.9} parent=0 // pred_check
    _
  $region19: #{autoencoder_forward.9} parent=0 // pred_check_branch
    %19 = sbr.rel (0) target = $region21
  $region20: #{autoencoder_forward.9} parent=0 // pred_region
    _
  $region21: #{autoencoder_forward.9} parent=0 // pred_fallthru
    _
  %v20 = vld [vmem:[%s0] sm:$0xff]
  %v21 = vld [vmem:[%s0 + $0x8] sm:$0xff]
  %v22 = vld [vmem:[%s1] sm:$0xff]
  %v23 = vld [vmem:[%s1 + $0x8] sm:$0xff]
  %v24 = vld [vmem:[%s1 + $0x10] sm:$0xff]
  %v25 = vld [vmem:[%s1 + $0x18] sm:$0xff]
  %v26 = vld [vmem:[%s1 + $0x20] sm:$0xff]
  %v27 = vld [vmem:[%s1 + $0x28] sm:$0xff]
  %v28 = vld [vmem:[%s1 + $0x30] sm:$0xff]
  %v29 = vld [vmem:[%s1 + $0x38] sm:$0xff]
  %v30 = vld [vmem:[%s1 + $0x40] sm:$0xff]
  %v31 = vld [vmem:[%s2] sm:$0xff]
  %v32 = vld [vmem:[%s2 + $0x8] sm:$0xff]
  %34 = vset.pattern.permute.xlu0 0
  %35 = vperm.xlu0 %34, %v31
  %v36 = vpop.permute.xlu0 %35
  %39 = vset.pattern.permute.xlu0 0
  %40 = vperm.xlu0 %39, %v32
  %v41 = vpop.permute.xlu0 %40
  %vm43 = vcmask 588800
  %v45 = vsel %vm43, %v20, 0
  %v48 = vsel %vm43, %v21, 0
  %50 = vmatprep.subr.mxu0 0.0
  %51 = vmatpush1.msra.mxu0 0.0
  %52 = vmatprep.subr.mxu0 0.0
  %53 = vmatpush1.msra.mxu0 0.0
  %54 = vmatprep.subr.mxu0 0.0
  %55 = vmatpush1.msra.mxu0 0.0
  %56 = vmatprep.subr.mxu0 0.0
  %57 = vmatpush1.msra.mxu0 0.0
  %58 = vmatprep.subr.mxu0 0.0
  %59 = vmatpush1.msra.mxu0 0.0
  %60 = vmatprep.subr.mxu0 0.0
  %61 = vmatpush1.msra.mxu0 0.0
  %62 = vmatprep.subr.mxu0 0.0
  %63 = vmatpush1.msra.mxu0 0.0
  %64 = vmatprep.subr.mxu0 0.0
  %65 = vmatpush1.msra.mxu0 %v30
  %66 = vmatprep.subr.mxu0 0.0
  %67 = vmatpush1.msra.mxu0 %v29
  %68 = vmatprep.subr.mxu0 0.0
  %69 = vmatpush1.msra.mxu0 %v28
  %70 = vmatprep.subr.mxu0 0.0
  %71 = vmatpush1.msra.mxu0 %v27
  %72 = vmatprep.subr.mxu0 0.0
  %73 = vmatpush1.msra.mxu0 %v26
  %74 = vmatprep.subr.mxu0 0.0
  %75 = vmatpush1.msra.mxu0 %v25
  %76 = vmatprep.subr.mxu0 0.0
  %77 = vmatpush1.msra.mxu0 %v24
  %78 = vmatprep.subr.mxu0 0.0
  %79 = vmatpush1.msra.mxu0 %v23
  %80 = vmatprep.subr.mxu0 0.0
  %81 = vmatpush1.msra.mxu0 %v22
  %82 = vmatprep.subr.mxu0 0.0
  %83 = vmatpush2.msra.mxu0 0.0
  %84 = vmatprep.subr.mxu0 0.0
  %85 = vmatpush2.msra.mxu0 0.0
  %86 = vmatprep.subr.mxu0 0.0
  %87 = vmatpush2.msra.mxu0 0.0
  %88 = vmatprep.subr.mxu0 0.0
  %89 = vmatpush2.msra.mxu0 0.0
  %90 = vmatprep.subr.mxu0 0.0
  %91 = vmatpush2.msra.mxu0 0.0
  %92 = vmatprep.subr.mxu0 0.0
  %93 = vmatpush2.msra.mxu0 0.0
  %94 = vmatprep.subr.mxu0 0.0
  %95 = vmatpush2.msra.mxu0 0.0
  %96 = vmatprep.subr.mxu0 0.0
  %97 = vmatpush2.msra.mxu0 0.0
  %98 = vmatprep.subr.mxu0 0.0
  %99 = vmatpush2.msra.mxu0 0.0
  %100 = vmatprep.subr.mxu0 0.0
  %101 = vmatpush2.msra.mxu0 0.0
  %102 = vmatprep.subr.mxu0 0.0
  %103 = vmatpush2.msra.mxu0 0.0
  %104 = vmatprep.subr.mxu0 0.0
  %105 = vmatpush2.msra.mxu0 0.0
  %106 = vmatprep.subr.mxu0 0.0
  %107 = vmatpush2.msra.mxu0 0.0
  %108 = vmatprep.subr.mxu0 0.0
  %109 = vmatpush2.msra.mxu0 0.0
  %110 = vmatprep.subr.mxu0 0.0
  %111 = vmatpush2.msra.mxu0 0.0
  %112 = vmatprep.subr.mxu0 0.0
  %113 = vmatpush2.msra.mxu0 0.0
  %114 = vmatprep.mubr.f32.mxu0 0.0
  %115 = vmatmul.mubr.f32.gmra.mxu0 %v45
  %v116 = vpop.f32.mrf.mxu0
  %v117 = vadd.f32 %v36, %v116
  %v118 = vpop.f32.mrf.mxu0
  %119 = vmatprep.mubr.f32.mxu0 0.0
  %120 = vmatmul.mubr.f32.gmra.mxu0 %v48
  %v121 = vpop.f32.mrf.mxu0
  %v122 = vadd.f32 %v41, %v121
  %v123 = vpop.f32.mrf.mxu0
  %124 = vdwg.mxu0
  %vm125 = vcmask 801792
  %v126 = vsel %vm125, %v117, 0.0
  %127 = vadd.xlane.f32.xlu0 %v126
  %v128 = vpop.xlane.xlu0 %127
  %v129 = vsel %vm125, %v122, 0.0
  %130 = vadd.xlane.f32.xlu0 %v129
  %v131 = vpop.xlane.xlu0 %130
  %v132 = vrcp.pop 98.0
  %v133 = vmul.f32 %v128, %v132
  %v134 = vmul.f32 %v131, %v132
  %v135 = vsub.f32 %v117, %v133
  %v136 = vsub.f32 %v122, %v134
  %v137 = vmul.f32 %v135, %v135
  %v138 = vmul.f32 %v136, %v136
  %v139 = vsel %vm125, %v137, 0.0
  %140 = vadd.xlane.f32.xlu0 %v139
  %v141 = vpop.xlane.xlu0 %140
  %v142 = vsel %vm125, %v138, 0.0
  %143 = vadd.xlane.f32.xlu0 %v142
  %v144 = vpop.xlane.xlu0 %143
  %v145 = vmul.f32 %v141, %v132
  %v146 = vmul.f32 %v144, %v132
  %v147 = vadd.f32 %v145, 1e-05
  %v148 = vadd.f32 %v146, 1e-05
  %v149 = vrsqrt.pop %v147
  %v150 = vrsqrt.pop %v148
  %v151 = vmul.f32 %v135, %v149
  %v152 = vmul.f32 %v136, %v150
  %v153 = vld [vmem:[%s3] sm:$0xff]
  %v154 = vld [vmem:[%s3 + $0x8] sm:$0xff]
  %156 = vset.pattern.permute.xlu0 0
  %157 = vperm.xlu0 %156, %v153
  %v158 = vpop.permute.xlu0 %157
  %161 = vset.pattern.permute.xlu0 0
  %162 = vperm.xlu0 %161, %v154
  %v163 = vpop.permute.xlu0 %162
  %v165 = vmul.f32 %v151, %v158
  %v166 = vmul.f32 %v152, %v163
  %v167 = vld [vmem:[%s4] sm:$0xff]
  %v168 = vld [vmem:[%s4 + $0x8] sm:$0xff]
  %170 = vset.pattern.permute.xlu0 0
  %171 = vperm.xlu0 %170, %v167
  %v172 = vpop.permute.xlu0 %171
  %175 = vset.pattern.permute.xlu0 0
  %176 = vperm.xlu0 %175, %v168
  %v177 = vpop.permute.xlu0 %176
  %v179 = vadd.f32 %v165, %v172
  %v180 = vadd.f32 %v166, %v177
  %v181 = vmax.f32 %v179, 0.0
  %v182 = vmax.f32 %v180, 0.0
  %183 = vst.msk [vmem:[%s5] sm:$0xff] %vm125, %v181
  %184 = vst.msk [vmem:[%s5 + $0x8] sm:$0xff] %vm125, %v182
  // Predicated region
  $region22: #{autoencoder_forward.9} parent=0 // pred_check
    _
  $region23: #{autoencoder_forward.9} parent=0 // pred_check_branch
    %186 = sbr.rel (0) target = $region25
  $region24: #{autoencoder_forward.9} parent=0 // pred_region
    _
  $region25: #{autoencoder_forward.9} parent=0 // pred_fallthru
    _
  // Predicated region
  $region26: #{autoencoder_forward.9} parent=0 // pred_check
    _
  $region27: #{autoencoder_forward.9} parent=0 // pred_check_branch
    %188 = sbr.rel (0) target = $region29
  $region28: #{autoencoder_forward.9} parent=0 // pred_region
    _
  $region29: #{autoencoder_forward.9} parent=0 // pred_fallthru
    _

// kernel: autoencoder_forward.10
$region0: #{autoencoder_forward.10}
  #allocation0 [shape = 'u32[]', space=smem, size = 0x4, offset = 0x4, fixed_abs, tag = 'smem constant byte address 0x4 - core index']
  #allocation1 [shape = 'u32[144,128]{1,0:T(1,128)}', space=vmem, size = 0x12000, scoped, tag = 'internal scratch']
  %s0 = inlined_call_operand.vmem [shape: f32[32,144], index: 0, kind: input, shape index: {}]
  %s1 = inlined_call_operand.vmem [shape: f32[144,18], index: 1, kind: input, shape index: {}]
  %s2 = inlined_call_operand.vmem [shape: f32[32,1], index: 2, kind: input, shape index: {}]
  %s3 = inlined_call_operand.vmem [shape: f32[32,18], index: 3, kind: output, shape index: {}]
  %s4 = sld [smem:[#allocation0]]
  $region22: #{autoencoder_forward.10} parent=0
    _
  %s6 = ssub.s32 1, %s4
  %s7 = scalar_select 0, %s6, %s4
  // Predicated region
  $region2: #{autoencoder_forward.10} parent=0 // pred_check
    _
  $region3: #{autoencoder_forward.10} parent=0 // pred_check_branch
    %9 = sbr.rel (0) target = $region5
  $region4: #{autoencoder_forward.10} parent=0 // pred_region
    _
  $region5: #{autoencoder_forward.10} parent=0 // pred_fallthru
    _
  // Predicated region
  $region6: #{autoencoder_forward.10} parent=0 // pred_check
    _
  $region7: #{autoencoder_forward.10} parent=0 // pred_check_branch
    %11 = sbr.rel (0) target = $region9
  $region8: #{autoencoder_forward.10} parent=0 // pred_region
    _
  $region9: #{autoencoder_forward.10} parent=0 // pred_fallthru
    _
  // Predicated region
  $region10: #{autoencoder_forward.10} parent=0 // pred_check
    _
  $region11: #{autoencoder_forward.10} parent=0 // pred_check_branch
    %13 = sbr.rel (0) target = $region13
  $region12: #{autoencoder_forward.10} parent=0 // pred_region
    _
  $region13: #{autoencoder_forward.10} parent=0 // pred_fallthru
    _
  %v14 = vld [vmem:[%s0] sm:$0xff]
  %v15 = vld [vmem:[%s0 + $0x8] sm:$0xff]
  %v16 = vld [vmem:[%s0 + $0x10] sm:$0xff]
  %v17 = vld [vmem:[%s0 + $0x18] sm:$0xff]
  %v18 = vld [vmem:[%s0 + $0x20] sm:$0xff]
  %v19 = vld [vmem:[%s0 + $0x28] sm:$0xff]
  %v20 = vld [vmem:[%s0 + $0x30] sm:$0xff]
  %v21 = vld [vmem:[%s0 + $0x38] sm:$0xff]
  %v22 = vld [vmem:[%s1] sm:$0xff]
  %v23 = vld [vmem:[%s1 + $0x8] sm:$0xff]
  %v24 = vld [vmem:[%s1 + $0x10] sm:$0xff]
  %v25 = vld [vmem:[%s1 + $0x18] sm:$0xff]
  %v26 = vld [vmem:[%s1 + $0x20] sm:$0xff]
  %v27 = vld [vmem:[%s1 + $0x28] sm:$0xff]
  %v28 = vld [vmem:[%s1 + $0x30] sm:$0xff]
  %v29 = vld [vmem:[%s1 + $0x38] sm:$0xff]
  %v30 = vld [vmem:[%s1 + $0x40] sm:$0xff]
  %v31 = vld [vmem:[%s1 + $0x48] sm:$0xff]
  %v32 = vld [vmem:[%s1 + $0x50] sm:$0xff]
  %v33 = vld [vmem:[%s1 + $0x58] sm:$0xff]
  %v34 = vld [vmem:[%s1 + $0x60] sm:$0xff]
  %v35 = vld [vmem:[%s1 + $0x68] sm:$0xff]
  %v36 = vld [vmem:[%s1 + $0x70] sm:$0xff]
  %v37 = vld [vmem:[%s1 + $0x78] sm:$0xff]
  %v38 = vld [vmem:[%s1 + $0x80] sm:$0xff]
  %v39 = vld [vmem:[%s1 + $0x88] sm:$0xff]
  %v40 = vld [vmem:[%s2] sm:$0xff]
  %v41 = vld [vmem:[%s2 + $0x8] sm:$0xff]
  %v42 = vld [vmem:[%s2 + $0x10] sm:$0xff]
  %v43 = vld [vmem:[%s2 + $0x18] sm:$0xff]
  %45 = vset.pattern.permute.xlu0 0
  %46 = vperm.xlu0 %45, %v40
  %v47 = vpop.permute.xlu0 %46
  %50 = vset.pattern.permute.xlu0 0
  %51 = vperm.xlu0 %50, %v41
  %v52 = vpop.permute.xlu0 %51
  %55 = vset.pattern.permute.xlu0 0
  %56 = vperm.xlu0 %55, %v42
  %v57 = vpop.permute.xlu0 %56
  %60 = vset.pattern.permute.xlu0 0
  %61 = vperm.xlu0 %60, %v43
  %v62 = vpop.permute.xlu0 %61
  %vm64 = vcmask 130048
  %v66 = vsel %vm64, %v15, 0
  %v69 = vsel %vm64, %v17, 0
  %v72 = vsel %vm64, %v19, 0
  %v75 = vsel %vm64, %v21, 0
  %77 = vmatprep.subr.mxu0 0.0
  %78 = vmatpush1.msra.mxu0 %v37
  %79 = vmatprep.subr.mxu0 0.0
  %80 = vmatpush1.msra.mxu0 %v36
  %81 = vmatprep.subr.mxu0 0.0
  %82 = vmatpush1.msra.mxu0 %v35
  %83 = vmatprep.subr.mxu0 0.0
  %84 = vmatpush1.msra.mxu0 %v34
  %85 = vmatprep.subr.mxu0 0.0
  %86 = vmatpush1.msra.mxu0 %v33
  %87 = vmatprep.subr.mxu0 0.0
  %88 = vmatpush1.msra.mxu0 %v32
  %89 = vmatprep.subr.mxu0 0.0
  %90 = vmatpush1.msra.mxu0 %v31
  %91 = vmatprep.subr.mxu0 0.0
  %92 = vmatpush1.msra.mxu0 %v30
  %93 = vmatprep.subr.mxu0 0.0
  %94 = vmatpush1.msra.mxu0 %v29
  %95 = vmatprep.subr.mxu0 0.0
  %96 = vmatpush1.msra.mxu0 %v28
  %97 = vmatprep.subr.mxu0 0.0
  %98 = vmatpush1.msra.mxu0 %v27
  %99 = vmatprep.subr.mxu0 0.0
  %100 = vmatpush1.msra.mxu0 %v26
  %101 = vmatprep.subr.mxu0 0.0
  %102 = vmatpush1.msra.mxu0 %v25
  %103 = vmatprep.subr.mxu0 0.0
  %104 = vmatpush1.msra.mxu0 %v24
  %105 = vmatprep.subr.mxu0 0.0
  %106 = vmatpush1.msra.mxu0 %v23
  %107 = vmatprep.subr.mxu0 0.0
  %108 = vmatpush1.msra.mxu0 %v22
  %109 = vmatprep.subr.mxu0 0.0
  %110 = vmatpush2.msra.mxu0 0.0
  %111 = vmatprep.subr.mxu0 0.0
  %112 = vmatpush2.msra.mxu0 0.0
  %113 = vmatprep.subr.mxu0 0.0
  %114 = vmatpush2.msra.mxu0 0.0
  %115 = vmatprep.subr.mxu0 0.0
  %116 = vmatpush2.msra.mxu0 0.0
  %117 = vmatprep.subr.mxu0 0.0
  %118 = vmatpush2.msra.mxu0 0.0
  %119 = vmatprep.subr.mxu0 0.0
  %120 = vmatpush2.msra.mxu0 0.0
  %121 = vmatprep.subr.mxu0 0.0
  %122 = vmatpush2.msra.mxu0 0.0
  %123 = vmatprep.subr.mxu0 0.0
  %124 = vmatpush2.msra.mxu0 0.0
  %125 = vmatprep.subr.mxu0 0.0
  %126 = vmatpush2.msra.mxu0 0.0
  %127 = vmatprep.subr.mxu0 0.0
  %128 = vmatpush2.msra.mxu0 0.0
  %129 = vmatprep.subr.mxu0 0.0
  %130 = vmatpush2.msra.mxu0 0.0
  %131 = vmatprep.subr.mxu0 0.0
  %132 = vmatpush2.msra.mxu0 0.0
  %133 = vmatprep.subr.mxu0 0.0
  %134 = vmatpush2.msra.mxu0 0.0
  %135 = vmatprep.subr.mxu0 0.0
  %136 = vmatpush2.msra.mxu0 0.0
  %137 = vmatprep.subr.mxu0 0.0
  %138 = vmatpush2.msra.mxu0 %v39
  %139 = vmatprep.subr.mxu0 0.0
  %140 = vmatpush2.msra.mxu0 %v38
  %141 = vmatprep.mubr.f32.mxu0 %v66
  %142 = vmatmul.mubr.f32.gmra.mxu0 %v14
  %v143 = vpop.f32.mrf.mxu0
  %v144 = vadd.f32 %v47, %v143
  %v145 = vpop.f32.mrf.mxu0
  %146 = vmatprep.mubr.f32.mxu0 %v69
  %147 = vmatmul.mubr.f32.gmra.mxu0 %v16
  %v148 = vpop.f32.mrf.mxu0
  %v149 = vadd.f32 %v52, %v148
  %v150 = vpop.f32.mrf.mxu0
  %151 = vmatprep.mubr.f32.mxu0 %v72
  %152 = vmatmul.mubr.f32.gmra.mxu0 %v18
  %v153 = vpop.f32.mrf.mxu0
  %v154 = vadd.f32 %v57, %v153
  %v155 = vpop.f32.mrf.mxu0
  %156 = vmatprep.mubr.f32.mxu0 %v75
  %157 = vmatmul.mubr.f32.gmra.mxu0 %v20
  %v158 = vpop.f32.mrf.mxu0
  %v159 = vadd.f32 %v62, %v158
  %v160 = vpop.f32.mrf.mxu0
  %161 = vdwg.mxu0
  %v162 = vmax.f32 %v144, 0.0
  %v163 = vmax.f32 %v149, 0.0
  %v164 = vmax.f32 %v154, 0.0
  %v165 = vmax.f32 %v159, 0.0
  %vm166 = vcmask 146432
  %167 = vst.msk [vmem:[%s3] sm:$0xff] %vm166, %v162
  %168 = vst.msk [vmem:[%s3 + $0x8] sm:$0xff] %vm166, %v163
  %169 = vst.msk [vmem:[%s3 + $0x10] sm:$0xff] %vm166, %v164
  %170 = vst.msk [vmem:[%s3 + $0x18] sm:$0xff] %vm166, %v165
  // Predicated region
  $region14: #{autoencoder_forward.10} parent=0 // pred_check
    _
  $region15: #{autoencoder_forward.10} parent=0 // pred_check_branch
    %172 = sbr.rel (0) target = $region17
  $region16: #{autoencoder_forward.10} parent=0 // pred_region
    _
  $region17: #{autoencoder_forward.10} parent=0 // pred_fallthru
    _
  // Predicated region
  $region18: #{autoencoder_forward.10} parent=0 // pred_check
    _
  $region19: #{autoencoder_forward.10} parent=0 // pred_check_branch
    %174 = sbr.rel (0) target = $region21
  $region20: #{autoencoder_forward.10} parent=0 // pred_region
    _
  $region21: #{autoencoder_forward.10} parent=0 // pred_fallthru
    _

// kernel: autoencoder_forward.11
$region0: #{autoencoder_forward.11}
  #allocation0 [shape = 'u32[]', space=smem, size = 0x4, offset = 0x4, fixed_abs, tag = 'smem constant byte address 0x4 - core index']
  #allocation1 [shape = 'u32[144,128]{1,0:T(1,128)}', space=vmem, size = 0x12000, scoped, tag = 'internal scratch']
  %s0 = inlined_call_operand.vmem [shape: f32[288,2], index: 0, kind: input, shape index: {}]
  %s1 = inlined_call_operand.vmem [shape: f32[128,288], index: 1, kind: input, shape index: {}]
  %s2 = inlined_call_operand.vmem [shape: f32[128,1], index: 2, kind: input, shape index: {}]
  %s3 = inlined_call_operand.vmem [shape: f32[16,128], index: 3, kind: input, shape index: {}]
  %s4 = inlined_call_operand.vmem [shape: f32[16,1], index: 4, kind: input, shape index: {}]
  %s5 = inlined_call_operand.vmem [shape: f32[16,2], index: 5, kind: output, shape index: {}]
  %s6 = sld [smem:[#allocation0]]
  $region30: #{autoencoder_forward.11} parent=0
    _
  %s8 = ssub.s32 1, %s6
  %s9 = scalar_select 0, %s8, %s6
  // Predicated region
  $region2: #{autoencoder_forward.11} parent=0 // pred_check
    _
  $region3: #{autoencoder_forward.11} parent=0 // pred_check_branch
    %11 = sbr.rel (0) target = $region5
  $region4: #{autoencoder_forward.11} parent=0 // pred_region
    _
  $region5: #{autoencoder_forward.11} parent=0 // pred_fallthru
    _
  // Predicated region
  $region6: #{autoencoder_forward.11} parent=0 // pred_check
    _
  $region7: #{autoencoder_forward.11} parent=0 // pred_check_branch
    %13 = sbr.rel (0) target = $region9
  $region8: #{autoencoder_forward.11} parent=0 // pred_region
    _
  $region9: #{autoencoder_forward.11} parent=0 // pred_fallthru
    _
  // Predicated region
  $region10: #{autoencoder_forward.11} parent=0 // pred_check
    _
  $region11: #{autoencoder_forward.11} parent=0 // pred_check_branch
    %15 = sbr.rel (0) target = $region13
  $region12: #{autoencoder_forward.11} parent=0 // pred_region
    _
  $region13: #{autoencoder_forward.11} parent=0 // pred_fallthru
    _
  // Predicated region
  $region14: #{autoencoder_forward.11} parent=0 // pred_check
    _
  $region15: #{autoencoder_forward.11} parent=0 // pred_check_branch
    %17 = sbr.rel (0) target = $region17
  $region16: #{autoencoder_forward.11} parent=0 // pred_region
    _
  $region17: #{autoencoder_forward.11} parent=0 // pred_fallthru
    _
  // Predicated region
  $region18: #{autoencoder_forward.11} parent=0 // pred_check
    _
  $region19: #{autoencoder_forward.11} parent=0 // pred_check_branch
    %19 = sbr.rel (0) target = $region21
  $region20: #{autoencoder_forward.11} parent=0 // pred_region
    _
  $region21: #{autoencoder_forward.11} parent=0 // pred_fallthru
    _
  %v20 = vld [vmem:[%s1] sm:$0xff]
  %v21 = vld [vmem:[%s1 + $0x8] sm:$0xff]
  %v22 = vld [vmem:[%s1 + $0x10] sm:$0xff]
  %v23 = vld [vmem:[%s1 + $0x18] sm:$0xff]
  %v24 = vld [vmem:[%s1 + $0x20] sm:$0xff]
  %v25 = vld [vmem:[%s1 + $0x28] sm:$0xff]
  %v26 = vld [vmem:[%s1 + $0x30] sm:$0xff]
  %v27 = vld [vmem:[%s1 + $0x38] sm:$0xff]
  %v28 = vld [vmem:[%s1 + $0x40] sm:$0xff]
  %v29 = vld [vmem:[%s1 + $0x48] sm:$0xff]
  %v30 = vld [vmem:[%s1 + $0x50] sm:$0xff]
  %v31 = vld [vmem:[%s1 + $0x58] sm:$0xff]
  %v32 = vld [vmem:[%s1 + $0x60] sm:$0xff]
  %v33 = vld [vmem:[%s1 + $0x68] sm:$0xff]
  %v34 = vld [vmem:[%s1 + $0x70] sm:$0xff]
  %v35 = vld [vmem:[%s1 + $0x78] sm:$0xff]
  %v36 = vld [vmem:[%s1 + $0x80] sm:$0xff]
  %v37 = vld [vmem:[%s1 + $0x88] sm:$0xff]
  %v38 = vld [vmem:[%s1 + $0x90] sm:$0xff]
  %v39 = vld [vmem:[%s1 + $0x98] sm:$0xff]
  %v40 = vld [vmem:[%s1 + $0xa0] sm:$0xff]
  %v41 = vld [vmem:[%s1 + $0xa8] sm:$0xff]
  %v42 = vld [vmem:[%s1 + $0xb0] sm:$0xff]
  %v43 = vld [vmem:[%s1 + $0xb8] sm:$0xff]
  %v44 = vld [vmem:[%s1 + $0xc0] sm:$0xff]
  %v45 = vld [vmem:[%s1 + $0xc8] sm:$0xff]
  %v46 = vld [vmem:[%s1 + $0xd0] sm:$0xff]
  %v47 = vld [vmem:[%s1 + $0xd8] sm:$0xff]
  %v48 = vld [vmem:[%s1 + $0xe0] sm:$0xff]
  %v49 = vld [vmem:[%s1 + $0xe8] sm:$0xff]
  %v50 = vld [vmem:[%s1 + $0xf0] sm:$0xff]
  %v51 = vld [vmem:[%s1 + $0xf8] sm:$0xff]
  %v52 = vld [vmem:[%s1 + $0x100] sm:$0xff]
  %v53 = vld [vmem:[%s1 + $0x108] sm:$0xff]
  %v54 = vld [vmem:[%s1 + $0x110] sm:$0xff]
  %v55 = vld [vmem:[%s1 + $0x118] sm:$0xff]
  %v56 = vld [vmem:[%s1 + $0x120] sm:$0xff]
  %v57 = vld [vmem:[%s1 + $0x128] sm:$0xff]
  %v58 = vld [vmem:[%s1 + $0x130] sm:$0xff]
  %v59 = vld [vmem:[%s1 + $0x138] sm:$0xff]
  %v60 = vld [vmem:[%s1 + $0x140] sm:$0xff]
  %v61 = vld [vmem:[%s1 + $0x148] sm:$0xff]
  %v62 = vld [vmem:[%s1 + $0x150] sm:$0xff]
  %v63 = vld [vmem:[%s1 + $0x158] sm:$0xff]
  %v64 = vld [vmem:[%s1 + $0x160] sm:$0xff]
  %v65 = vld [vmem:[%s1 + $0x168] sm:$0xff]
  %v66 = vld [vmem:[%s1 + $0x170] sm:$0xff]
  %v67 = vld [vmem:[%s1 + $0x178] sm:$0xff]
  %v68 = vld [vmem:[%s0] sm:$0xff]
  %v69 = vld [vmem:[%s0 + $0x8] sm:$0xff]
  %v70 = vld [vmem:[%s0 + $0x10] sm:$0xff]
  %v71 = vld [vmem:[%s0 + $0x18] sm:$0xff]
  %v72 = vld [vmem:[%s0 + $0x20] sm:$0xff]
  %v73 = vld [vmem:[%s0 + $0x28] sm:$0xff]
  %v74 = vld [vmem:[%s0 + $0x30] sm:$0xff]
  %v75 = vld [vmem:[%s0 + $0x38] sm:$0xff]
  %v76 = vld [vmem:[%s0 + $0x40] sm:$0xff]
  %v77 = vld [vmem:[%s0 + $0x48] sm:$0xff]
  %v78 = vld [vmem:[%s0 + $0x50] sm:$0xff]
  %v79 = vld [vmem:[%s0 + $0x58] sm:$0xff]
  %v80 = vld [vmem:[%s0 + $0x60] sm:$0xff]
  %v81 = vld [vmem:[%s0 + $0x68] sm:$0xff]
  %v82 = vld [vmem:[%s0 + $0x70] sm:$0xff]
  %v83 = vld [vmem:[%s0 + $0x78] sm:$0xff]
  %v84 = vld [vmem:[%s0 + $0x80] sm:$0xff]
  %v85 = vld [vmem:[%s0 + $0x88] sm:$0xff]
  %v86 = vld [vmem:[%s0 + $0x90] sm:$0xff]
  %v87 = vld [vmem:[%s0 + $0x98] sm:$0xff]
  %v88 = vld [vmem:[%s0 + $0xa0] sm:$0xff]
  %v89 = vld [vmem:[%s0 + $0xa8] sm:$0xff]
  %v90 = vld [vmem:[%s0 + $0xb0] sm:$0xff]
  %v91 = vld [vmem:[%s0 + $0xb8] sm:$0xff]
  %v92 = vld [vmem:[%s0 + $0xc0] sm:$0xff]
  %v93 = vld [vmem:[%s0 + $0xc8] sm:$0xff]
  %v94 = vld [vmem:[%s0 + $0xd0] sm:$0xff]
  %v95 = vld [vmem:[%s0 + $0xd8] sm:$0xff]
  %v96 = vld [vmem:[%s0 + $0xe0] sm:$0xff]
  %v97 = vld [vmem:[%s0 + $0xe8] sm:$0xff]
  %v98 = vld [vmem:[%s0 + $0xf0] sm:$0xff]
  %v99 = vld [vmem:[%s0 + $0xf8] sm:$0xff]
  %v100 = vld [vmem:[%s0 + $0x100] sm:$0xff]
  %v101 = vld [vmem:[%s0 + $0x108] sm:$0xff]
  %v102 = vld [vmem:[%s0 + $0x110] sm:$0xff]
  %v103 = vld [vmem:[%s0 + $0x118] sm:$0xff]
  %v104 = vld [vmem:[%s2] sm:$0xff]
  %v105 = vld [vmem:[%s2 + $0x8] sm:$0xff]
  %v106 = vld [vmem:[%s2 + $0x10] sm:$0xff]
  %v107 = vld [vmem:[%s2 + $0x18] sm:$0xff]
  %v108 = vld [vmem:[%s2 + $0x20] sm:$0xff]
  %v109 = vld [vmem:[%s2 + $0x28] sm:$0xff]
  %v110 = vld [vmem:[%s2 + $0x30] sm:$0xff]
  %v111 = vld [vmem:[%s2 + $0x38] sm:$0xff]
  %v112 = vld [vmem:[%s2 + $0x40] sm:$0xff]
  %v113 = vld [vmem:[%s2 + $0x48] sm:$0xff]
  %v114 = vld [vmem:[%s2 + $0x50] sm:$0xff]
  %v115 = vld [vmem:[%s2 + $0x58] sm:$0xff]
  %v116 = vld [vmem:[%s2 + $0x60] sm:$0xff]
  %v117 = vld [vmem:[%s2 + $0x68] sm:$0xff]
  %v118 = vld [vmem:[%s2 + $0x70] sm:$0xff]
  %v119 = vld [vmem:[%s2 + $0x78] sm:$0xff]
  %121 = vset.pattern.permute.xlu0 0
  %122 = vperm.xlu0 %121, %v104
  %v123 = vpop.permute.xlu0 %122
  %126 = vset.pattern.permute.xlu0 0
  %127 = vperm.xlu0 %126, %v105
  %v128 = vpop.permute.xlu0 %127
  %131 = vset.pattern.permute.xlu0 0
  %132 = vperm.xlu0 %131, %v106
  %v133 = vpop.permute.xlu0 %132
  %136 = vset.pattern.permute.xlu0 0
  %137 = vperm.xlu0 %136, %v107
  %v138 = vpop.permute.xlu0 %137
  %141 = vset.pattern.permute.xlu0 0
  %142 = vperm.xlu0 %141, %v108
  %v143 = vpop.permute.xlu0 %142
  %146 = vset.pattern.permute.xlu0 0
  %147 = vperm.xlu0 %146, %v109
  %v148 = vpop.permute.xlu0 %147
  %151 = vset.pattern.permute.xlu0 0
  %152 = vperm.xlu0 %151, %v110
  %v153 = vpop.permute.xlu0 %152
  %156 = vset.pattern.permute.xlu0 0
  %157 = vperm.xlu0 %156, %v111
  %v158 = vpop.permute.xlu0 %157
  %161 = vset.pattern.permute.xlu0 0
  %162 = vperm.xlu0 %161, %v112
  %v163 = vpop.permute.xlu0 %162
  %166 = vset.pattern.permute.xlu0 0
  %167 = vperm.xlu0 %166, %v113
  %v168 = vpop.permute.xlu0 %167
  %171 = vset.pattern.permute.xlu0 0
  %172 = vperm.xlu0 %171, %v114
  %v173 = vpop.permute.xlu0 %172
  %176 = vset.pattern.permute.xlu0 0
  %177 = vperm.xlu0 %176, %v115
  %v178 = vpop.permute.xlu0 %177
  %181 = vset.pattern.permute.xlu0 0
  %182 = vperm.xlu0 %181, %v116
  %v183 = vpop.permute.xlu0 %182
  %186 = vset.pattern.permute.xlu0 0
  %187 = vperm.xlu0 %186, %v117
  %v188 = vpop.permute.xlu0 %187
  %191 = vset.pattern.permute.xlu0 0
  %192 = vperm.xlu0 %191, %v118
  %v193 = vpop.permute.xlu0 %192
  %196 = vset.pattern.permute.xlu0 0
  %197 = vperm.xlu0 %196, %v119
  %v198 = vpop.permute.xlu0 %197
  %vm200 = vcmask 261120
  %v202 = vsel %vm200, %v22, 0
  %v205 = vsel %vm200, %v25, 0
  %v208 = vsel %vm200, %v28, 0
  %v211 = vsel %vm200, %v31, 0
  %v214 = vsel %vm200, %v34, 0
  %v217 = vsel %vm200, %v37, 0
  %v220 = vsel %vm200, %v40, 0
  %v223 = vsel %vm200, %v43, 0
  %v226 = vsel %vm200, %v46, 0
  %v229 = vsel %vm200, %v49, 0
  %v232 = vsel %vm200, %v52, 0
  %v235 = vsel %vm200, %v55, 0
  %v238 = vsel %vm200, %v58, 0
  %v241 = vsel %vm200, %v61, 0
  %v244 = vsel %vm200, %v64, 0
  %v247 = vsel %vm200, %v67, 0
  %249 = vmatprep.subr.mxu0 0.0
  %250 = vmatpush1.msra.mxu0 %v83
  %251 = vmatprep.subr.mxu0 0.0
  %252 = vmatpush1.msra.mxu0 %v82
  %253 = vmatprep.subr.mxu0 0.0
  %254 = vmatpush1.msra.mxu0 %v81
  %255 = vmatprep.subr.mxu0 0.0
  %256 = vmatpush1.msra.mxu0 %v80
  %257 = vmatprep.subr.mxu0 0.0
  %258 = vmatpush1.msra.mxu0 %v79
  %259 = vmatprep.subr.mxu0 0.0
  %260 = vmatpush1.msra.mxu0 %v78
  %261 = vmatprep.subr.mxu0 0.0
  %262 = vmatpush1.msra.mxu0 %v77
  %263 = vmatprep.subr.mxu0 0.0
  %264 = vmatpush1.msra.mxu0 %v76
  %265 = vmatprep.subr.mxu0 0.0
  %266 = vmatpush1.msra.mxu0 %v75
  %267 = vmatprep.subr.mxu0 0.0
  %268 = vmatpush1.msra.mxu0 %v74
  %269 = vmatprep.subr.mxu0 0.0
  %270 = vmatpush1.msra.mxu0 %v73
  %271 = vmatprep.subr.mxu0 0.0
  %272 = vmatpush1.msra.mxu0 %v72
  %273 = vmatprep.subr.mxu0 0.0
  %274 = vmatpush1.msra.mxu0 %v71
  %275 = vmatprep.subr.mxu0 0.0
  %276 = vmatpush1.msra.mxu0 %v70
  %277 = vmatprep.subr.mxu0 0.0
  %278 = vmatpush1.msra.mxu0 %v69
  %279 = vmatprep.subr.mxu0 0.0
  %280 = vmatpush1.msra.mxu0 %v68
  %281 = vmatprep.subr.mxu0 0.0
  %282 = vmatpush2.msra.mxu0 %v99
  %283 = vmatprep.subr.mxu0 0.0
  %284 = vmatpush2.msra.mxu0 %v98
  %285 = vmatprep.subr.mxu0 0.0
  %286 = vmatpush2.msra.mxu0 %v97
  %287 = vmatprep.subr.mxu0 0.0
  %288 = vmatpush2.msra.mxu0 %v96
  %289 = vmatprep.subr.mxu0 0.0
  %290 = vmatpush2.msra.mxu0 %v95
  %291 = vmatprep.subr.mxu0 0.0
  %292 = vmatpush2.msra.mxu0 %v94
  %293 = vmatprep.subr.mxu0 0.0
  %294 = vmatpush2.msra.mxu0 %v93
  %295 = vmatprep.subr.mxu0 0.0
  %296 = vmatpush2.msra.mxu0 %v92
  %297 = vmatprep.subr.mxu0 0.0
  %298 = vmatpush2.msra.mxu0 %v91
  %299 = vmatprep.subr.mxu0 0.0
  %300 = vmatpush2.msra.mxu0 %v90
  %301 = vmatprep.subr.mxu0 0.0
  %302 = vmatpush2.msra.mxu0 %v89
  %303 = vmatprep.subr.mxu0 0.0
  %304 = vmatpush2.msra.mxu0 %v88
  %305 = vmatprep.subr.mxu0 0.0
  %306 = vmatpush2.msra.mxu0 %v87
  %307 = vmatprep.subr.mxu0 0.0
  %308 = vmatpush2.msra.mxu0 %v86
  %309 = vmatprep.subr.mxu0 0.0
  %310 = vmatpush2.msra.mxu0 %v85
  %311 = vmatprep.subr.mxu0 0.0
  %312 = vmatpush2.msra.mxu0 %v84
  %313 = vmatprep.mubr.f32.mxu0 %v21
  %314 = vmatmul.mubr.f32.gmra.mxu0 %v20
  %v315 = vpop.f32.mrf.mxu0
  %v316 = vadd.f32 %v123, %v315
  %v317 = vpop.f32.mrf.mxu0
  %318 = vmatprep.mubr.f32.mxu0 %v24
  %319 = vmatmul.mubr.f32.gmra.mxu0 %v23
  %v320 = vpop.f32.mrf.mxu0
  %v321 = vadd.f32 %v128, %v320
  %v322 = vpop.f32.mrf.mxu0
  %323 = vmatprep.mubr.f32.mxu0 %v27
  %324 = vmatmul.mubr.f32.gmra.mxu0 %v26
  %v325 = vpop.f32.mrf.mxu0
  %v326 = vadd.f32 %v133, %v325
  %v327 = vpop.f32.mrf.mxu0
  %328 = vmatprep.mubr.f32.mxu0 %v30
  %329 = vmatmul.mubr.f32.gmra.mxu0 %v29
  %v330 = vpop.f32.mrf.mxu0
  %v331 = vadd.f32 %v138, %v330
  %v332 = vpop.f32.mrf.mxu0
  %333 = vmatprep.mubr.f32.mxu0 %v33
  %334 = vmatmul.mubr.f32.gmra.mxu0 %v32
  %v335 = vpop.f32.mrf.mxu0
  %v336 = vadd.f32 %v143, %v335
  %v337 = vpop.f32.mrf.mxu0
  %338 = vmatprep.mubr.f32.mxu0 %v36
  %339 = vmatmul.mubr.f32.gmra.mxu0 %v35
  %v340 = vpop.f32.mrf.mxu0
  %v341 = vadd.f32 %v148, %v340
  %v342 = vpop.f32.mrf.mxu0
  %343 = vmatprep.mubr.f32.mxu0 %v39
  %344 = vmatmul.mubr.f32.gmra.mxu0 %v38
  %v345 = vpop.f32.mrf.mxu0
  %v346 = vadd.f32 %v153, %v345
  %v347 = vpop.f32.mrf.mxu0
  %348 = vmatprep.mubr.f32.mxu0 %v42
  %349 = vmatmul.mubr.f32.gmra.mxu0 %v41
  %v350 = vpop.f32.mrf.mxu0
  %v351 = vadd.f32 %v158, %v350
  %v352 = vpop.f32.mrf.mxu0
  %353 = vmatprep.mubr.f32.mxu0 %v45
  %354 = vmatmul.mubr.f32.gmra.mxu0 %v44
  %v355 = vpop.f32.mrf.mxu0
  %v356 = vadd.f32 %v163, %v355
  %v357 = vpop.f32.mrf.mxu0
  %358 = vmatprep.mubr.f32.mxu0 %v48
  %359 = vmatmul.mubr.f32.gmra.mxu0 %v47
  %v360 = vpop.f32.mrf.mxu0
  %v361 = vadd.f32 %v168, %v360
  %v362 = vpop.f32.mrf.mxu0
  %363 = vmatprep.mubr.f32.mxu0 %v51
  %364 = vmatmul.mubr.f32.gmra.mxu0 %v50
  %v365 = vpop.f32.mrf.mxu0
  %v366 = vadd.f32 %v173, %v365
  %v367 = vpop.f32.mrf.mxu0
  %368 = vmatprep.mubr.f32.mxu0 %v54
  %369 = vmatmul.mubr.f32.gmra.mxu0 %v53
  %v370 = vpop.f32.mrf.mxu0
  %v371 = vadd.f32 %v178, %v370
  %v372 = vpop.f32.mrf.mxu0
  %373 = vmatprep.mubr.f32.mxu0 %v57
  %374 = vmatmul.mubr.f32.gmra.mxu0 %v56
  %v375 = vpop.f32.mrf.mxu0
  %v376 = vadd.f32 %v183, %v375
  %v377 = vpop.f32.mrf.mxu0
  %378 = vmatprep.mubr.f32.mxu0 %v60
  %379 = vmatmul.mubr.f32.gmra.mxu0 %v59
  %v380 = vpop.f32.mrf.mxu0
  %v381 = vadd.f32 %v188, %v380
  %v382 = vpop.f32.mrf.mxu0
  %383 = vmatprep.mubr.f32.mxu0 %v63
  %384 = vmatmul.mubr.f32.gmra.mxu0 %v62
  %v385 = vpop.f32.mrf.mxu0
  %v386 = vadd.f32 %v193, %v385
  %v387 = vpop.f32.mrf.mxu0
  %388 = vmatprep.mubr.f32.mxu0 %v66
  %389 = vmatmul.mubr.f32.gmra.mxu0 %v65
  %v390 = vpop.f32.mrf.mxu0
  %v391 = vadd.f32 %v198, %v390
  %v392 = vpop.f32.mrf.mxu0
  %393 = vdwg.mxu0
  %394 = vmatprep.subr.mxu0 0.0
  %395 = vmatpush1.msra.mxu0 0.0
  %396 = vmatprep.subr.mxu0 0.0
  %397 = vmatpush1.msra.mxu0 0.0
  %398 = vmatprep.subr.mxu0 0.0
  %399 = vmatpush1.msra.mxu0 0.0
  %400 = vmatprep.subr.mxu0 0.0
  %401 = vmatpush1.msra.mxu0 0.0
  %402 = vmatprep.subr.mxu0 0.0
  %403 = vmatpush1.msra.mxu0 0.0
  %404 = vmatprep.subr.mxu0 0.0
  %405 = vmatpush1.msra.mxu0 0.0
  %406 = vmatprep.subr.mxu0 0.0
  %407 = vmatpush1.msra.mxu0 0.0
  %408 = vmatprep.subr.mxu0 0.0
  %409 = vmatpush1.msra.mxu0 0.0
  %410 = vmatprep.subr.mxu0 0.0
  %411 = vmatpush1.msra.mxu0 0.0
  %412 = vmatprep.subr.mxu0 0.0
  %413 = vmatpush1.msra.mxu0 0.0
  %414 = vmatprep.subr.mxu0 0.0
  %415 = vmatpush1.msra.mxu0 0.0
  %416 = vmatprep.subr.mxu0 0.0
  %417 = vmatpush1.msra.mxu0 0.0
  %418 = vmatprep.subr.mxu0 0.0
  %419 = vmatpush1.msra.mxu0 %v103
  %420 = vmatprep.subr.mxu0 0.0
  %421 = vmatpush1.msra.mxu0 %v102
  %422 = vmatprep.subr.mxu0 0.0
  %423 = vmatpush1.msra.mxu0 %v101
  %424 = vmatprep.subr.mxu0 0.0
  %425 = vmatpush1.msra.mxu0 %v100
  %426 = vmatprep.subr.mxu0 0.0
  %427 = vmatpush2.msra.mxu0 0.0
  %428 = vmatprep.subr.mxu0 0.0
  %429 = vmatpush2.msra.mxu0 0.0
  %430 = vmatprep.subr.mxu0 0.0
  %431 = vmatpush2.msra.mxu0 0.0
  %432 = vmatprep.subr.mxu0 0.0
  %433 = vmatpush2.msra.mxu0 0.0
  %434 = vmatprep.subr.mxu0 0.0
  %435 = vmatpush2.msra.mxu0 0.0
  %436 = vmatprep.subr.mxu0 0.0
  %437 = vmatpush2.msra.mxu0 0.0
  %438 = vmatprep.subr.mxu0 0.0
  %439 = vmatpush2.msra.mxu0 0.0
  %440 = vmatprep.subr.mxu0 0.0
  %441 = vmatpush2.msra.mxu0 0.0
  %442 = vmatprep.subr.mxu0 0.0
  %443 = vmatpush2.msra.mxu0 0.0
  %444 = vmatprep.subr.mxu0 0.0
  %445 = vmatpush2.msra.mxu0 0.0
  %446 = vmatprep.subr.mxu0 0.0
  %447 = vmatpush2.msra.mxu0 0.0
  %448 = vmatprep.subr.mxu0 0.0
  %449 = vmatpush2.msra.mxu0 0.0
  %450 = vmatprep.subr.mxu0 0.0
  %451 = vmatpush2.msra.mxu0 0.0
  %452 = vmatprep.subr.mxu0 0.0
  %453 = vmatpush2.msra.mxu0 0.0
  %454 = vmatprep.subr.mxu0 0.0
  %455 = vmatpush2.msra.mxu0 0.0
  %456 = vmatprep.subr.mxu0 0.0
  %457 = vmatpush2.msra.mxu0 0.0
  %458 = vmatprep.mubr.f32.mxu0 0.0
  %459 = vmatmul.mubr.f32.gmra.mxu0 %v202
  %v460 = vpop.f32.mrf.mxu0
  %v461 = vadd.f32 %v316, %v460
  %v462 = vpop.f32.mrf.mxu0
  %463 = vmatprep.mubr.f32.mxu0 0.0
  %464 = vmatmul.mubr.f32.gmra.mxu0 %v205
  %v465 = vpop.f32.mrf.mxu0
  %v466 = vadd.f32 %v321, %v465
  %v467 = vpop.f32.mrf.mxu0
  %468 = vmatprep.mubr.f32.mxu0 0.0
  %469 = vmatmul.mubr.f32.gmra.mxu0 %v208
  %v470 = vpop.f32.mrf.mxu0
  %v471 = vadd.f32 %v326, %v470
  %v472 = vpop.f32.mrf.mxu0
  %473 = vmatprep.mubr.f32.mxu0 0.0
  %474 = vmatmul.mubr.f32.gmra.mxu0 %v211
  %v475 = vpop.f32.mrf.mxu0
  %v476 = vadd.f32 %v331, %v475
  %v477 = vpop.f32.mrf.mxu0
  %478 = vmatprep.mubr.f32.mxu0 0.0
  %479 = vmatmul.mubr.f32.gmra.mxu0 %v214
  %v480 = vpop.f32.mrf.mxu0
  %v481 = vadd.f32 %v336, %v480
  %v482 = vpop.f32.mrf.mxu0
  %483 = vmatprep.mubr.f32.mxu0 0.0
  %484 = vmatmul.mubr.f32.gmra.mxu0 %v217
  %v485 = vpop.f32.mrf.mxu0
  %v486 = vadd.f32 %v341, %v485
  %v487 = vpop.f32.mrf.mxu0
  %488 = vmatprep.mubr.f32.mxu0 0.0
  %489 = vmatmul.mubr.f32.gmra.mxu0 %v220
  %v490 = vpop.f32.mrf.mxu0
  %v491 = vadd.f32 %v346, %v490
  %v492 = vpop.f32.mrf.mxu0
  %493 = vmatprep.mubr.f32.mxu0 0.0
  %494 = vmatmul.mubr.f32.gmra.mxu0 %v223
  %v495 = vpop.f32.mrf.mxu0
  %v496 = vadd.f32 %v351, %v495
  %v497 = vpop.f32.mrf.mxu0
  %498 = vmatprep.mubr.f32.mxu0 0.0
  %499 = vmatmul.mubr.f32.gmra.mxu0 %v226
  %v500 = vpop.f32.mrf.mxu0
  %v501 = vadd.f32 %v356, %v500
  %v502 = vpop.f32.mrf.mxu0
  %503 = vmatprep.mubr.f32.mxu0 0.0
  %504 = vmatmul.mubr.f32.gmra.mxu0 %v229
  %v505 = vpop.f32.mrf.mxu0
  %v506 = vadd.f32 %v361, %v505
  %v507 = vpop.f32.mrf.mxu0
  %508 = vmatprep.mubr.f32.mxu0 0.0
  %509 = vmatmul.mubr.f32.gmra.mxu0 %v232
  %v510 = vpop.f32.mrf.mxu0
  %v511 = vadd.f32 %v366, %v510
  %v512 = vpop.f32.mrf.mxu0
  %513 = vmatprep.mubr.f32.mxu0 0.0
  %514 = vmatmul.mubr.f32.gmra.mxu0 %v235
  %v515 = vpop.f32.mrf.mxu0
  %v516 = vadd.f32 %v371, %v515
  %v517 = vpop.f32.mrf.mxu0
  %518 = vmatprep.mubr.f32.mxu0 0.0
  %519 = vmatmul.mubr.f32.gmra.mxu0 %v238
  %v520 = vpop.f32.mrf.mxu0
  %v521 = vadd.f32 %v376, %v520
  %v522 = vpop.f32.mrf.mxu0
  %523 = vmatprep.mubr.f32.mxu0 0.0
  %524 = vmatmul.mubr.f32.gmra.mxu0 %v241
  %v525 = vpop.f32.mrf.mxu0
  %v526 = vadd.f32 %v381, %v525
  %v527 = vpop.f32.mrf.mxu0
  %528 = vmatprep.mubr.f32.mxu0 0.0
  %529 = vmatmul.mubr.f32.gmra.mxu0 %v244
  %v530 = vpop.f32.mrf.mxu0
  %v531 = vadd.f32 %v386, %v530
  %v532 = vpop.f32.mrf.mxu0
  %533 = vmatprep.mubr.f32.mxu0 0.0
  %534 = vmatmul.mubr.f32.gmra.mxu0 %v247
  %v535 = vpop.f32.mrf.mxu0
  %v536 = vadd.f32 %v391, %v535
  %v537 = vpop.f32.mrf.mxu0
  %538 = vdwg.mxu0
  %v539 = vmax.f32 %v461, 0.0
  %v540 = vmax.f32 %v466, 0.0
  %v541 = vmax.f32 %v471, 0.0
  %v542 = vmax.f32 %v476, 0.0
  %v543 = vmax.f32 %v481, 0.0
  %v544 = vmax.f32 %v486, 0.0
  %v545 = vmax.f32 %v491, 0.0
  %v546 = vmax.f32 %v496, 0.0
  %v547 = vmax.f32 %v501, 0.0
  %v548 = vmax.f32 %v506, 0.0
  %v549 = vmax.f32 %v511, 0.0
  %v550 = vmax.f32 %v516, 0.0
  %v551 = vmax.f32 %v521, 0.0
  %v552 = vmax.f32 %v526, 0.0
  %v553 = vmax.f32 %v531, 0.0
  %v554 = vmax.f32 %v536, 0.0
  %v555 = vld [vmem:[%s3] sm:$0xff]
  %v556 = vld [vmem:[%s3 + $0x8] sm:$0xff]
  %v557 = vld [vmem:[%s4] sm:$0xff]
  %v558 = vld [vmem:[%s4 + $0x8] sm:$0xff]
  %560 = vset.pattern.permute.xlu0 0
  %561 = vperm.xlu0 %560, %v557
  %v562 = vpop.permute.xlu0 %561
  %565 = vset.pattern.permute.xlu0 0
  %566 = vperm.xlu0 %565, %v558
  %v567 = vpop.permute.xlu0 %566
  %569 = vmatprep.subr.mxu0 0.0
  %570 = vmatpush1.msra.mxu0 %v554
  %571 = vmatprep.subr.mxu0 0.0
  %572 = vmatpush1.msra.mxu0 %v553
  %573 = vmatprep.subr.mxu0 0.0
  %574 = vmatpush1.msra.mxu0 %v552
  %575 = vmatprep.subr.mxu0 0.0
  %576 = vmatpush1.msra.mxu0 %v551
  %577 = vmatprep.subr.mxu0 0.0
  %578 = vmatpush1.msra.mxu0 %v550
  %579 = vmatprep.subr.mxu0 0.0
  %580 = vmatpush1.msra.mxu0 %v549
  %581 = vmatprep.subr.mxu0 0.0
  %582 = vmatpush1.msra.mxu0 %v548
  %583 = vmatprep.subr.mxu0 0.0
  %584 = vmatpush1.msra.mxu0 %v547
  %585 = vmatprep.subr.mxu0 0.0
  %586 = vmatpush1.msra.mxu0 %v546
  %587 = vmatprep.subr.mxu0 0.0
  %588 = vmatpush1.msra.mxu0 %v545
  %589 = vmatprep.subr.mxu0 0.0
  %590 = vmatpush1.msra.mxu0 %v544
  %591 = vmatprep.subr.mxu0 0.0
  %592 = vmatpush1.msra.mxu0 %v543
  %593 = vmatprep.subr.mxu0 0.0
  %594 = vmatpush1.msra.mxu0 %v542
  %595 = vmatprep.subr.mxu0 0.0
  %596 = vmatpush1.msra.mxu0 %v541
  %597 = vmatprep.subr.mxu0 0.0
  %598 = vmatpush1.msra.mxu0 %v540
  %599 = vmatprep.subr.mxu0 0.0
  %600 = vmatpush1.msra.mxu0 %v539
  %601 = vmatprep.subr.mxu0 0.0
  %602 = vmatpush2.msra.mxu0 0.0
  %603 = vmatprep.subr.mxu0 0.0
  %604 = vmatpush2.msra.mxu0 0.0
  %605 = vmatprep.subr.mxu0 0.0
  %606 = vmatpush2.msra.mxu0 0.0
  %607 = vmatprep.subr.mxu0 0.0
  %608 = vmatpush2.msra.mxu0 0.0
  %609 = vmatprep.subr.mxu0 0.0
  %610 = vmatpush2.msra.mxu0 0.0
  %611 = vmatprep.subr.mxu0 0.0
  %612 = vmatpush2.msra.mxu0 0.0
  %613 = vmatprep.subr.mxu0 0.0
  %614 = vmatpush2.msra.mxu0 0.0
  %615 = vmatprep.subr.mxu0 0.0
  %616 = vmatpush2.msra.mxu0 0.0
  %617 = vmatprep.subr.mxu0 0.0
  %618 = vmatpush2.msra.mxu0 0.0
  %619 = vmatprep.subr.mxu0 0.0
  %620 = vmatpush2.msra.mxu0 0.0
  %621 = vmatprep.subr.mxu0 0.0
  %622 = vmatpush2.msra.mxu0 0.0
  %623 = vmatprep.subr.mxu0 0.0
  %624 = vmatpush2.msra.mxu0 0.0
  %625 = vmatprep.subr.mxu0 0.0
  %626 = vmatpush2.msra.mxu0 0.0
  %627 = vmatprep.subr.mxu0 0.0
  %628 = vmatpush2.msra.mxu0 0.0
  %629 = vmatprep.subr.mxu0 0.0
  %630 = vmatpush2.msra.mxu0 0.0
  %631 = vmatprep.subr.mxu0 0.0
  %632 = vmatpush2.msra.mxu0 0.0
  %633 = vmatprep.mubr.f32.mxu0 0.0
  %634 = vmatmul.mubr.f32.gmra.mxu0 %v555
  %v635 = vpop.f32.mrf.mxu0
  %v636 = vadd.f32 %v562, %v635
  %v637 = vpop.f32.mrf.mxu0
  %638 = vmatprep.mubr.f32.mxu0 0.0
  %639 = vmatmul.mubr.f32.gmra.mxu0 %v556
  %v640 = vpop.f32.mrf.mxu0
  %v641 = vadd.f32 %v567, %v640
  %v642 = vpop.f32.mrf.mxu0
  %643 = vdwg.mxu0
  %vm644 = vcmask 15360
  %645 = vst.msk [vmem:[%s5] sm:$0xff] %vm644, %v636
  %646 = vst.msk [vmem:[%s5 + $0x8] sm:$0xff] %vm644, %v641
  // Predicated region
  $region22: #{autoencoder_forward.11} parent=0 // pred_check
    _
  $region23: #{autoencoder_forward.11} parent=0 // pred_check_branch
    %648 = sbr.rel (0) target = $region25
  $region24: #{autoencoder_forward.11} parent=0 // pred_region
    _
  $region25: #{autoencoder_forward.11} parent=0 // pred_fallthru
    _
  // Predicated region
  $region26: #{autoencoder_forward.11} parent=0 // pred_check
    _
  $region27: #{autoencoder_forward.11} parent=0 // pred_check_branch
    %650 = sbr.rel (0) target = $region29
  $region28: #{autoencoder_forward.11} parent=0 // pred_region
    _
  $region29: #{autoencoder_forward.11} parent=0 // pred_fallthru
    _

// kernel: autoencoder_forward.12
$region0: #{autoencoder_forward.12}
  #allocation0 [shape = 'u32[]', space=smem, size = 0x4, offset = 0x4, fixed_abs, tag = 'smem constant byte address 0x4 - core index']
  #allocation1 [shape = 'u32[144,128]{1,0:T(1,128)}', space=vmem, size = 0x12000, scoped, tag = 'internal scratch']
  %s0 = inlined_call_operand.vmem [shape: f32[16,2], index: 0, kind: input, shape index: {}]
  %s1 = inlined_call_operand.vmem [shape: f32[128,16], index: 1, kind: input, shape index: {}]
  %s2 = inlined_call_operand.vmem [shape: f32[128,1], index: 2, kind: input, shape index: {}]
  %s3 = inlined_call_operand.vmem [shape: f32[288,128], index: 3, kind: input, shape index: {}]
  %s4 = inlined_call_operand.vmem [shape: f32[288,1], index: 4, kind: input, shape index: {}]
  %s5 = inlined_call_operand.vmem [shape: f32[288,2], index: 5, kind: output, shape index: {}]
  %s6 = sld [smem:[#allocation0]]
  $region30: #{autoencoder_forward.12} parent=0
    _
  %s8 = ssub.s32 1, %s6
  %s9 = scalar_select 0, %s8, %s6
  // Predicated region
  $region2: #{autoencoder_forward.12} parent=0 // pred_check
    _
  $region3: #{autoencoder_forward.12} parent=0 // pred_check_branch
    %11 = sbr.rel (0) target = $region5
  $region4: #{autoencoder_forward.12} parent=0 // pred_region
    _
  $region5: #{autoencoder_forward.12} parent=0 // pred_fallthru
    _
  // Predicated region
  $region6: #{autoencoder_forward.12} parent=0 // pred_check
    _
  $region7: #{autoencoder_forward.12} parent=0 // pred_check_branch
    %13 = sbr.rel (0) target = $region9
  $region8: #{autoencoder_forward.12} parent=0 // pred_region
    _
  $region9: #{autoencoder_forward.12} parent=0 // pred_fallthru
    _
  // Predicated region
  $region10: #{autoencoder_forward.12} parent=0 // pred_check
    _
  $region11: #{autoencoder_forward.12} parent=0 // pred_check_branch
    %15 = sbr.rel (0) target = $region13
  $region12: #{autoencoder_forward.12} parent=0 // pred_region
    _
  $region13: #{autoencoder_forward.12} parent=0 // pred_fallthru
    _
  // Predicated region
  $region14: #{autoencoder_forward.12} parent=0 // pred_check
    _
  $region15: #{autoencoder_forward.12} parent=0 // pred_check_branch
    %17 = sbr.rel (0) target = $region17
  $region16: #{autoencoder_forward.12} parent=0 // pred_region
    _
  $region17: #{autoencoder_forward.12} parent=0 // pred_fallthru
    _
  // Predicated region
  $region18: #{autoencoder_forward.12} parent=0 // pred_check
    _
  $region19: #{autoencoder_forward.12} parent=0 // pred_check_branch
    %19 = sbr.rel (0) target = $region21
  $region20: #{autoencoder_forward.12} parent=0 // pred_region
    _
  $region21: #{autoencoder_forward.12} parent=0 // pred_fallthru
    _
  %v20 = vld [vmem:[%s1] sm:$0xff]
  %v21 = vld [vmem:[%s1 + $0x8] sm:$0xff]
  %v22 = vld [vmem:[%s1 + $0x10] sm:$0xff]
  %v23 = vld [vmem:[%s1 + $0x18] sm:$0xff]
  %v24 = vld [vmem:[%s1 + $0x20] sm:$0xff]
  %v25 = vld [vmem:[%s1 + $0x28] sm:$0xff]
  %v26 = vld [vmem:[%s1 + $0x30] sm:$0xff]
  %v27 = vld [vmem:[%s1 + $0x38] sm:$0xff]
  %v28 = vld [vmem:[%s1 + $0x40] sm:$0xff]
  %v29 = vld [vmem:[%s1 + $0x48] sm:$0xff]
  %v30 = vld [vmem:[%s1 + $0x50] sm:$0xff]
  %v31 = vld [vmem:[%s1 + $0x58] sm:$0xff]
  %v32 = vld [vmem:[%s1 + $0x60] sm:$0xff]
  %v33 = vld [vmem:[%s1 + $0x68] sm:$0xff]
  %v34 = vld [vmem:[%s1 + $0x70] sm:$0xff]
  %v35 = vld [vmem:[%s1 + $0x78] sm:$0xff]
  %v36 = vld [vmem:[%s0] sm:$0xff]
  %v37 = vld [vmem:[%s0 + $0x8] sm:$0xff]
  %v38 = vld [vmem:[%s2] sm:$0xff]
  %v39 = vld [vmem:[%s2 + $0x8] sm:$0xff]
  %v40 = vld [vmem:[%s2 + $0x10] sm:$0xff]
  %v41 = vld [vmem:[%s2 + $0x18] sm:$0xff]
  %v42 = vld [vmem:[%s2 + $0x20] sm:$0xff]
  %v43 = vld [vmem:[%s2 + $0x28] sm:$0xff]
  %v44 = vld [vmem:[%s2 + $0x30] sm:$0xff]
  %v45 = vld [vmem:[%s2 + $0x38] sm:$0xff]
  %v46 = vld [vmem:[%s2 + $0x40] sm:$0xff]
  %v47 = vld [vmem:[%s2 + $0x48] sm:$0xff]
  %v48 = vld [vmem:[%s2 + $0x50] sm:$0xff]
  %v49 = vld [vmem:[%s2 + $0x58] sm:$0xff]
  %v50 = vld [vmem:[%s2 + $0x60] sm:$0xff]
  %v51 = vld [vmem:[%s2 + $0x68] sm:$0xff]
  %v52 = vld [vmem:[%s2 + $0x70] sm:$0xff]
  %v53 = vld [vmem:[%s2 + $0x78] sm:$0xff]
  %55 = vset.pattern.permute.xlu0 0
  %56 = vperm.xlu0 %55, %v38
  %v57 = vpop.permute.xlu0 %56
  %60 = vset.pattern.permute.xlu0 0
  %61 = vperm.xlu0 %60, %v39
  %v62 = vpop.permute.xlu0 %61
  %65 = vset.pattern.permute.xlu0 0
  %66 = vperm.xlu0 %65, %v40
  %v67 = vpop.permute.xlu0 %66
  %70 = vset.pattern.permute.xlu0 0
  %71 = vperm.xlu0 %70, %v41
  %v72 = vpop.permute.xlu0 %71
  %75 = vset.pattern.permute.xlu0 0
  %76 = vperm.xlu0 %75, %v42
  %v77 = vpop.permute.xlu0 %76
  %80 = vset.pattern.permute.xlu0 0
  %81 = vperm.xlu0 %80, %v43
  %v82 = vpop.permute.xlu0 %81
  %85 = vset.pattern.permute.xlu0 0
  %86 = vperm.xlu0 %85, %v44
  %v87 = vpop.permute.xlu0 %86
  %90 = vset.pattern.permute.xlu0 0
  %91 = vperm.xlu0 %90, %v45
  %v92 = vpop.permute.xlu0 %91
  %95 = vset.pattern.permute.xlu0 0
  %96 = vperm.xlu0 %95, %v46
  %v97 = vpop.permute.xlu0 %96
  %100 = vset.pattern.permute.xlu0 0
  %101 = vperm.xlu0 %100, %v47
  %v102 = vpop.permute.xlu0 %101
  %105 = vset.pattern.permute.xlu0 0
  %106 = vperm.xlu0 %105, %v48
  %v107 = vpop.permute.xlu0 %106
  %110 = vset.pattern.permute.xlu0 0
  %111 = vperm.xlu0 %110, %v49
  %v112 = vpop.permute.xlu0 %111
  %115 = vset.pattern.permute.xlu0 0
  %116 = vperm.xlu0 %115, %v50
  %v117 = vpop.permute.xlu0 %116
  %120 = vset.pattern.permute.xlu0 0
  %121 = vperm.xlu0 %120, %v51
  %v122 = vpop.permute.xlu0 %121
  %125 = vset.pattern.permute.xlu0 0
  %126 = vperm.xlu0 %125, %v52
  %v127 = vpop.permute.xlu0 %126
  %130 = vset.pattern.permute.xlu0 0
  %131 = vperm.xlu0 %130, %v53
  %v132 = vpop.permute.xlu0 %131
  %vm134 = vcmask 130048
  %v136 = vsel %vm134, %v20, 0
  %v139 = vsel %vm134, %v21, 0
  %v142 = vsel %vm134, %v22, 0
  %v145 = vsel %vm134, %v23, 0
  %v148 = vsel %vm134, %v24, 0
  %v151 = vsel %vm134, %v25, 0
  %v154 = vsel %vm134, %v26, 0
  %v157 = vsel %vm134, %v27, 0
  %v160 = vsel %vm134, %v28, 0
  %v163 = vsel %vm134, %v29, 0
  %v166 = vsel %vm134, %v30, 0
  %v169 = vsel %vm134, %v31, 0
  %v172 = vsel %vm134, %v32, 0
  %v175 = vsel %vm134, %v33, 0
  %v178 = vsel %vm134, %v34, 0
  %v181 = vsel %vm134, %v35, 0
  %183 = vmatprep.subr.mxu0 0.0
  %184 = vmatpush1.msra.mxu0 0.0
  %185 = vmatprep.subr.mxu0 0.0
  %186 = vmatpush1.msra.mxu0 0.0
  %187 = vmatprep.subr.mxu0 0.0
  %188 = vmatpush1.msra.mxu0 0.0
  %189 = vmatprep.subr.mxu0 0.0
  %190 = vmatpush1.msra.mxu0 0.0
  %191 = vmatprep.subr.mxu0 0.0
  %192 = vmatpush1.msra.mxu0 0.0
  %193 = vmatprep.subr.mxu0 0.0
  %194 = vmatpush1.msra.mxu0 0.0
  %195 = vmatprep.subr.mxu0 0.0
  %196 = vmatpush1.msra.mxu0 0.0
  %197 = vmatprep.subr.mxu0 0.0
  %198 = vmatpush1.msra.mxu0 0.0
  %199 = vmatprep.subr.mxu0 0.0
  %200 = vmatpush1.msra.mxu0 0.0
  %201 = vmatprep.subr.mxu0 0.0
  %202 = vmatpush1.msra.mxu0 0.0
  %203 = vmatprep.subr.mxu0 0.0
  %204 = vmatpush1.msra.mxu0 0.0
  %205 = vmatprep.subr.mxu0 0.0
  %206 = vmatpush1.msra.mxu0 0.0
  %207 = vmatprep.subr.mxu0 0.0
  %208 = vmatpush1.msra.mxu0 0.0
  %209 = vmatprep.subr.mxu0 0.0
  %210 = vmatpush1.msra.mxu0 0.0
  %211 = vmatprep.subr.mxu0 0.0
  %212 = vmatpush1.msra.mxu0 %v37
  %213 = vmatprep.subr.mxu0 0.0
  %214 = vmatpush1.msra.mxu0 %v36
  %215 = vmatprep.subr.mxu0 0.0
  %216 = vmatpush2.msra.mxu0 0.0
  %217 = vmatprep.subr.mxu0 0.0
  %218 = vmatpush2.msra.mxu0 0.0
  %219 = vmatprep.subr.mxu0 0.0
  %220 = vmatpush2.msra.mxu0 0.0
  %221 = vmatprep.subr.mxu0 0.0
  %222 = vmatpush2.msra.mxu0 0.0
  %223 = vmatprep.subr.mxu0 0.0
  %224 = vmatpush2.msra.mxu0 0.0
  %225 = vmatprep.subr.mxu0 0.0
  %226 = vmatpush2.msra.mxu0 0.0
  %227 = vmatprep.subr.mxu0 0.0
  %228 = vmatpush2.msra.mxu0 0.0
  %229 = vmatprep.subr.mxu0 0.0
  %230 = vmatpush2.msra.mxu0 0.0
  %231 = vmatprep.subr.mxu0 0.0
  %232 = vmatpush2.msra.mxu0 0.0
  %233 = vmatprep.subr.mxu0 0.0
  %234 = vmatpush2.msra.mxu0 0.0
  %235 = vmatprep.subr.mxu0 0.0
  %236 = vmatpush2.msra.mxu0 0.0
  %237 = vmatprep.subr.mxu0 0.0
  %238 = vmatpush2.msra.mxu0 0.0
  %239 = vmatprep.subr.mxu0 0.0
  %240 = vmatpush2.msra.mxu0 0.0
  %241 = vmatprep.subr.mxu0 0.0
  %242 = vmatpush2.msra.mxu0 0.0
  %243 = vmatprep.subr.mxu0 0.0
  %244 = vmatpush2.msra.mxu0 0.0
  %245 = vmatprep.subr.mxu0 0.0
  %246 = vmatpush2.msra.mxu0 0.0
  %247 = vmatprep.mubr.f32.mxu0 0.0
  %248 = vmatmul.mubr.f32.gmra.mxu0 %v136
  %v249 = vpop.f32.mrf.mxu0
  %v250 = vadd.f32 %v57, %v249
  %v251 = vpop.f32.mrf.mxu0
  %252 = vmatprep.mubr.f32.mxu0 0.0
  %253 = vmatmul.mubr.f32.gmra.mxu0 %v139
  %v254 = vpop.f32.mrf.mxu0
  %v255 = vadd.f32 %v62, %v254
  %v256 = vpop.f32.mrf.mxu0
  %257 = vmatprep.mubr.f32.mxu0 0.0
  %258 = vmatmul.mubr.f32.gmra.mxu0 %v142
  %v259 = vpop.f32.mrf.mxu0
  %v260 = vadd.f32 %v67, %v259
  %v261 = vpop.f32.mrf.mxu0
  %262 = vmatprep.mubr.f32.mxu0 0.0
  %263 = vmatmul.mubr.f32.gmra.mxu0 %v145
  %v264 = vpop.f32.mrf.mxu0
  %v265 = vadd.f32 %v72, %v264
  %v266 = vpop.f32.mrf.mxu0
  %267 = vmatprep.mubr.f32.mxu0 0.0
  %268 = vmatmul.mubr.f32.gmra.mxu0 %v148
  %v269 = vpop.f32.mrf.mxu0
  %v270 = vadd.f32 %v77, %v269
  %v271 = vpop.f32.mrf.mxu0
  %272 = vmatprep.mubr.f32.mxu0 0.0
  %273 = vmatmul.mubr.f32.gmra.mxu0 %v151
  %v274 = vpop.f32.mrf.mxu0
  %v275 = vadd.f32 %v82, %v274
  %v276 = vpop.f32.mrf.mxu0
  %277 = vmatprep.mubr.f32.mxu0 0.0
  %278 = vmatmul.mubr.f32.gmra.mxu0 %v154
  %v279 = vpop.f32.mrf.mxu0
  %v280 = vadd.f32 %v87, %v279
  %v281 = vpop.f32.mrf.mxu0
  %282 = vmatprep.mubr.f32.mxu0 0.0
  %283 = vmatmul.mubr.f32.gmra.mxu0 %v157
  %v284 = vpop.f32.mrf.mxu0
  %v285 = vadd.f32 %v92, %v284
  %v286 = vpop.f32.mrf.mxu0
  %287 = vmatprep.mubr.f32.mxu0 0.0
  %288 = vmatmul.mubr.f32.gmra.mxu0 %v160
  %v289 = vpop.f32.mrf.mxu0
  %v290 = vadd.f32 %v97, %v289
  %v291 = vpop.f32.mrf.mxu0
  %292 = vmatprep.mubr.f32.mxu0 0.0
  %293 = vmatmul.mubr.f32.gmra.mxu0 %v163
  %v294 = vpop.f32.mrf.mxu0
  %v295 = vadd.f32 %v102, %v294
  %v296 = vpop.f32.mrf.mxu0
  %297 = vmatprep.mubr.f32.mxu0 0.0
  %298 = vmatmul.mubr.f32.gmra.mxu0 %v166
  %v299 = vpop.f32.mrf.mxu0
  %v300 = vadd.f32 %v107, %v299
  %v301 = vpop.f32.mrf.mxu0
  %302 = vmatprep.mubr.f32.mxu0 0.0
  %303 = vmatmul.mubr.f32.gmra.mxu0 %v169
  %v304 = vpop.f32.mrf.mxu0
  %v305 = vadd.f32 %v112, %v304
  %v306 = vpop.f32.mrf.mxu0
  %307 = vmatprep.mubr.f32.mxu0 0.0
  %308 = vmatmul.mubr.f32.gmra.mxu0 %v172
  %v309 = vpop.f32.mrf.mxu0
  %v310 = vadd.f32 %v117, %v309
  %v311 = vpop.f32.mrf.mxu0
  %312 = vmatprep.mubr.f32.mxu0 0.0
  %313 = vmatmul.mubr.f32.gmra.mxu0 %v175
  %v314 = vpop.f32.mrf.mxu0
  %v315 = vadd.f32 %v122, %v314
  %v316 = vpop.f32.mrf.mxu0
  %317 = vmatprep.mubr.f32.mxu0 0.0
  %318 = vmatmul.mubr.f32.gmra.mxu0 %v178
  %v319 = vpop.f32.mrf.mxu0
  %v320 = vadd.f32 %v127, %v319
  %v321 = vpop.f32.mrf.mxu0
  %322 = vmatprep.mubr.f32.mxu0 0.0
  %323 = vmatmul.mubr.f32.gmra.mxu0 %v181
  %v324 = vpop.f32.mrf.mxu0
  %v325 = vadd.f32 %v132, %v324
  %v326 = vpop.f32.mrf.mxu0
  %327 = vdwg.mxu0
  %v328 = vmax.f32 %v250, 0.0
  %v329 = vmax.f32 %v255, 0.0
  %v330 = vmax.f32 %v260, 0.0
  %v331 = vmax.f32 %v265, 0.0
  %v332 = vmax.f32 %v270, 0.0
  %v333 = vmax.f32 %v275, 0.0
  %v334 = vmax.f32 %v280, 0.0
  %v335 = vmax.f32 %v285, 0.0
  %v336 = vmax.f32 %v290, 0.0
  %v337 = vmax.f32 %v295, 0.0
  %v338 = vmax.f32 %v300, 0.0
  %v339 = vmax.f32 %v305, 0.0
  %v340 = vmax.f32 %v310, 0.0
  %v341 = vmax.f32 %v315, 0.0
  %v342 = vmax.f32 %v320, 0.0
  %v343 = vmax.f32 %v325, 0.0
  %v344 = vld [vmem:[%s3] sm:$0xff]
  %v345 = vld [vmem:[%s3 + $0x8] sm:$0xff]
  %v346 = vld [vmem:[%s3 + $0x10] sm:$0xff]
  %v347 = vld [vmem:[%s3 + $0x18] sm:$0xff]
  %v348 = vld [vmem:[%s3 + $0x20] sm:$0xff]
  %v349 = vld [vmem:[%s3 + $0x28] sm:$0xff]
  %v350 = vld [vmem:[%s3 + $0x30] sm:$0xff]
  %v351 = vld [vmem:[%s3 + $0x38] sm:$0xff]
  %v352 = vld [vmem:[%s3 + $0x40] sm:$0xff]
  %v353 = vld [vmem:[%s3 + $0x48] sm:$0xff]
  %v354 = vld [vmem:[%s3 + $0x50] sm:$0xff]
  %v355 = vld [vmem:[%s3 + $0x58] sm:$0xff]
  %v356 = vld [vmem:[%s3 + $0x60] sm:$0xff]
  %v357 = vld [vmem:[%s3 + $0x68] sm:$0xff]
  %v358 = vld [vmem:[%s3 + $0x70] sm:$0xff]
  %v359 = vld [vmem:[%s3 + $0x78] sm:$0xff]
  %v360 = vld [vmem:[%s3 + $0x80] sm:$0xff]
  %v361 = vld [vmem:[%s3 + $0x88] sm:$0xff]
  %v362 = vld [vmem:[%s3 + $0x90] sm:$0xff]
  %v363 = vld [vmem:[%s3 + $0x98] sm:$0xff]
  %v364 = vld [vmem:[%s3 + $0xa0] sm:$0xff]
  %v365 = vld [vmem:[%s3 + $0xa8] sm:$0xff]
  %v366 = vld [vmem:[%s3 + $0xb0] sm:$0xff]
  %v367 = vld [vmem:[%s3 + $0xb8] sm:$0xff]
  %v368 = vld [vmem:[%s3 + $0xc0] sm:$0xff]
  %v369 = vld [vmem:[%s3 + $0xc8] sm:$0xff]
  %v370 = vld [vmem:[%s3 + $0xd0] sm:$0xff]
  %v371 = vld [vmem:[%s3 + $0xd8] sm:$0xff]
  %v372 = vld [vmem:[%s3 + $0xe0] sm:$0xff]
  %v373 = vld [vmem:[%s3 + $0xe8] sm:$0xff]
  %v374 = vld [vmem:[%s3 + $0xf0] sm:$0xff]
  %v375 = vld [vmem:[%s3 + $0xf8] sm:$0xff]
  %v376 = vld [vmem:[%s3 + $0x100] sm:$0xff]
  %v377 = vld [vmem:[%s3 + $0x108] sm:$0xff]
  %v378 = vld [vmem:[%s3 + $0x110] sm:$0xff]
  %v379 = vld [vmem:[%s3 + $0x118] sm:$0xff]
  %v380 = vld [vmem:[%s4] sm:$0xff]
  %v381 = vld [vmem:[%s4 + $0x8] sm:$0xff]
  %v382 = vld [vmem:[%s4 + $0x10] sm:$0xff]
  %v383 = vld [vmem:[%s4 + $0x18] sm:$0xff]
  %v384 = vld [vmem:[%s4 + $0x20] sm:$0xff]
  %v385 = vld [vmem:[%s4 + $0x28] sm:$0xff]
  %v386 = vld [vmem:[%s4 + $0x30] sm:$0xff]
  %v387 = vld [vmem:[%s4 + $0x38] sm:$0xff]
  %v388 = vld [vmem:[%s4 + $0x40] sm:$0xff]
  %v389 = vld [vmem:[%s4 + $0x48] sm:$0xff]
  %v390 = vld [vmem:[%s4 + $0x50] sm:$0xff]
  %v391 = vld [vmem:[%s4 + $0x58] sm:$0xff]
  %v392 = vld [vmem:[%s4 + $0x60] sm:$0xff]
  %v393 = vld [vmem:[%s4 + $0x68] sm:$0xff]
  %v394 = vld [vmem:[%s4 + $0x70] sm:$0xff]
  %v395 = vld [vmem:[%s4 + $0x78] sm:$0xff]
  %v396 = vld [vmem:[%s4 + $0x80] sm:$0xff]
  %v397 = vld [vmem:[%s4 + $0x88] sm:$0xff]
  %v398 = vld [vmem:[%s4 + $0x90] sm:$0xff]
  %v399 = vld [vmem:[%s4 + $0x98] sm:$0xff]
  %v400 = vld [vmem:[%s4 + $0xa0] sm:$0xff]
  %v401 = vld [vmem:[%s4 + $0xa8] sm:$0xff]
  %v402 = vld [vmem:[%s4 + $0xb0] sm:$0xff]
  %v403 = vld [vmem:[%s4 + $0xb8] sm:$0xff]
  %v404 = vld [vmem:[%s4 + $0xc0] sm:$0xff]
  %v405 = vld [vmem:[%s4 + $0xc8] sm:$0xff]
  %v406 = vld [vmem:[%s4 + $0xd0] sm:$0xff]
  %v407 = vld [vmem:[%s4 + $0xd8] sm:$0xff]
  %v408 = vld [vmem:[%s4 + $0xe0] sm:$0xff]
  %v409 = vld [vmem:[%s4 + $0xe8] sm:$0xff]
  %v410 = vld [vmem:[%s4 + $0xf0] sm:$0xff]
  %v411 = vld [vmem:[%s4 + $0xf8] sm:$0xff]
  %v412 = vld [vmem:[%s4 + $0x100] sm:$0xff]
  %v413 = vld [vmem:[%s4 + $0x108] sm:$0xff]
  %v414 = vld [vmem:[%s4 + $0x110] sm:$0xff]
  %v415 = vld [vmem:[%s4 + $0x118] sm:$0xff]
  %417 = vset.pattern.permute.xlu0 0
  %418 = vperm.xlu0 %417, %v380
  %v419 = vpop.permute.xlu0 %418
  %422 = vset.pattern.permute.xlu0 0
  %423 = vperm.xlu0 %422, %v381
  %v424 = vpop.permute.xlu0 %423
  %427 = vset.pattern.permute.xlu0 0
  %428 = vperm.xlu0 %427, %v382
  %v429 = vpop.permute.xlu0 %428
  %432 = vset.pattern.permute.xlu0 0
  %433 = vperm.xlu0 %432, %v383
  %v434 = vpop.permute.xlu0 %433
  %437 = vset.pattern.permute.xlu0 0
  %438 = vperm.xlu0 %437, %v384
  %v439 = vpop.permute.xlu0 %438
  %442 = vset.pattern.permute.xlu0 0
  %443 = vperm.xlu0 %442, %v385
  %v444 = vpop.permute.xlu0 %443
  %447 = vset.pattern.permute.xlu0 0
  %448 = vperm.xlu0 %447, %v386
  %v449 = vpop.permute.xlu0 %448
  %452 = vset.pattern.permute.xlu0 0
  %453 = vperm.xlu0 %452, %v387
  %v454 = vpop.permute.xlu0 %453
  %457 = vset.pattern.permute.xlu0 0
  %458 = vperm.xlu0 %457, %v388
  %v459 = vpop.permute.xlu0 %458
  %462 = vset.pattern.permute.xlu0 0
  %463 = vperm.xlu0 %462, %v389
  %v464 = vpop.permute.xlu0 %463
  %467 = vset.pattern.permute.xlu0 0
  %468 = vperm.xlu0 %467, %v390
  %v469 = vpop.permute.xlu0 %468
  %472 = vset.pattern.permute.xlu0 0
  %473 = vperm.xlu0 %472, %v391
  %v474 = vpop.permute.xlu0 %473
  %477 = vset.pattern.permute.xlu0 0
  %478 = vperm.xlu0 %477, %v392
  %v479 = vpop.permute.xlu0 %478
  %482 = vset.pattern.permute.xlu0 0
  %483 = vperm.xlu0 %482, %v393
  %v484 = vpop.permute.xlu0 %483
  %487 = vset.pattern.permute.xlu0 0
  %488 = vperm.xlu0 %487, %v394
  %v489 = vpop.permute.xlu0 %488
  %492 = vset.pattern.permute.xlu0 0
  %493 = vperm.xlu0 %492, %v395
  %v494 = vpop.permute.xlu0 %493
  %497 = vset.pattern.permute.xlu0 0
  %498 = vperm.xlu0 %497, %v396
  %v499 = vpop.permute.xlu0 %498
  %502 = vset.pattern.permute.xlu0 0
  %503 = vperm.xlu0 %502, %v397
  %v504 = vpop.permute.xlu0 %503
  %507 = vset.pattern.permute.xlu0 0
  %508 = vperm.xlu0 %507, %v398
  %v509 = vpop.permute.xlu0 %508
  %512 = vset.pattern.permute.xlu0 0
  %513 = vperm.xlu0 %512, %v399
  %v514 = vpop.permute.xlu0 %513
  %517 = vset.pattern.permute.xlu0 0
  %518 = vperm.xlu0 %517, %v400
  %v519 = vpop.permute.xlu0 %518
  %522 = vset.pattern.permute.xlu0 0
  %523 = vperm.xlu0 %522, %v401
  %v524 = vpop.permute.xlu0 %523
  %527 = vset.pattern.permute.xlu0 0
  %528 = vperm.xlu0 %527, %v402
  %v529 = vpop.permute.xlu0 %528
  %532 = vset.pattern.permute.xlu0 0
  %533 = vperm.xlu0 %532, %v403
  %v534 = vpop.permute.xlu0 %533
  %537 = vset.pattern.permute.xlu0 0
  %538 = vperm.xlu0 %537, %v404
  %v539 = vpop.permute.xlu0 %538
  %542 = vset.pattern.permute.xlu0 0
  %543 = vperm.xlu0 %542, %v405
  %v544 = vpop.permute.xlu0 %543
  %547 = vset.pattern.permute.xlu0 0
  %548 = vperm.xlu0 %547, %v406
  %v549 = vpop.permute.xlu0 %548
  %552 = vset.pattern.permute.xlu0 0
  %553 = vperm.xlu0 %552, %v407
  %v554 = vpop.permute.xlu0 %553
  %557 = vset.pattern.permute.xlu0 0
  %558 = vperm.xlu0 %557, %v408
  %v559 = vpop.permute.xlu0 %558
  %562 = vset.pattern.permute.xlu0 0
  %563 = vperm.xlu0 %562, %v409
  %v564 = vpop.permute.xlu0 %563
  %567 = vset.pattern.permute.xlu0 0
  %568 = vperm.xlu0 %567, %v410
  %v569 = vpop.permute.xlu0 %568
  %572 = vset.pattern.permute.xlu0 0
  %573 = vperm.xlu0 %572, %v411
  %v574 = vpop.permute.xlu0 %573
  %577 = vset.pattern.permute.xlu0 0
  %578 = vperm.xlu0 %577, %v412
  %v579 = vpop.permute.xlu0 %578
  %582 = vset.pattern.permute.xlu0 0
  %583 = vperm.xlu0 %582, %v413
  %v584 = vpop.permute.xlu0 %583
  %587 = vset.pattern.permute.xlu0 0
  %588 = vperm.xlu0 %587, %v414
  %v589 = vpop.permute.xlu0 %588
  %592 = vset.pattern.permute.xlu0 0
  %593 = vperm.xlu0 %592, %v415
  %v594 = vpop.permute.xlu0 %593
  %596 = vmatprep.subr.mxu0 0.0
  %597 = vmatpush1.msra.mxu0 %v343
  %598 = vmatprep.subr.mxu0 0.0
  %599 = vmatpush1.msra.mxu0 %v342
  %600 = vmatprep.subr.mxu0 0.0
  %601 = vmatpush1.msra.mxu0 %v341
  %602 = vmatprep.subr.mxu0 0.0
  %603 = vmatpush1.msra.mxu0 %v340
  %604 = vmatprep.subr.mxu0 0.0
  %605 = vmatpush1.msra.mxu0 %v339
  %606 = vmatprep.subr.mxu0 0.0
  %607 = vmatpush1.msra.mxu0 %v338
  %608 = vmatprep.subr.mxu0 0.0
  %609 = vmatpush1.msra.mxu0 %v337
  %610 = vmatprep.subr.mxu0 0.0
  %611 = vmatpush1.msra.mxu0 %v336
  %612 = vmatprep.subr.mxu0 0.0
  %613 = vmatpush1.msra.mxu0 %v335
  %614 = vmatprep.subr.mxu0 0.0
  %615 = vmatpush1.msra.mxu0 %v334
  %616 = vmatprep.subr.mxu0 0.0
  %617 = vmatpush1.msra.mxu0 %v333
  %618 = vmatprep.subr.mxu0 0.0
  %619 = vmatpush1.msra.mxu0 %v332
  %620 = vmatprep.subr.mxu0 0.0
  %621 = vmatpush1.msra.mxu0 %v331
  %622 = vmatprep.subr.mxu0 0.0
  %623 = vmatpush1.msra.mxu0 %v330
  %624 = vmatprep.subr.mxu0 0.0
  %625 = vmatpush1.msra.mxu0 %v329
  %626 = vmatprep.subr.mxu0 0.0
  %627 = vmatpush1.msra.mxu0 %v328
  %628 = vmatprep.subr.mxu0 0.0
  %629 = vmatpush2.msra.mxu0 0.0
  %630 = vmatprep.subr.mxu0 0.0
  %631 = vmatpush2.msra.mxu0 0.0
  %632 = vmatprep.subr.mxu0 0.0
  %633 = vmatpush2.msra.mxu0 0.0
  %634 = vmatprep.subr.mxu0 0.0
  %635 = vmatpush2.msra.mxu0 0.0
  %636 = vmatprep.subr.mxu0 0.0
  %637 = vmatpush2.msra.mxu0 0.0
  %638 = vmatprep.subr.mxu0 0.0
  %639 = vmatpush2.msra.mxu0 0.0
  %640 = vmatprep.subr.mxu0 0.0
  %641 = vmatpush2.msra.mxu0 0.0
  %642 = vmatprep.subr.mxu0 0.0
  %643 = vmatpush2.msra.mxu0 0.0
  %644 = vmatprep.subr.mxu0 0.0
  %645 = vmatpush2.msra.mxu0 0.0
  %646 = vmatprep.subr.mxu0 0.0
  %647 = vmatpush2.msra.mxu0 0.0
  %648 = vmatprep.subr.mxu0 0.0
  %649 = vmatpush2.msra.mxu0 0.0
  %650 = vmatprep.subr.mxu0 0.0
  %651 = vmatpush2.msra.mxu0 0.0
  %652 = vmatprep.subr.mxu0 0.0
  %653 = vmatpush2.msra.mxu0 0.0
  %654 = vmatprep.subr.mxu0 0.0
  %655 = vmatpush2.msra.mxu0 0.0
  %656 = vmatprep.subr.mxu0 0.0
  %657 = vmatpush2.msra.mxu0 0.0
  %658 = vmatprep.subr.mxu0 0.0
  %659 = vmatpush2.msra.mxu0 0.0
  %660 = vmatprep.mubr.f32.mxu0 0.0
  %661 = vmatmul.mubr.f32.gmra.mxu0 %v344
  %v662 = vpop.f32.mrf.mxu0
  %v663 = vadd.f32 %v419, %v662
  %v664 = vpop.f32.mrf.mxu0
  %665 = vmatprep.mubr.f32.mxu0 0.0
  %666 = vmatmul.mubr.f32.gmra.mxu0 %v345
  %v667 = vpop.f32.mrf.mxu0
  %v668 = vadd.f32 %v424, %v667
  %v669 = vpop.f32.mrf.mxu0
  %670 = vmatprep.mubr.f32.mxu0 0.0
  %671 = vmatmul.mubr.f32.gmra.mxu0 %v346
  %v672 = vpop.f32.mrf.mxu0
  %v673 = vadd.f32 %v429, %v672
  %v674 = vpop.f32.mrf.mxu0
  %675 = vmatprep.mubr.f32.mxu0 0.0
  %676 = vmatmul.mubr.f32.gmra.mxu0 %v347
  %v677 = vpop.f32.mrf.mxu0
  %v678 = vadd.f32 %v434, %v677
  %v679 = vpop.f32.mrf.mxu0
  %680 = vmatprep.mubr.f32.mxu0 0.0
  %681 = vmatmul.mubr.f32.gmra.mxu0 %v348
  %v682 = vpop.f32.mrf.mxu0
  %v683 = vadd.f32 %v439, %v682
  %v684 = vpop.f32.mrf.mxu0
  %685 = vmatprep.mubr.f32.mxu0 0.0
  %686 = vmatmul.mubr.f32.gmra.mxu0 %v349
  %v687 = vpop.f32.mrf.mxu0
  %v688 = vadd.f32 %v444, %v687
  %v689 = vpop.f32.mrf.mxu0
  %690 = vmatprep.mubr.f32.mxu0 0.0
  %691 = vmatmul.mubr.f32.gmra.mxu0 %v350
  %v692 = vpop.f32.mrf.mxu0
  %v693 = vadd.f32 %v449, %v692
  %v694 = vpop.f32.mrf.mxu0
  %695 = vmatprep.mubr.f32.mxu0 0.0
  %696 = vmatmul.mubr.f32.gmra.mxu0 %v351
  %v697 = vpop.f32.mrf.mxu0
  %v698 = vadd.f32 %v454, %v697
  %v699 = vpop.f32.mrf.mxu0
  %700 = vmatprep.mubr.f32.mxu0 0.0
  %701 = vmatmul.mubr.f32.gmra.mxu0 %v352
  %v702 = vpop.f32.mrf.mxu0
  %v703 = vadd.f32 %v459, %v702
  %v704 = vpop.f32.mrf.mxu0
  %705 = vmatprep.mubr.f32.mxu0 0.0
  %706 = vmatmul.mubr.f32.gmra.mxu0 %v353
  %v707 = vpop.f32.mrf.mxu0
  %v708 = vadd.f32 %v464, %v707
  %v709 = vpop.f32.mrf.mxu0
  %710 = vmatprep.mubr.f32.mxu0 0.0
  %711 = vmatmul.mubr.f32.gmra.mxu0 %v354
  %v712 = vpop.f32.mrf.mxu0
  %v713 = vadd.f32 %v469, %v712
  %v714 = vpop.f32.mrf.mxu0
  %715 = vmatprep.mubr.f32.mxu0 0.0
  %716 = vmatmul.mubr.f32.gmra.mxu0 %v355
  %v717 = vpop.f32.mrf.mxu0
  %v718 = vadd.f32 %v474, %v717
  %v719 = vpop.f32.mrf.mxu0
  %720 = vmatprep.mubr.f32.mxu0 0.0
  %721 = vmatmul.mubr.f32.gmra.mxu0 %v356
  %v722 = vpop.f32.mrf.mxu0
  %v723 = vadd.f32 %v479, %v722
  %v724 = vpop.f32.mrf.mxu0
  %725 = vmatprep.mubr.f32.mxu0 0.0
  %726 = vmatmul.mubr.f32.gmra.mxu0 %v357
  %v727 = vpop.f32.mrf.mxu0
  %v728 = vadd.f32 %v484, %v727
  %v729 = vpop.f32.mrf.mxu0
  %730 = vmatprep.mubr.f32.mxu0 0.0
  %731 = vmatmul.mubr.f32.gmra.mxu0 %v358
  %v732 = vpop.f32.mrf.mxu0
  %v733 = vadd.f32 %v489, %v732
  %v734 = vpop.f32.mrf.mxu0
  %735 = vmatprep.mubr.f32.mxu0 0.0
  %736 = vmatmul.mubr.f32.gmra.mxu0 %v359
  %v737 = vpop.f32.mrf.mxu0
  %v738 = vadd.f32 %v494, %v737
  %v739 = vpop.f32.mrf.mxu0
  %740 = vmatprep.mubr.f32.mxu0 0.0
  %741 = vmatmul.mubr.f32.gmra.mxu0 %v360
  %v742 = vpop.f32.mrf.mxu0
  %v743 = vadd.f32 %v499, %v742
  %v744 = vpop.f32.mrf.mxu0
  %745 = vmatprep.mubr.f32.mxu0 0.0
  %746 = vmatmul.mubr.f32.gmra.mxu0 %v361
  %v747 = vpop.f32.mrf.mxu0
  %v748 = vadd.f32 %v504, %v747
  %v749 = vpop.f32.mrf.mxu0
  %750 = vmatprep.mubr.f32.mxu0 0.0
  %751 = vmatmul.mubr.f32.gmra.mxu0 %v362
  %v752 = vpop.f32.mrf.mxu0
  %v753 = vadd.f32 %v509, %v752
  %v754 = vpop.f32.mrf.mxu0
  %755 = vmatprep.mubr.f32.mxu0 0.0
  %756 = vmatmul.mubr.f32.gmra.mxu0 %v363
  %v757 = vpop.f32.mrf.mxu0
  %v758 = vadd.f32 %v514, %v757
  %v759 = vpop.f32.mrf.mxu0
  %760 = vmatprep.mubr.f32.mxu0 0.0
  %761 = vmatmul.mubr.f32.gmra.mxu0 %v364
  %v762 = vpop.f32.mrf.mxu0
  %v763 = vadd.f32 %v519, %v762
  %v764 = vpop.f32.mrf.mxu0
  %765 = vmatprep.mubr.f32.mxu0 0.0
  %766 = vmatmul.mubr.f32.gmra.mxu0 %v365
  %v767 = vpop.f32.mrf.mxu0
  %v768 = vadd.f32 %v524, %v767
  %v769 = vpop.f32.mrf.mxu0
  %770 = vmatprep.mubr.f32.mxu0 0.0
  %771 = vmatmul.mubr.f32.gmra.mxu0 %v366
  %v772 = vpop.f32.mrf.mxu0
  %v773 = vadd.f32 %v529, %v772
  %v774 = vpop.f32.mrf.mxu0
  %775 = vmatprep.mubr.f32.mxu0 0.0
  %776 = vmatmul.mubr.f32.gmra.mxu0 %v367
  %v777 = vpop.f32.mrf.mxu0
  %v778 = vadd.f32 %v534, %v777
  %v779 = vpop.f32.mrf.mxu0
  %780 = vmatprep.mubr.f32.mxu0 0.0
  %781 = vmatmul.mubr.f32.gmra.mxu0 %v368
  %v782 = vpop.f32.mrf.mxu0
  %v783 = vadd.f32 %v539, %v782
  %v784 = vpop.f32.mrf.mxu0
  %785 = vmatprep.mubr.f32.mxu0 0.0
  %786 = vmatmul.mubr.f32.gmra.mxu0 %v369
  %v787 = vpop.f32.mrf.mxu0
  %v788 = vadd.f32 %v544, %v787
  %v789 = vpop.f32.mrf.mxu0
  %790 = vmatprep.mubr.f32.mxu0 0.0
  %791 = vmatmul.mubr.f32.gmra.mxu0 %v370
  %v792 = vpop.f32.mrf.mxu0
  %v793 = vadd.f32 %v549, %v792
  %v794 = vpop.f32.mrf.mxu0
  %795 = vmatprep.mubr.f32.mxu0 0.0
  %796 = vmatmul.mubr.f32.gmra.mxu0 %v371
  %v797 = vpop.f32.mrf.mxu0
  %v798 = vadd.f32 %v554, %v797
  %v799 = vpop.f32.mrf.mxu0
  %800 = vmatprep.mubr.f32.mxu0 0.0
  %801 = vmatmul.mubr.f32.gmra.mxu0 %v372
  %v802 = vpop.f32.mrf.mxu0
  %v803 = vadd.f32 %v559, %v802
  %v804 = vpop.f32.mrf.mxu0
  %805 = vmatprep.mubr.f32.mxu0 0.0
  %806 = vmatmul.mubr.f32.gmra.mxu0 %v373
  %v807 = vpop.f32.mrf.mxu0
  %v808 = vadd.f32 %v564, %v807
  %v809 = vpop.f32.mrf.mxu0
  %810 = vmatprep.mubr.f32.mxu0 0.0
  %811 = vmatmul.mubr.f32.gmra.mxu0 %v374
  %v812 = vpop.f32.mrf.mxu0
  %v813 = vadd.f32 %v569, %v812
  %v814 = vpop.f32.mrf.mxu0
  %815 = vmatprep.mubr.f32.mxu0 0.0
  %816 = vmatmul.mubr.f32.gmra.mxu0 %v375
  %v817 = vpop.f32.mrf.mxu0
  %v818 = vadd.f32 %v574, %v817
  %v819 = vpop.f32.mrf.mxu0
  %820 = vmatprep.mubr.f32.mxu0 0.0
  %821 = vmatmul.mubr.f32.gmra.mxu0 %v376
  %v822 = vpop.f32.mrf.mxu0
  %v823 = vadd.f32 %v579, %v822
  %v824 = vpop.f32.mrf.mxu0
  %825 = vmatprep.mubr.f32.mxu0 0.0
  %826 = vmatmul.mubr.f32.gmra.mxu0 %v377
  %v827 = vpop.f32.mrf.mxu0
  %v828 = vadd.f32 %v584, %v827
  %v829 = vpop.f32.mrf.mxu0
  %830 = vmatprep.mubr.f32.mxu0 0.0
  %831 = vmatmul.mubr.f32.gmra.mxu0 %v378
  %v832 = vpop.f32.mrf.mxu0
  %v833 = vadd.f32 %v589, %v832
  %v834 = vpop.f32.mrf.mxu0
  %835 = vmatprep.mubr.f32.mxu0 0.0
  %836 = vmatmul.mubr.f32.gmra.mxu0 %v379
  %v837 = vpop.f32.mrf.mxu0
  %v838 = vadd.f32 %v594, %v837
  %v839 = vpop.f32.mrf.mxu0
  %840 = vdwg.mxu0
  %v841 = vmax.f32 %v663, 0.0
  %v842 = vmax.f32 %v668, 0.0
  %v843 = vmax.f32 %v673, 0.0
  %v844 = vmax.f32 %v678, 0.0
  %v845 = vmax.f32 %v683, 0.0
  %v846 = vmax.f32 %v688, 0.0
  %v847 = vmax.f32 %v693, 0.0
  %v848 = vmax.f32 %v698, 0.0
  %v849 = vmax.f32 %v703, 0.0
  %v850 = vmax.f32 %v708, 0.0
  %v851 = vmax.f32 %v713, 0.0
  %v852 = vmax.f32 %v718, 0.0
  %v853 = vmax.f32 %v723, 0.0
  %v854 = vmax.f32 %v728, 0.0
  %v855 = vmax.f32 %v733, 0.0
  %v856 = vmax.f32 %v738, 0.0
  %v857 = vmax.f32 %v743, 0.0
  %v858 = vmax.f32 %v748, 0.0
  %v859 = vmax.f32 %v753, 0.0
  %v860 = vmax.f32 %v758, 0.0
  %v861 = vmax.f32 %v763, 0.0
  %v862 = vmax.f32 %v768, 0.0
  %v863 = vmax.f32 %v773, 0.0
  %v864 = vmax.f32 %v778, 0.0
  %v865 = vmax.f32 %v783, 0.0
  %v866 = vmax.f32 %v788, 0.0
  %v867 = vmax.f32 %v793, 0.0
  %v868 = vmax.f32 %v798, 0.0
  %v869 = vmax.f32 %v803, 0.0
  %v870 = vmax.f32 %v808, 0.0
  %v871 = vmax.f32 %v813, 0.0
  %v872 = vmax.f32 %v818, 0.0
  %v873 = vmax.f32 %v823, 0.0
  %v874 = vmax.f32 %v828, 0.0
  %v875 = vmax.f32 %v833, 0.0
  %v876 = vmax.f32 %v838, 0.0
  %vm877 = vcmask 15360
  %878 = vst.msk [vmem:[%s5] sm:$0xff] %vm877, %v841
  %879 = vst.msk [vmem:[%s5 + $0x8] sm:$0xff] %vm877, %v842
  %880 = vst.msk [vmem:[%s5 + $0x10] sm:$0xff] %vm877, %v843
  %881 = vst.msk [vmem:[%s5 + $0x18] sm:$0xff] %vm877, %v844
  %882 = vst.msk [vmem:[%s5 + $0x20] sm:$0xff] %vm877, %v845
  %883 = vst.msk [vmem:[%s5 + $0x28] sm:$0xff] %vm877, %v846
  %884 = vst.msk [vmem:[%s5 + $0x30] sm:$0xff] %vm877, %v847
  %885 = vst.msk [vmem:[%s5 + $0x38] sm:$0xff] %vm877, %v848
  %886 = vst.msk [vmem:[%s5 + $0x40] sm:$0xff] %vm877, %v849
  %887 = vst.msk [vmem:[%s5 + $0x48] sm:$0xff] %vm877, %v850
  %888 = vst.msk [vmem:[%s5 + $0x50] sm:$0xff] %vm877, %v851
  %889 = vst.msk [vmem:[%s5 + $0x58] sm:$0xff] %vm877, %v852
  %890 = vst.msk [vmem:[%s5 + $0x60] sm:$0xff] %vm877, %v853
  %891 = vst.msk [vmem:[%s5 + $0x68] sm:$0xff] %vm877, %v854
  %892 = vst.msk [vmem:[%s5 + $0x70] sm:$0xff] %vm877, %v855
  %893 = vst.msk [vmem:[%s5 + $0x78] sm:$0xff] %vm877, %v856
  %894 = vst.msk [vmem:[%s5 + $0x80] sm:$0xff] %vm877, %v857
  %895 = vst.msk [vmem:[%s5 + $0x88] sm:$0xff] %vm877, %v858
  %896 = vst.msk [vmem:[%s5 + $0x90] sm:$0xff] %vm877, %v859
  %897 = vst.msk [vmem:[%s5 + $0x98] sm:$0xff] %vm877, %v860
  %898 = vst.msk [vmem:[%s5 + $0xa0] sm:$0xff] %vm877, %v861
  %899 = vst.msk [vmem:[%s5 + $0xa8] sm:$0xff] %vm877, %v862
  %900 = vst.msk [vmem:[%s5 + $0xb0] sm:$0xff] %vm877, %v863
  %901 = vst.msk [vmem:[%s5 + $0xb8] sm:$0xff] %vm877, %v864
  %902 = vst.msk [vmem:[%s5 + $0xc0] sm:$0xff] %vm877, %v865
  %903 = vst.msk [vmem:[%s5 + $0xc8] sm:$0xff] %vm877, %v866
  %904 = vst.msk [vmem:[%s5 + $0xd0] sm:$0xff] %vm877, %v867
  %905 = vst.msk [vmem:[%s5 + $0xd8] sm:$0xff] %vm877, %v868
  %906 = vst.msk [vmem:[%s5 + $0xe0] sm:$0xff] %vm877, %v869
  %907 = vst.msk [vmem:[%s5 + $0xe8] sm:$0xff] %vm877, %v870
  %908 = vst.msk [vmem:[%s5 + $0xf0] sm:$0xff] %vm877, %v871
  %909 = vst.msk [vmem:[%s5 + $0xf8] sm:$0xff] %vm877, %v872
  %910 = vst.msk [vmem:[%s5 + $0x100] sm:$0xff] %vm877, %v873
  %911 = vst.msk [vmem:[%s5 + $0x108] sm:$0xff] %vm877, %v874
  %912 = vst.msk [vmem:[%s5 + $0x110] sm:$0xff] %vm877, %v875
  %913 = vst.msk [vmem:[%s5 + $0x118] sm:$0xff] %vm877, %v876
  // Predicated region
  $region22: #{autoencoder_forward.12} parent=0 // pred_check
    _
  $region23: #{autoencoder_forward.12} parent=0 // pred_check_branch
    %915 = sbr.rel (0) target = $region25
  $region24: #{autoencoder_forward.12} parent=0 // pred_region
    _
  $region25: #{autoencoder_forward.12} parent=0 // pred_fallthru
    _
  // Predicated region
  $region26: #{autoencoder_forward.12} parent=0 // pred_check
    _
  $region27: #{autoencoder_forward.12} parent=0 // pred_check_branch
    %917 = sbr.rel (0) target = $region29
  $region28: #{autoencoder_forward.12} parent=0 // pred_region
    _
  $region29: #{autoencoder_forward.12} parent=0 // pred_fallthru
    _

// kernel: autoencoder_forward.13
$region0: #{autoencoder_forward.13}
  #allocation0 [shape = 'u32[]', space=smem, size = 0x4, offset = 0x4, fixed_abs, tag = 'smem constant byte address 0x4 - core index']
  #allocation1 [shape = 'u32[144,128]{1,0:T(1,128)}', space=vmem, size = 0x12000, scoped, tag = 'internal scratch']
  %s0 = inlined_call_operand.vmem [shape: f32[16,288], index: 0, kind: input, shape index: {}]
  %s1 = inlined_call_operand.vmem [shape: f32[288,98], index: 1, kind: input, shape index: {}]
  %s2 = inlined_call_operand.vmem [shape: f32[16,1], index: 2, kind: input, shape index: {}]
  %s3 = inlined_call_operand.vmem [shape: f32[16,1], index: 3, kind: input, shape index: {}]
  %s4 = inlined_call_operand.vmem [shape: f32[16,1], index: 4, kind: input, shape index: {}]
  %s5 = inlined_call_operand.vmem [shape: f32[16,98], index: 5, kind: output, shape index: {}]
  %s6 = sld [smem:[#allocation0]]
  $region30: #{autoencoder_forward.13} parent=0
    _
  %s8 = ssub.s32 1, %s6
  %s9 = scalar_select 0, %s8, %s6
  // Predicated region
  $region2: #{autoencoder_forward.13} parent=0 // pred_check
    _
  $region3: #{autoencoder_forward.13} parent=0 // pred_check_branch
    %11 = sbr.rel (0) target = $region5
  $region4: #{autoencoder_forward.13} parent=0 // pred_region
    _
  $region5: #{autoencoder_forward.13} parent=0 // pred_fallthru
    _
  // Predicated region
  $region6: #{autoencoder_forward.13} parent=0 // pred_check
    _
  $region7: #{autoencoder_forward.13} parent=0 // pred_check_branch
    %13 = sbr.rel (0) target = $region9
  $region8: #{autoencoder_forward.13} parent=0 // pred_region
    _
  $region9: #{autoencoder_forward.13} parent=0 // pred_fallthru
    _
  // Predicated region
  $region10: #{autoencoder_forward.13} parent=0 // pred_check
    _
  $region11: #{autoencoder_forward.13} parent=0 // pred_check_branch
    %15 = sbr.rel (0) target = $region13
  $region12: #{autoencoder_forward.13} parent=0 // pred_region
    _
  $region13: #{autoencoder_forward.13} parent=0 // pred_fallthru
    _
  // Predicated region
  $region14: #{autoencoder_forward.13} parent=0 // pred_check
    _
  $region15: #{autoencoder_forward.13} parent=0 // pred_check_branch
    %17 = sbr.rel (0) target = $region17
  $region16: #{autoencoder_forward.13} parent=0 // pred_region
    _
  $region17: #{autoencoder_forward.13} parent=0 // pred_fallthru
    _
  // Predicated region
  $region18: #{autoencoder_forward.13} parent=0 // pred_check
    _
  $region19: #{autoencoder_forward.13} parent=0 // pred_check_branch
    %19 = sbr.rel (0) target = $region21
  $region20: #{autoencoder_forward.13} parent=0 // pred_region
    _
  $region21: #{autoencoder_forward.13} parent=0 // pred_fallthru
    _
  %v20 = vld [vmem:[%s0] sm:$0xff]
  %v21 = vld [vmem:[%s0 + $0x8] sm:$0xff]
  %v22 = vld [vmem:[%s0 + $0x10] sm:$0xff]
  %v23 = vld [vmem:[%s0 + $0x18] sm:$0xff]
  %v24 = vld [vmem:[%s0 + $0x20] sm:$0xff]
  %v25 = vld [vmem:[%s0 + $0x28] sm:$0xff]
  %v26 = vld [vmem:[%s1] sm:$0xff]
  %v27 = vld [vmem:[%s1 + $0x8] sm:$0xff]
  %v28 = vld [vmem:[%s1 + $0x10] sm:$0xff]
  %v29 = vld [vmem:[%s1 + $0x18] sm:$0xff]
  %v30 = vld [vmem:[%s1 + $0x20] sm:$0xff]
  %v31 = vld [vmem:[%s1 + $0x28] sm:$0xff]
  %v32 = vld [vmem:[%s1 + $0x30] sm:$0xff]
  %v33 = vld [vmem:[%s1 + $0x38] sm:$0xff]
  %v34 = vld [vmem:[%s1 + $0x40] sm:$0xff]
  %v35 = vld [vmem:[%s1 + $0x48] sm:$0xff]
  %v36 = vld [vmem:[%s1 + $0x50] sm:$0xff]
  %v37 = vld [vmem:[%s1 + $0x58] sm:$0xff]
  %v38 = vld [vmem:[%s1 + $0x60] sm:$0xff]
  %v39 = vld [vmem:[%s1 + $0x68] sm:$0xff]
  %v40 = vld [vmem:[%s1 + $0x70] sm:$0xff]
  %v41 = vld [vmem:[%s1 + $0x78] sm:$0xff]
  %v42 = vld [vmem:[%s1 + $0x80] sm:$0xff]
  %v43 = vld [vmem:[%s1 + $0x88] sm:$0xff]
  %v44 = vld [vmem:[%s1 + $0x90] sm:$0xff]
  %v45 = vld [vmem:[%s1 + $0x98] sm:$0xff]
  %v46 = vld [vmem:[%s1 + $0xa0] sm:$0xff]
  %v47 = vld [vmem:[%s1 + $0xa8] sm:$0xff]
  %v48 = vld [vmem:[%s1 + $0xb0] sm:$0xff]
  %v49 = vld [vmem:[%s1 + $0xb8] sm:$0xff]
  %v50 = vld [vmem:[%s1 + $0xc0] sm:$0xff]
  %v51 = vld [vmem:[%s1 + $0xc8] sm:$0xff]
  %v52 = vld [vmem:[%s1 + $0xd0] sm:$0xff]
  %v53 = vld [vmem:[%s1 + $0xd8] sm:$0xff]
  %v54 = vld [vmem:[%s1 + $0xe0] sm:$0xff]
  %v55 = vld [vmem:[%s1 + $0xe8] sm:$0xff]
  %v56 = vld [vmem:[%s1 + $0xf0] sm:$0xff]
  %v57 = vld [vmem:[%s1 + $0xf8] sm:$0xff]
  %v58 = vld [vmem:[%s1 + $0x100] sm:$0xff]
  %v59 = vld [vmem:[%s1 + $0x108] sm:$0xff]
  %v60 = vld [vmem:[%s1 + $0x110] sm:$0xff]
  %v61 = vld [vmem:[%s1 + $0x118] sm:$0xff]
  %v62 = vld [vmem:[%s2] sm:$0xff]
  %v63 = vld [vmem:[%s2 + $0x8] sm:$0xff]
  %65 = vset.pattern.permute.xlu0 0
  %66 = vperm.xlu0 %65, %v62
  %v67 = vpop.permute.xlu0 %66
  %70 = vset.pattern.permute.xlu0 0
  %71 = vperm.xlu0 %70, %v63
  %v72 = vpop.permute.xlu0 %71
  %vm74 = vcmask 261120
  %v76 = vsel %vm74, %v22, 0
  %v79 = vsel %vm74, %v25, 0
  %81 = vmatprep.subr.mxu0 0.0
  %82 = vmatpush1.msra.mxu0 %v41
  %83 = vmatprep.subr.mxu0 0.0
  %84 = vmatpush1.msra.mxu0 %v40
  %85 = vmatprep.subr.mxu0 0.0
  %86 = vmatpush1.msra.mxu0 %v39
  %87 = vmatprep.subr.mxu0 0.0
  %88 = vmatpush1.msra.mxu0 %v38
  %89 = vmatprep.subr.mxu0 0.0
  %90 = vmatpush1.msra.mxu0 %v37
  %91 = vmatprep.subr.mxu0 0.0
  %92 = vmatpush1.msra.mxu0 %v36
  %93 = vmatprep.subr.mxu0 0.0
  %94 = vmatpush1.msra.mxu0 %v35
  %95 = vmatprep.subr.mxu0 0.0
  %96 = vmatpush1.msra.mxu0 %v34
  %97 = vmatprep.subr.mxu0 0.0
  %98 = vmatpush1.msra.mxu0 %v33
  %99 = vmatprep.subr.mxu0 0.0
  %100 = vmatpush1.msra.mxu0 %v32
  %101 = vmatprep.subr.mxu0 0.0
  %102 = vmatpush1.msra.mxu0 %v31
  %103 = vmatprep.subr.mxu0 0.0
  %104 = vmatpush1.msra.mxu0 %v30
  %105 = vmatprep.subr.mxu0 0.0
  %106 = vmatpush1.msra.mxu0 %v29
  %107 = vmatprep.subr.mxu0 0.0
  %108 = vmatpush1.msra.mxu0 %v28
  %109 = vmatprep.subr.mxu0 0.0
  %110 = vmatpush1.msra.mxu0 %v27
  %111 = vmatprep.subr.mxu0 0.0
  %112 = vmatpush1.msra.mxu0 %v26
  %113 = vmatprep.subr.mxu0 0.0
  %114 = vmatpush2.msra.mxu0 %v57
  %115 = vmatprep.subr.mxu0 0.0
  %116 = vmatpush2.msra.mxu0 %v56
  %117 = vmatprep.subr.mxu0 0.0
  %118 = vmatpush2.msra.mxu0 %v55
  %119 = vmatprep.subr.mxu0 0.0
  %120 = vmatpush2.msra.mxu0 %v54
  %121 = vmatprep.subr.mxu0 0.0
  %122 = vmatpush2.msra.mxu0 %v53
  %123 = vmatprep.subr.mxu0 0.0
  %124 = vmatpush2.msra.mxu0 %v52
  %125 = vmatprep.subr.mxu0 0.0
  %126 = vmatpush2.msra.mxu0 %v51
  %127 = vmatprep.subr.mxu0 0.0
  %128 = vmatpush2.msra.mxu0 %v50
  %129 = vmatprep.subr.mxu0 0.0
  %130 = vmatpush2.msra.mxu0 %v49
  %131 = vmatprep.subr.mxu0 0.0
  %132 = vmatpush2.msra.mxu0 %v48
  %133 = vmatprep.subr.mxu0 0.0
  %134 = vmatpush2.msra.mxu0 %v47
  %135 = vmatprep.subr.mxu0 0.0
  %136 = vmatpush2.msra.mxu0 %v46
  %137 = vmatprep.subr.mxu0 0.0
  %138 = vmatpush2.msra.mxu0 %v45
  %139 = vmatprep.subr.mxu0 0.0
  %140 = vmatpush2.msra.mxu0 %v44
  %141 = vmatprep.subr.mxu0 0.0
  %142 = vmatpush2.msra.mxu0 %v43
  %143 = vmatprep.subr.mxu0 0.0
  %144 = vmatpush2.msra.mxu0 %v42
  %145 = vmatprep.mubr.f32.mxu0 %v21
  %146 = vmatmul.mubr.f32.gmra.mxu0 %v20
  %v147 = vpop.f32.mrf.mxu0
  %v148 = vadd.f32 %v67, %v147
  %v149 = vpop.f32.mrf.mxu0
  %150 = vmatprep.mubr.f32.mxu0 %v24
  %151 = vmatmul.mubr.f32.gmra.mxu0 %v23
  %v152 = vpop.f32.mrf.mxu0
  %v153 = vadd.f32 %v72, %v152
  %v154 = vpop.f32.mrf.mxu0
  %155 = vdwg.mxu0
  %156 = vmatprep.subr.mxu0 0.0
  %157 = vmatpush1.msra.mxu0 0.0
  %158 = vmatprep.subr.mxu0 0.0
  %159 = vmatpush1.msra.mxu0 0.0
  %160 = vmatprep.subr.mxu0 0.0
  %161 = vmatpush1.msra.mxu0 0.0
  %162 = vmatprep.subr.mxu0 0.0
  %163 = vmatpush1.msra.mxu0 0.0
  %164 = vmatprep.subr.mxu0 0.0
  %165 = vmatpush1.msra.mxu0 0.0
  %166 = vmatprep.subr.mxu0 0.0
  %167 = vmatpush1.msra.mxu0 0.0
  %168 = vmatprep.subr.mxu0 0.0
  %169 = vmatpush1.msra.mxu0 0.0
  %170 = vmatprep.subr.mxu0 0.0
  %171 = vmatpush1.msra.mxu0 0.0
  %172 = vmatprep.subr.mxu0 0.0
  %173 = vmatpush1.msra.mxu0 0.0
  %174 = vmatprep.subr.mxu0 0.0
  %175 = vmatpush1.msra.mxu0 0.0
  %176 = vmatprep.subr.mxu0 0.0
  %177 = vmatpush1.msra.mxu0 0.0
  %178 = vmatprep.subr.mxu0 0.0
  %179 = vmatpush1.msra.mxu0 0.0
  %180 = vmatprep.subr.mxu0 0.0
  %181 = vmatpush1.msra.mxu0 %v61
  %182 = vmatprep.subr.mxu0 0.0
  %183 = vmatpush1.msra.mxu0 %v60
  %184 = vmatprep.subr.mxu0 0.0
  %185 = vmatpush1.msra.mxu0 %v59
  %186 = vmatprep.subr.mxu0 0.0
  %187 = vmatpush1.msra.mxu0 %v58
  %188 = vmatprep.subr.mxu0 0.0
  %189 = vmatpush2.msra.mxu0 0.0
  %190 = vmatprep.subr.mxu0 0.0
  %191 = vmatpush2.msra.mxu0 0.0
  %192 = vmatprep.subr.mxu0 0.0
  %193 = vmatpush2.msra.mxu0 0.0
  %194 = vmatprep.subr.mxu0 0.0
  %195 = vmatpush2.msra.mxu0 0.0
  %196 = vmatprep.subr.mxu0 0.0
  %197 = vmatpush2.msra.mxu0 0.0
  %198 = vmatprep.subr.mxu0 0.0
  %199 = vmatpush2.msra.mxu0 0.0
  %200 = vmatprep.subr.mxu0 0.0
  %201 = vmatpush2.msra.mxu0 0.0
  %202 = vmatprep.subr.mxu0 0.0
  %203 = vmatpush2.msra.mxu0 0.0
  %204 = vmatprep.subr.mxu0 0.0
  %205 = vmatpush2.msra.mxu0 0.0
  %206 = vmatprep.subr.mxu0 0.0
  %207 = vmatpush2.msra.mxu0 0.0
  %208 = vmatprep.subr.mxu0 0.0
  %209 = vmatpush2.msra.mxu0 0.0
  %210 = vmatprep.subr.mxu0 0.0
  %211 = vmatpush2.msra.mxu0 0.0
  %212 = vmatprep.subr.mxu0 0.0
  %213 = vmatpush2.msra.mxu0 0.0
  %214 = vmatprep.subr.mxu0 0.0
  %215 = vmatpush2.msra.mxu0 0.0
  %216 = vmatprep.subr.mxu0 0.0
  %217 = vmatpush2.msra.mxu0 0.0
  %218 = vmatprep.subr.mxu0 0.0
  %219 = vmatpush2.msra.mxu0 0.0
  %220 = vmatprep.mubr.f32.mxu0 0.0
  %221 = vmatmul.mubr.f32.gmra.mxu0 %v76
  %v222 = vpop.f32.mrf.mxu0
  %v223 = vadd.f32 %v148, %v222
  %v224 = vpop.f32.mrf.mxu0
  %225 = vmatprep.mubr.f32.mxu0 0.0
  %226 = vmatmul.mubr.f32.gmra.mxu0 %v79
  %v227 = vpop.f32.mrf.mxu0
  %v228 = vadd.f32 %v153, %v227
  %v229 = vpop.f32.mrf.mxu0
  %230 = vdwg.mxu0
  %vm231 = vcmask 801792
  %v232 = vsel %vm231, %v223, 0.0
  %233 = vadd.xlane.f32.xlu0 %v232
  %v234 = vpop.xlane.xlu0 %233
  %v235 = vsel %vm231, %v228, 0.0
  %236 = vadd.xlane.f32.xlu0 %v235
  %v237 = vpop.xlane.xlu0 %236
  %v238 = vrcp.pop 98.0
  %v239 = vmul.f32 %v234, %v238
  %v240 = vmul.f32 %v237, %v238
  %v241 = vsub.f32 %v223, %v239
  %v242 = vsub.f32 %v228, %v240
  %v243 = vmul.f32 %v241, %v241
  %v244 = vmul.f32 %v242, %v242
  %v245 = vsel %vm231, %v243, 0.0
  %246 = vadd.xlane.f32.xlu0 %v245
  %v247 = vpop.xlane.xlu0 %246
  %v248 = vsel %vm231, %v244, 0.0
  %249 = vadd.xlane.f32.xlu0 %v248
  %v250 = vpop.xlane.xlu0 %249
  %v251 = vmul.f32 %v247, %v238
  %v252 = vmul.f32 %v250, %v238
  %v253 = vadd.f32 %v251, 1e-05
  %v254 = vadd.f32 %v252, 1e-05
  %v255 = vrsqrt.pop %v253
  %v256 = vrsqrt.pop %v254
  %v257 = vmul.f32 %v241, %v255
  %v258 = vmul.f32 %v242, %v256
  %v259 = vld [vmem:[%s3] sm:$0xff]
  %v260 = vld [vmem:[%s3 + $0x8] sm:$0xff]
  %262 = vset.pattern.permute.xlu0 0
  %263 = vperm.xlu0 %262, %v259
  %v264 = vpop.permute.xlu0 %263
  %267 = vset.pattern.permute.xlu0 0
  %268 = vperm.xlu0 %267, %v260
  %v269 = vpop.permute.xlu0 %268
  %v271 = vmul.f32 %v257, %v264
  %v272 = vmul.f32 %v258, %v269
  %v273 = vld [vmem:[%s4] sm:$0xff]
  %v274 = vld [vmem:[%s4 + $0x8] sm:$0xff]
  %276 = vset.pattern.permute.xlu0 0
  %277 = vperm.xlu0 %276, %v273
  %v278 = vpop.permute.xlu0 %277
  %281 = vset.pattern.permute.xlu0 0
  %282 = vperm.xlu0 %281, %v274
  %v283 = vpop.permute.xlu0 %282
  %v285 = vadd.f32 %v271, %v278
  %v286 = vadd.f32 %v272, %v283
  %v287 = vmax.f32 %v285, 0.0
  %v288 = vmax.f32 %v286, 0.0
  %289 = vst.msk [vmem:[%s5] sm:$0xff] %vm231, %v287
  %290 = vst.msk [vmem:[%s5 + $0x8] sm:$0xff] %vm231, %v288
  // Predicated region
  $region22: #{autoencoder_forward.13} parent=0 // pred_check
    _
  $region23: #{autoencoder_forward.13} parent=0 // pred_check_branch
    %292 = sbr.rel (0) target = $region25
  $region24: #{autoencoder_forward.13} parent=0 // pred_region
    _
  $region25: #{autoencoder_forward.13} parent=0 // pred_fallthru
    _
  // Predicated region
  $region26: #{autoencoder_forward.13} parent=0 // pred_check
    _
  $region27: #{autoencoder_forward.13} parent=0 // pred_check_branch
    %294 = sbr.rel (0) target = $region29
  $region28: #{autoencoder_forward.13} parent=0 // pred_region
    _
  $region29: #{autoencoder_forward.13} parent=0 // pred_fallthru
    _

// kernel: autoencoder_forward.14
$region0: #{autoencoder_forward.14}
  #allocation0 [shape = 'u32[]', space=smem, size = 0x4, offset = 0x4, fixed_abs, tag = 'smem constant byte address 0x4 - core index']
  #allocation1 [shape = 'u32[144,128]{1,0:T(1,128)}', space=vmem, size = 0x12000, scoped, tag = 'internal scratch']
  %s0 = inlined_call_operand.vmem [shape: f32[8,144], index: 0, kind: input, shape index: {}]
  %s1 = inlined_call_operand.vmem [shape: f32[144,392], index: 1, kind: input, shape index: {}]
  %s2 = inlined_call_operand.vmem [shape: f32[8,1], index: 2, kind: input, shape index: {}]
  %s3 = inlined_call_operand.vmem [shape: f32[8,1], index: 3, kind: input, shape index: {}]
  %s4 = inlined_call_operand.vmem [shape: f32[8,1], index: 4, kind: input, shape index: {}]
  %s5 = inlined_call_operand.vmem [shape: f32[8,392], index: 5, kind: output, shape index: {}]
  %s6 = sld [smem:[#allocation0]]
  $region30: #{autoencoder_forward.14} parent=0
    _
  %s8 = ssub.s32 1, %s6
  %s9 = scalar_select 0, %s8, %s6
  // Predicated region
  $region2: #{autoencoder_forward.14} parent=0 // pred_check
    _
  $region3: #{autoencoder_forward.14} parent=0 // pred_check_branch
    %11 = sbr.rel (0) target = $region5
  $region4: #{autoencoder_forward.14} parent=0 // pred_region
    _
  $region5: #{autoencoder_forward.14} parent=0 // pred_fallthru
    _
  // Predicated region
  $region6: #{autoencoder_forward.14} parent=0 // pred_check
    _
  $region7: #{autoencoder_forward.14} parent=0 // pred_check_branch
    %13 = sbr.rel (0) target = $region9
  $region8: #{autoencoder_forward.14} parent=0 // pred_region
    _
  $region9: #{autoencoder_forward.14} parent=0 // pred_fallthru
    _
  // Predicated region
  $region10: #{autoencoder_forward.14} parent=0 // pred_check
    _
  $region11: #{autoencoder_forward.14} parent=0 // pred_check_branch
    %15 = sbr.rel (0) target = $region13
  $region12: #{autoencoder_forward.14} parent=0 // pred_region
    _
  $region13: #{autoencoder_forward.14} parent=0 // pred_fallthru
    _
  // Predicated region
  $region14: #{autoencoder_forward.14} parent=0 // pred_check
    _
  $region15: #{autoencoder_forward.14} parent=0 // pred_check_branch
    %17 = sbr.rel (0) target = $region17
  $region16: #{autoencoder_forward.14} parent=0 // pred_region
    _
  $region17: #{autoencoder_forward.14} parent=0 // pred_fallthru
    _
  // Predicated region
  $region18: #{autoencoder_forward.14} parent=0 // pred_check
    _
  $region19: #{autoencoder_forward.14} parent=0 // pred_check_branch
    %19 = sbr.rel (0) target = $region21
  $region20: #{autoencoder_forward.14} parent=0 // pred_region
    _
  $region21: #{autoencoder_forward.14} parent=0 // pred_fallthru
    _
  %v20 = vld [vmem:[%s0] sm:$0xff]
  %v21 = vld [vmem:[%s0 + $0x8] sm:$0xff]
  %v22 = vld [vmem:[%s1] sm:$0xff]
  %v23 = vld [vmem:[%s1 + $0x8] sm:$0xff]
  %v24 = vld [vmem:[%s1 + $0x10] sm:$0xff]
  %v25 = vld [vmem:[%s1 + $0x18] sm:$0xff]
  %v26 = vld [vmem:[%s1 + $0x20] sm:$0xff]
  %v27 = vld [vmem:[%s1 + $0x28] sm:$0xff]
  %v28 = vld [vmem:[%s1 + $0x30] sm:$0xff]
  %v29 = vld [vmem:[%s1 + $0x38] sm:$0xff]
  %v30 = vld [vmem:[%s1 + $0x40] sm:$0xff]
  %v31 = vld [vmem:[%s1 + $0x48] sm:$0xff]
  %v32 = vld [vmem:[%s1 + $0x50] sm:$0xff]
  %v33 = vld [vmem:[%s1 + $0x58] sm:$0xff]
  %v34 = vld [vmem:[%s1 + $0x60] sm:$0xff]
  %v35 = vld [vmem:[%s1 + $0x68] sm:$0xff]
  %v36 = vld [vmem:[%s1 + $0x70] sm:$0xff]
  %v37 = vld [vmem:[%s1 + $0x78] sm:$0xff]
  %v38 = vld [vmem:[%s1 + $0x80] sm:$0xff]
  %v39 = vld [vmem:[%s1 + $0x88] sm:$0xff]
  %v40 = vld [vmem:[%s1 + $0x90] sm:$0xff]
  %v41 = vld [vmem:[%s1 + $0x98] sm:$0xff]
  %v42 = vld [vmem:[%s1 + $0xa0] sm:$0xff]
  %v43 = vld [vmem:[%s1 + $0xa8] sm:$0xff]
  %v44 = vld [vmem:[%s1 + $0xb0] sm:$0xff]
  %v45 = vld [vmem:[%s1 + $0xb8] sm:$0xff]
  %v46 = vld [vmem:[%s1 + $0xc0] sm:$0xff]
  %v47 = vld [vmem:[%s1 + $0xc8] sm:$0xff]
  %v48 = vld [vmem:[%s1 + $0xd0] sm:$0xff]
  %v49 = vld [vmem:[%s1 + $0xd8] sm:$0xff]
  %v50 = vld [vmem:[%s1 + $0xe0] sm:$0xff]
  %v51 = vld [vmem:[%s1 + $0xe8] sm:$0xff]
  %v52 = vld [vmem:[%s1 + $0xf0] sm:$0xff]
  %v53 = vld [vmem:[%s1 + $0xf8] sm:$0xff]
  %v54 = vld [vmem:[%s1 + $0x100] sm:$0xff]
  %v55 = vld [vmem:[%s1 + $0x108] sm:$0xff]
  %v56 = vld [vmem:[%s1 + $0x110] sm:$0xff]
  %v57 = vld [vmem:[%s1 + $0x118] sm:$0xff]
  %v58 = vld [vmem:[%s1 + $0x120] sm:$0xff]
  %v59 = vld [vmem:[%s1 + $0x128] sm:$0xff]
  %v60 = vld [vmem:[%s1 + $0x130] sm:$0xff]
  %v61 = vld [vmem:[%s1 + $0x138] sm:$0xff]
  %v62 = vld [vmem:[%s1 + $0x140] sm:$0xff]
  %v63 = vld [vmem:[%s1 + $0x148] sm:$0xff]
  %v64 = vld [vmem:[%s1 + $0x150] sm:$0xff]
  %v65 = vld [vmem:[%s1 + $0x158] sm:$0xff]
  %v66 = vld [vmem:[%s1 + $0x160] sm:$0xff]
  %v67 = vld [vmem:[%s1 + $0x168] sm:$0xff]
  %v68 = vld [vmem:[%s1 + $0x170] sm:$0xff]
  %v69 = vld [vmem:[%s1 + $0x178] sm:$0xff]
  %v70 = vld [vmem:[%s1 + $0x180] sm:$0xff]
  %v71 = vld [vmem:[%s1 + $0x188] sm:$0xff]
  %v72 = vld [vmem:[%s1 + $0x190] sm:$0xff]
  %v73 = vld [vmem:[%s1 + $0x198] sm:$0xff]
  %v74 = vld [vmem:[%s1 + $0x1a0] sm:$0xff]
  %v75 = vld [vmem:[%s1 + $0x1a8] sm:$0xff]
  %v76 = vld [vmem:[%s1 + $0x1b0] sm:$0xff]
  %v77 = vld [vmem:[%s1 + $0x1b8] sm:$0xff]
  %v78 = vld [vmem:[%s1 + $0x1c0] sm:$0xff]
  %v79 = vld [vmem:[%s1 + $0x1c8] sm:$0xff]
  %v80 = vld [vmem:[%s1 + $0x1d0] sm:$0xff]
  %v81 = vld [vmem:[%s1 + $0x1d8] sm:$0xff]
  %v82 = vld [vmem:[%s1 + $0x1e0] sm:$0xff]
  %v83 = vld [vmem:[%s1 + $0x1e8] sm:$0xff]
  %v84 = vld [vmem:[%s1 + $0x1f0] sm:$0xff]
  %v85 = vld [vmem:[%s1 + $0x1f8] sm:$0xff]
  %v86 = vld [vmem:[%s1 + $0x200] sm:$0xff]
  %v87 = vld [vmem:[%s1 + $0x208] sm:$0xff]
  %v88 = vld [vmem:[%s1 + $0x210] sm:$0xff]
  %v89 = vld [vmem:[%s1 + $0x218] sm:$0xff]
  %v90 = vld [vmem:[%s1 + $0x220] sm:$0xff]
  %v91 = vld [vmem:[%s1 + $0x228] sm:$0xff]
  %v92 = vld [vmem:[%s1 + $0x230] sm:$0xff]
  %v93 = vld [vmem:[%s1 + $0x238] sm:$0xff]
  %v94 = vld [vmem:[%s2] sm:$0xff]
  %96 = vset.pattern.permute.xlu0 0
  %97 = vperm.xlu0 %96, %v94
  %v98 = vpop.permute.xlu0 %97
  %vm100 = vcmask 130048
  %v102 = vsel %vm100, %v21, 0
  %104 = vmatprep.subr.mxu0 %v83
  %105 = vmatpush1.msra.mxu0 %v82
  %106 = vmatprep.subr.mxu0 %v79
  %107 = vmatpush1.msra.mxu0 %v78
  %108 = vmatprep.subr.mxu0 %v75
  %109 = vmatpush1.msra.mxu0 %v74
  %110 = vmatprep.subr.mxu0 %v71
  %111 = vmatpush1.msra.mxu0 %v70
  %112 = vmatprep.subr.mxu0 %v67
  %113 = vmatpush1.msra.mxu0 %v66
  %114 = vmatprep.subr.mxu0 %v63
  %115 = vmatpush1.msra.mxu0 %v62
  %116 = vmatprep.subr.mxu0 %v59
  %117 = vmatpush1.msra.mxu0 %v58
  %118 = vmatprep.subr.mxu0 %v55
  %119 = vmatpush1.msra.mxu0 %v54
  %120 = vmatprep.subr.mxu0 %v51
  %121 = vmatpush1.msra.mxu0 %v50
  %122 = vmatprep.subr.mxu0 %v47
  %123 = vmatpush1.msra.mxu0 %v46
  %124 = vmatprep.subr.mxu0 %v43
  %125 = vmatpush1.msra.mxu0 %v42
  %126 = vmatprep.subr.mxu0 %v39
  %127 = vmatpush1.msra.mxu0 %v38
  %128 = vmatprep.subr.mxu0 %v35
  %129 = vmatpush1.msra.mxu0 %v34
  %130 = vmatprep.subr.mxu0 %v31
  %131 = vmatpush1.msra.mxu0 %v30
  %132 = vmatprep.subr.mxu0 %v27
  %133 = vmatpush1.msra.mxu0 %v26
  %134 = vmatprep.subr.mxu0 %v23
  %135 = vmatpush1.msra.mxu0 %v22
  %136 = vmatprep.subr.mxu0 0.0
  %137 = vmatpush2.msra.mxu0 0.0
  %138 = vmatprep.subr.mxu0 0.0
  %139 = vmatpush2.msra.mxu0 0.0
  %140 = vmatprep.subr.mxu0 0.0
  %141 = vmatpush2.msra.mxu0 0.0
  %142 = vmatprep.subr.mxu0 0.0
  %143 = vmatpush2.msra.mxu0 0.0
  %144 = vmatprep.subr.mxu0 0.0
  %145 = vmatpush2.msra.mxu0 0.0
  %146 = vmatprep.subr.mxu0 0.0
  %147 = vmatpush2.msra.mxu0 0.0
  %148 = vmatprep.subr.mxu0 0.0
  %149 = vmatpush2.msra.mxu0 0.0
  %150 = vmatprep.subr.mxu0 0.0
  %151 = vmatpush2.msra.mxu0 0.0
  %152 = vmatprep.subr.mxu0 0.0
  %153 = vmatpush2.msra.mxu0 0.0
  %154 = vmatprep.subr.mxu0 0.0
  %155 = vmatpush2.msra.mxu0 0.0
  %156 = vmatprep.subr.mxu0 0.0
  %157 = vmatpush2.msra.mxu0 0.0
  %158 = vmatprep.subr.mxu0 0.0
  %159 = vmatpush2.msra.mxu0 0.0
  %160 = vmatprep.subr.mxu0 0.0
  %161 = vmatpush2.msra.mxu0 0.0
  %162 = vmatprep.subr.mxu0 0.0
  %163 = vmatpush2.msra.mxu0 0.0
  %164 = vmatprep.subr.mxu0 %v91
  %165 = vmatpush2.msra.mxu0 %v90
  %166 = vmatprep.subr.mxu0 %v87
  %167 = vmatpush2.msra.mxu0 %v86
  %168 = vmatprep.mubr.f32.mxu0 %v102
  %169 = vmatmul.mubr.f32.gmra.mxu0 %v20
  %v170 = vpop.f32.mrf.mxu0
  %v171 = vadd.f32 %v98, %v170
  %v172 = vpop.f32.mrf.mxu0
  %v173 = vadd.f32 %v98, %v172
  %174 = vdwg.mxu0
  %175 = vmatprep.subr.mxu0 %v85
  %176 = vmatpush1.msra.mxu0 %v84
  %177 = vmatprep.subr.mxu0 %v81
  %178 = vmatpush1.msra.mxu0 %v80
  %179 = vmatprep.subr.mxu0 %v77
  %180 = vmatpush1.msra.mxu0 %v76
  %181 = vmatprep.subr.mxu0 %v73
  %182 = vmatpush1.msra.mxu0 %v72
  %183 = vmatprep.subr.mxu0 %v69
  %184 = vmatpush1.msra.mxu0 %v68
  %185 = vmatprep.subr.mxu0 %v65
  %186 = vmatpush1.msra.mxu0 %v64
  %187 = vmatprep.subr.mxu0 %v61
  %188 = vmatpush1.msra.mxu0 %v60
  %189 = vmatprep.subr.mxu0 %v57
  %190 = vmatpush1.msra.mxu0 %v56
  %191 = vmatprep.subr.mxu0 %v53
  %192 = vmatpush1.msra.mxu0 %v52
  %193 = vmatprep.subr.mxu0 %v49
  %194 = vmatpush1.msra.mxu0 %v48
  %195 = vmatprep.subr.mxu0 %v45
  %196 = vmatpush1.msra.mxu0 %v44
  %197 = vmatprep.subr.mxu0 %v41
  %198 = vmatpush1.msra.mxu0 %v40
  %199 = vmatprep.subr.mxu0 %v37
  %200 = vmatpush1.msra.mxu0 %v36
  %201 = vmatprep.subr.mxu0 %v33
  %202 = vmatpush1.msra.mxu0 %v32
  %203 = vmatprep.subr.mxu0 %v29
  %204 = vmatpush1.msra.mxu0 %v28
  %205 = vmatprep.subr.mxu0 %v25
  %206 = vmatpush1.msra.mxu0 %v24
  %207 = vmatprep.subr.mxu0 0.0
  %208 = vmatpush2.msra.mxu0 0.0
  %209 = vmatprep.subr.mxu0 0.0
  %210 = vmatpush2.msra.mxu0 0.0
  %211 = vmatprep.subr.mxu0 0.0
  %212 = vmatpush2.msra.mxu0 0.0
  %213 = vmatprep.subr.mxu0 0.0
  %214 = vmatpush2.msra.mxu0 0.0
  %215 = vmatprep.subr.mxu0 0.0
  %216 = vmatpush2.msra.mxu0 0.0
  %217 = vmatprep.subr.mxu0 0.0
  %218 = vmatpush2.msra.mxu0 0.0
  %219 = vmatprep.subr.mxu0 0.0
  %220 = vmatpush2.msra.mxu0 0.0
  %221 = vmatprep.subr.mxu0 0.0
  %222 = vmatpush2.msra.mxu0 0.0
  %223 = vmatprep.subr.mxu0 0.0
  %224 = vmatpush2.msra.mxu0 0.0
  %225 = vmatprep.subr.mxu0 0.0
  %226 = vmatpush2.msra.mxu0 0.0
  %227 = vmatprep.subr.mxu0 0.0
  %228 = vmatpush2.msra.mxu0 0.0
  %229 = vmatprep.subr.mxu0 0.0
  %230 = vmatpush2.msra.mxu0 0.0
  %231 = vmatprep.subr.mxu0 0.0
  %232 = vmatpush2.msra.mxu0 0.0
  %233 = vmatprep.subr.mxu0 0.0
  %234 = vmatpush2.msra.mxu0 0.0
  %235 = vmatprep.subr.mxu0 %v93
  %236 = vmatpush2.msra.mxu0 %v92
  %237 = vmatprep.subr.mxu0 %v89
  %238 = vmatpush2.msra.mxu0 %v88
  %239 = vmatprep.mubr.f32.mxu0 %v102
  %240 = vmatmul.mubr.f32.gmra.mxu0 %v20
  %v241 = vpop.f32.mrf.mxu0
  %v242 = vadd.f32 %v98, %v241
  %v243 = vpop.f32.mrf.mxu0
  %v244 = vadd.f32 %v98, %v243
  %245 = vdwg.mxu0
  %v246 = vadd.f32 %v171, %v173
  %v247 = vadd.f32 %v246, %v242
  %vm248 = vcmask 64512
  %v249 = vsel %vm248, %v244, 0.0
  %v250 = vadd.f32 %v247, %v249
  %251 = vadd.xlane.f32.xlu0 %v250
  %v252 = vpop.xlane.xlu0 %251
  %v253 = vrcp.pop 392.0
  %v254 = vmul.f32 %v252, %v253
  %v255 = vsub.f32 %v171, %v254
  %v256 = vsub.f32 %v173, %v254
  %v257 = vsub.f32 %v242, %v254
  %v258 = vsub.f32 %v244, %v254
  %v259 = vmul.f32 %v255, %v255
  %v260 = vmul.f32 %v256, %v256
  %v261 = vmul.f32 %v257, %v257
  %v262 = vmul.f32 %v258, %v258
  %v263 = vadd.f32 %v259, %v260
  %v264 = vadd.f32 %v263, %v261
  %v265 = vsel %vm248, %v262, 0.0
  %v266 = vadd.f32 %v264, %v265
  %267 = vadd.xlane.f32.xlu0 %v266
  %v268 = vpop.xlane.xlu0 %267
  %v269 = vmul.f32 %v268, %v253
  %v270 = vadd.f32 %v269, 1e-05
  %v271 = vrsqrt.pop %v270
  %v272 = vmul.f32 %v255, %v271
  %v273 = vmul.f32 %v256, %v271
  %v274 = vmul.f32 %v257, %v271
  %v275 = vmul.f32 %v258, %v271
  %v276 = vld [vmem:[%s3] sm:$0xff]
  %278 = vset.pattern.permute.xlu0 0
  %279 = vperm.xlu0 %278, %v276
  %v280 = vpop.permute.xlu0 %279
  %v282 = vmul.f32 %v272, %v280
  %v283 = vmul.f32 %v273, %v280
  %v284 = vmul.f32 %v274, %v280
  %v285 = vmul.f32 %v275, %v280
  %v286 = vld [vmem:[%s4] sm:$0xff]
  %288 = vset.pattern.permute.xlu0 0
  %289 = vperm.xlu0 %288, %v286
  %v290 = vpop.permute.xlu0 %289
  %v292 = vadd.f32 %v282, %v290
  %v293 = vadd.f32 %v283, %v290
  %v294 = vadd.f32 %v284, %v290
  %v295 = vadd.f32 %v285, %v290
  %v296 = vmax.f32 %v292, 0.0
  %v297 = vmax.f32 %v293, 0.0
  %v298 = vmax.f32 %v294, 0.0
  %v299 = vmax.f32 %v295, 0.0
  %300 = vst [vmem:[%s5] sm:$0xff] %v296
  %301 = vst [vmem:[%s5 + $0x8] sm:$0xff] %v297
  %302 = vst [vmem:[%s5 + $0x10] sm:$0xff] %v298
  %303 = vst.msk [vmem:[%s5 + $0x18] sm:$0xff] %vm248, %v299
  // Predicated region
  $region22: #{autoencoder_forward.14} parent=0 // pred_check
    _
  $region23: #{autoencoder_forward.14} parent=0 // pred_check_branch
    %305 = sbr.rel (0) target = $region25
  $region24: #{autoencoder_forward.14} parent=0 // pred_region
    _
  $region25: #{autoencoder_forward.14} parent=0 // pred_fallthru
    _
  // Predicated region
  $region26: #{autoencoder_forward.14} parent=0 // pred_check
    _
  $region27: #{autoencoder_forward.14} parent=0 // pred_check_branch
    %307 = sbr.rel (0) target = $region29
  $region28: #{autoencoder_forward.14} parent=0 // pred_region
    _
  $region29: #{autoencoder_forward.14} parent=0 // pred_fallthru
    _

// kernel: autoencoder_forward.15
$region0: #{autoencoder_forward.15}
  #allocation0 [shape = 'u32[]', space=smem, size = 0x4, offset = 0x4, fixed_abs, tag = 'smem constant byte address 0x4 - core index']
  #allocation1 [shape = 'u32[144,128]{1,0:T(1,128)}', space=vmem, size = 0x12000, scoped, tag = 'internal scratch']
  %s0 = inlined_call_operand.vmem [shape: f32[3,72], index: 0, kind: input, shape index: {}]
  %s1 = inlined_call_operand.vmem [shape: f32[72,1568], index: 1, kind: input, shape index: {}]
  %s2 = inlined_call_operand.vmem [shape: f32[3,1], index: 2, kind: input, shape index: {}]
  %s3 = inlined_call_operand.vmem [shape: f32[3,1568], index: 3, kind: output, shape index: {}]
  %s4 = sld [smem:[#allocation0]]
  $region22: #{autoencoder_forward.15} parent=0
    _
  %s6 = ssub.s32 1, %s4
  %s7 = scalar_select 0, %s6, %s4
  // Predicated region
  $region2: #{autoencoder_forward.15} parent=0 // pred_check
    _
  $region3: #{autoencoder_forward.15} parent=0 // pred_check_branch
    %9 = sbr.rel (0) target = $region5
  $region4: #{autoencoder_forward.15} parent=0 // pred_region
    _
  $region5: #{autoencoder_forward.15} parent=0 // pred_fallthru
    _
  // Predicated region
  $region6: #{autoencoder_forward.15} parent=0 // pred_check
    _
  $region7: #{autoencoder_forward.15} parent=0 // pred_check_branch
    %11 = sbr.rel (0) target = $region9
  $region8: #{autoencoder_forward.15} parent=0 // pred_region
    _
  $region9: #{autoencoder_forward.15} parent=0 // pred_fallthru
    _
  // Predicated region
  $region10: #{autoencoder_forward.15} parent=0 // pred_check
    _
  $region11: #{autoencoder_forward.15} parent=0 // pred_check_branch
    %13 = sbr.rel (0) target = $region13
  $region12: #{autoencoder_forward.15} parent=0 // pred_region
    _
  $region13: #{autoencoder_forward.15} parent=0 // pred_fallthru
    _
  %v14 = vld [vmem:[%s0] sm:$0x7]
  %v15 = vld [vmem:[%s1] sm:$0xff]
  %v16 = vld [vmem:[%s1 + $0x8] sm:$0xff]
  %v17 = vld [vmem:[%s1 + $0x10] sm:$0xff]
  %v18 = vld [vmem:[%s1 + $0x18] sm:$0xff]
  %v19 = vld [vmem:[%s1 + $0x20] sm:$0xff]
  %v20 = vld [vmem:[%s1 + $0x28] sm:$0xff]
  %v21 = vld [vmem:[%s1 + $0x30] sm:$0xff]
  %v22 = vld [vmem:[%s1 + $0x38] sm:$0xff]
  %v23 = vld [vmem:[%s1 + $0x40] sm:$0xff]
  %v24 = vld [vmem:[%s1 + $0x48] sm:$0xff]
  %v25 = vld [vmem:[%s1 + $0x50] sm:$0xff]
  %v26 = vld [vmem:[%s1 + $0x58] sm:$0xff]
  %v27 = vld [vmem:[%s1 + $0x60] sm:$0xff]
  %v28 = vld [vmem:[%s1 + $0x68] sm:$0xff]
  %v29 = vld [vmem:[%s1 + $0x70] sm:$0xff]
  %v30 = vld [vmem:[%s1 + $0x78] sm:$0xff]
  %v31 = vld [vmem:[%s1 + $0x80] sm:$0xff]
  %v32 = vld [vmem:[%s1 + $0x88] sm:$0xff]
  %v33 = vld [vmem:[%s1 + $0x90] sm:$0xff]
  %v34 = vld [vmem:[%s1 + $0x98] sm:$0xff]
  %v35 = vld [vmem:[%s1 + $0xa0] sm:$0xff]
  %v36 = vld [vmem:[%s1 + $0xa8] sm:$0xff]
  %v37 = vld [vmem:[%s1 + $0xb0] sm:$0xff]
  %v38 = vld [vmem:[%s1 + $0xb8] sm:$0xff]
  %v39 = vld [vmem:[%s1 + $0xc0] sm:$0xff]
  %v40 = vld [vmem:[%s1 + $0xc8] sm:$0xff]
  %v41 = vld [vmem:[%s1 + $0xd0] sm:$0xff]
  %v42 = vld [vmem:[%s1 + $0xd8] sm:$0xff]
  %v43 = vld [vmem:[%s1 + $0xe0] sm:$0xff]
  %v44 = vld [vmem:[%s1 + $0xe8] sm:$0xff]
  %v45 = vld [vmem:[%s1 + $0xf0] sm:$0xff]
  %v46 = vld [vmem:[%s1 + $0xf8] sm:$0xff]
  %v47 = vld [vmem:[%s1 + $0x100] sm:$0xff]
  %v48 = vld [vmem:[%s1 + $0x108] sm:$0xff]
  %v49 = vld [vmem:[%s1 + $0x110] sm:$0xff]
  %v50 = vld [vmem:[%s1 + $0x118] sm:$0xff]
  %v51 = vld [vmem:[%s1 + $0x120] sm:$0xff]
  %v52 = vld [vmem:[%s1 + $0x128] sm:$0xff]
  %v53 = vld [vmem:[%s1 + $0x130] sm:$0xff]
  %v54 = vld [vmem:[%s1 + $0x138] sm:$0xff]
  %v55 = vld [vmem:[%s1 + $0x140] sm:$0xff]
  %v56 = vld [vmem:[%s1 + $0x148] sm:$0xff]
  %v57 = vld [vmem:[%s1 + $0x150] sm:$0xff]
  %v58 = vld [vmem:[%s1 + $0x158] sm:$0xff]
  %v59 = vld [vmem:[%s1 + $0x160] sm:$0xff]
  %v60 = vld [vmem:[%s1 + $0x168] sm:$0xff]
  %v61 = vld [vmem:[%s1 + $0x170] sm:$0xff]
  %v62 = vld [vmem:[%s1 + $0x178] sm:$0xff]
  %v63 = vld [vmem:[%s1 + $0x180] sm:$0xff]
  %v64 = vld [vmem:[%s1 + $0x188] sm:$0xff]
  %v65 = vld [vmem:[%s1 + $0x190] sm:$0xff]
  %v66 = vld [vmem:[%s1 + $0x198] sm:$0xff]
  %v67 = vld [vmem:[%s1 + $0x1a0] sm:$0xff]
  %v68 = vld [vmem:[%s1 + $0x1a8] sm:$0xff]
  %v69 = vld [vmem:[%s1 + $0x1b0] sm:$0xff]
  %v70 = vld [vmem:[%s1 + $0x1b8] sm:$0xff]
  %v71 = vld [vmem:[%s1 + $0x1c0] sm:$0xff]
  %v72 = vld [vmem:[%s1 + $0x1c8] sm:$0xff]
  %v73 = vld [vmem:[%s1 + $0x1d0] sm:$0xff]
  %v74 = vld [vmem:[%s1 + $0x1d8] sm:$0xff]
  %v75 = vld [vmem:[%s1 + $0x1e0] sm:$0xff]
  %v76 = vld [vmem:[%s1 + $0x1e8] sm:$0xff]
  %v77 = vld [vmem:[%s1 + $0x1f0] sm:$0xff]
  %v78 = vld [vmem:[%s1 + $0x1f8] sm:$0xff]
  %v79 = vld [vmem:[%s1 + $0x200] sm:$0xff]
  %v80 = vld [vmem:[%s1 + $0x208] sm:$0xff]
  %v81 = vld [vmem:[%s1 + $0x210] sm:$0xff]
  %v82 = vld [vmem:[%s1 + $0x218] sm:$0xff]
  %v83 = vld [vmem:[%s1 + $0x220] sm:$0xff]
  %v84 = vld [vmem:[%s1 + $0x228] sm:$0xff]
  %v85 = vld [vmem:[%s1 + $0x230] sm:$0xff]
  %v86 = vld [vmem:[%s1 + $0x238] sm:$0xff]
  %v87 = vld [vmem:[%s1 + $0x240] sm:$0xff]
  %v88 = vld [vmem:[%s1 + $0x248] sm:$0xff]
  %v89 = vld [vmem:[%s1 + $0x250] sm:$0xff]
  %v90 = vld [vmem:[%s1 + $0x258] sm:$0xff]
  %v91 = vld [vmem:[%s1 + $0x260] sm:$0xff]
  %v92 = vld [vmem:[%s1 + $0x268] sm:$0xff]
  %v93 = vld [vmem:[%s1 + $0x270] sm:$0xff]
  %v94 = vld [vmem:[%s1 + $0x278] sm:$0xff]
  %v95 = vld [vmem:[%s1 + $0x280] sm:$0xff]
  %v96 = vld [vmem:[%s1 + $0x288] sm:$0xff]
  %v97 = vld [vmem:[%s1 + $0x290] sm:$0xff]
  %v98 = vld [vmem:[%s1 + $0x298] sm:$0xff]
  %v99 = vld [vmem:[%s1 + $0x2a0] sm:$0xff]
  %v100 = vld [vmem:[%s1 + $0x2a8] sm:$0xff]
  %v101 = vld [vmem:[%s1 + $0x2b0] sm:$0xff]
  %v102 = vld [vmem:[%s1 + $0x2b8] sm:$0xff]
  %v103 = vld [vmem:[%s1 + $0x2c0] sm:$0xff]
  %v104 = vld [vmem:[%s1 + $0x2c8] sm:$0xff]
  %v105 = vld [vmem:[%s1 + $0x2d0] sm:$0xff]
  %v106 = vld [vmem:[%s1 + $0x2d8] sm:$0xff]
  %v107 = vld [vmem:[%s1 + $0x2e0] sm:$0xff]
  %v108 = vld [vmem:[%s1 + $0x2e8] sm:$0xff]
  %v109 = vld [vmem:[%s1 + $0x2f0] sm:$0xff]
  %v110 = vld [vmem:[%s1 + $0x2f8] sm:$0xff]
  %v111 = vld [vmem:[%s1 + $0x300] sm:$0xff]
  %v112 = vld [vmem:[%s1 + $0x308] sm:$0xff]
  %v113 = vld [vmem:[%s1 + $0x310] sm:$0xff]
  %v114 = vld [vmem:[%s1 + $0x318] sm:$0xff]
  %v115 = vld [vmem:[%s1 + $0x320] sm:$0xff]
  %v116 = vld [vmem:[%s1 + $0x328] sm:$0xff]
  %v117 = vld [vmem:[%s1 + $0x330] sm:$0xff]
  %v118 = vld [vmem:[%s1 + $0x338] sm:$0xff]
  %v119 = vld [vmem:[%s1 + $0x340] sm:$0xff]
  %v120 = vld [vmem:[%s1 + $0x348] sm:$0xff]
  %v121 = vld [vmem:[%s1 + $0x350] sm:$0xff]
  %v122 = vld [vmem:[%s1 + $0x358] sm:$0xff]
  %v123 = vld [vmem:[%s1 + $0x360] sm:$0xff]
  %v124 = vld [vmem:[%s1 + $0x368] sm:$0xff]
  %v125 = vld [vmem:[%s1 + $0x370] sm:$0xff]
  %v126 = vld [vmem:[%s1 + $0x378] sm:$0xff]
  %v127 = vld [vmem:[%s1 + $0x380] sm:$0xff]
  %v128 = vld [vmem:[%s1 + $0x388] sm:$0xff]
  %v129 = vld [vmem:[%s1 + $0x390] sm:$0xff]
  %v130 = vld [vmem:[%s1 + $0x398] sm:$0xff]
  %v131 = vld [vmem:[%s1 + $0x3a0] sm:$0xff]
  %v132 = vld [vmem:[%s2] sm:$0x7]
  %134 = vset.pattern.permute.xlu0 0
  %135 = vperm.xlu0 %134, %v132
  %v136 = vpop.permute.xlu0 %135
  %vm138 = vcmask 588800
  %v140 = vsel %vm138, %v14, 0
  %142 = vmatprep.subr.mxu0 0.0
  %143 = vmatpush1.msra.mxu0 0.0
  %144 = vmatprep.subr.mxu0 0.0
  %145 = vmatpush1.msra.mxu0 0.0
  %146 = vmatprep.subr.mxu0 0.0
  %147 = vmatpush1.msra.mxu0 0.0
  %148 = vmatprep.subr.mxu0 0.0
  %149 = vmatpush1.msra.mxu0 0.0
  %150 = vmatprep.subr.mxu0 0.0
  %151 = vmatpush1.msra.mxu0 0.0
  %152 = vmatprep.subr.mxu0 0.0
  %153 = vmatpush1.msra.mxu0 0.0
  %154 = vmatprep.subr.mxu0 0.0
  %155 = vmatpush1.msra.mxu0 0.0
  %156 = vmatprep.subr.mxu0 %v120
  %157 = vmatpush1.msra.mxu0 %v119
  %158 = vmatprep.subr.mxu0 %v107
  %159 = vmatpush1.msra.mxu0 %v106
  %160 = vmatprep.subr.mxu0 %v94
  %161 = vmatpush1.msra.mxu0 %v93
  %162 = vmatprep.subr.mxu0 %v81
  %163 = vmatpush1.msra.mxu0 %v80
  %164 = vmatprep.subr.mxu0 %v68
  %165 = vmatpush1.msra.mxu0 %v67
  %166 = vmatprep.subr.mxu0 %v55
  %167 = vmatpush1.msra.mxu0 %v54
  %168 = vmatprep.subr.mxu0 %v42
  %169 = vmatpush1.msra.mxu0 %v41
  %170 = vmatprep.subr.mxu0 %v29
  %171 = vmatpush1.msra.mxu0 %v28
  %172 = vmatprep.subr.mxu0 %v16
  %173 = vmatpush1.msra.mxu0 %v15
  %174 = vmatprep.subr.mxu0 0.0
  %175 = vmatpush2.msra.mxu0 0.0
  %176 = vmatprep.subr.mxu0 0.0
  %177 = vmatpush2.msra.mxu0 0.0
  %178 = vmatprep.subr.mxu0 0.0
  %179 = vmatpush2.msra.mxu0 0.0
  %180 = vmatprep.subr.mxu0 0.0
  %181 = vmatpush2.msra.mxu0 0.0
  %182 = vmatprep.subr.mxu0 0.0
  %183 = vmatpush2.msra.mxu0 0.0
  %184 = vmatprep.subr.mxu0 0.0
  %185 = vmatpush2.msra.mxu0 0.0
  %186 = vmatprep.subr.mxu0 0.0
  %187 = vmatpush2.msra.mxu0 0.0
  %188 = vmatprep.subr.mxu0 0.0
  %189 = vmatpush2.msra.mxu0 0.0
  %190 = vmatprep.subr.mxu0 0.0
  %191 = vmatpush2.msra.mxu0 0.0
  %192 = vmatprep.subr.mxu0 0.0
  %193 = vmatpush2.msra.mxu0 0.0
  %194 = vmatprep.subr.mxu0 0.0
  %195 = vmatpush2.msra.mxu0 0.0
  %196 = vmatprep.subr.mxu0 0.0
  %197 = vmatpush2.msra.mxu0 0.0
  %198 = vmatprep.subr.mxu0 0.0
  %199 = vmatpush2.msra.mxu0 0.0
  %200 = vmatprep.subr.mxu0 0.0
  %201 = vmatpush2.msra.mxu0 0.0
  %202 = vmatprep.subr.mxu0 0.0
  %203 = vmatpush2.msra.mxu0 0.0
  %204 = vmatprep.subr.mxu0 0.0
  %205 = vmatpush2.msra.mxu0 0.0
  %206 = vmatprep.mubr.f32.mxu0 0.0
  %207 = vmatmul.mubr.f32.gmra.mxu0 %v140
  %v208 = vpop.f32.mrf.mxu0
  %v209 = vadd.f32 %v136, %v208
  %v210 = vpop.f32.mrf.mxu0
  %v211 = vadd.f32 %v136, %v210
  %212 = vdwg.mxu0
  %213 = vmatprep.subr.mxu0 0.0
  %214 = vmatpush1.msra.mxu0 0.0
  %215 = vmatprep.subr.mxu0 0.0
  %216 = vmatpush1.msra.mxu0 0.0
  %217 = vmatprep.subr.mxu0 0.0
  %218 = vmatpush1.msra.mxu0 0.0
  %219 = vmatprep.subr.mxu0 0.0
  %220 = vmatpush1.msra.mxu0 0.0
  %221 = vmatprep.subr.mxu0 0.0
  %222 = vmatpush1.msra.mxu0 0.0
  %223 = vmatprep.subr.mxu0 0.0
  %224 = vmatpush1.msra.mxu0 0.0
  %225 = vmatprep.subr.mxu0 0.0
  %226 = vmatpush1.msra.mxu0 0.0
  %227 = vmatprep.subr.mxu0 %v122
  %228 = vmatpush1.msra.mxu0 %v121
  %229 = vmatprep.subr.mxu0 %v109
  %230 = vmatpush1.msra.mxu0 %v108
  %231 = vmatprep.subr.mxu0 %v96
  %232 = vmatpush1.msra.mxu0 %v95
  %233 = vmatprep.subr.mxu0 %v83
  %234 = vmatpush1.msra.mxu0 %v82
  %235 = vmatprep.subr.mxu0 %v70
  %236 = vmatpush1.msra.mxu0 %v69
  %237 = vmatprep.subr.mxu0 %v57
  %238 = vmatpush1.msra.mxu0 %v56
  %239 = vmatprep.subr.mxu0 %v44
  %240 = vmatpush1.msra.mxu0 %v43
  %241 = vmatprep.subr.mxu0 %v31
  %242 = vmatpush1.msra.mxu0 %v30
  %243 = vmatprep.subr.mxu0 %v18
  %244 = vmatpush1.msra.mxu0 %v17
  %245 = vmatprep.subr.mxu0 0.0
  %246 = vmatpush2.msra.mxu0 0.0
  %247 = vmatprep.subr.mxu0 0.0
  %248 = vmatpush2.msra.mxu0 0.0
  %249 = vmatprep.subr.mxu0 0.0
  %250 = vmatpush2.msra.mxu0 0.0
  %251 = vmatprep.subr.mxu0 0.0
  %252 = vmatpush2.msra.mxu0 0.0
  %253 = vmatprep.subr.mxu0 0.0
  %254 = vmatpush2.msra.mxu0 0.0
  %255 = vmatprep.subr.mxu0 0.0
  %256 = vmatpush2.msra.mxu0 0.0
  %257 = vmatprep.subr.mxu0 0.0
  %258 = vmatpush2.msra.mxu0 0.0
  %259 = vmatprep.subr.mxu0 0.0
  %260 = vmatpush2.msra.mxu0 0.0
  %261 = vmatprep.subr.mxu0 0.0
  %262 = vmatpush2.msra.mxu0 0.0
  %263 = vmatprep.subr.mxu0 0.0
  %264 = vmatpush2.msra.mxu0 0.0
  %265 = vmatprep.subr.mxu0 0.0
  %266 = vmatpush2.msra.mxu0 0.0
  %267 = vmatprep.subr.mxu0 0.0
  %268 = vmatpush2.msra.mxu0 0.0
  %269 = vmatprep.subr.mxu0 0.0
  %270 = vmatpush2.msra.mxu0 0.0
  %271 = vmatprep.subr.mxu0 0.0
  %272 = vmatpush2.msra.mxu0 0.0
  %273 = vmatprep.subr.mxu0 0.0
  %274 = vmatpush2.msra.mxu0 0.0
  %275 = vmatprep.subr.mxu0 0.0
  %276 = vmatpush2.msra.mxu0 0.0
  %277 = vmatprep.mubr.f32.mxu0 0.0
  %278 = vmatmul.mubr.f32.gmra.mxu0 %v140
  %v279 = vpop.f32.mrf.mxu0
  %v280 = vadd.f32 %v136, %v279
  %v281 = vpop.f32.mrf.mxu0
  %v282 = vadd.f32 %v136, %v281
  %283 = vdwg.mxu0
  %284 = vmatprep.subr.mxu0 0.0
  %285 = vmatpush1.msra.mxu0 0.0
  %286 = vmatprep.subr.mxu0 0.0
  %287 = vmatpush1.msra.mxu0 0.0
  %288 = vmatprep.subr.mxu0 0.0
  %289 = vmatpush1.msra.mxu0 0.0
  %290 = vmatprep.subr.mxu0 0.0
  %291 = vmatpush1.msra.mxu0 0.0
  %292 = vmatprep.subr.mxu0 0.0
  %293 = vmatpush1.msra.mxu0 0.0
  %294 = vmatprep.subr.mxu0 0.0
  %295 = vmatpush1.msra.mxu0 0.0
  %296 = vmatprep.subr.mxu0 0.0
  %297 = vmatpush1.msra.mxu0 0.0
  %298 = vmatprep.subr.mxu0 %v124
  %299 = vmatpush1.msra.mxu0 %v123
  %300 = vmatprep.subr.mxu0 %v111
  %301 = vmatpush1.msra.mxu0 %v110
  %302 = vmatprep.subr.mxu0 %v98
  %303 = vmatpush1.msra.mxu0 %v97
  %304 = vmatprep.subr.mxu0 %v85
  %305 = vmatpush1.msra.mxu0 %v84
  %306 = vmatprep.subr.mxu0 %v72
  %307 = vmatpush1.msra.mxu0 %v71
  %308 = vmatprep.subr.mxu0 %v59
  %309 = vmatpush1.msra.mxu0 %v58
  %310 = vmatprep.subr.mxu0 %v46
  %311 = vmatpush1.msra.mxu0 %v45
  %312 = vmatprep.subr.mxu0 %v33
  %313 = vmatpush1.msra.mxu0 %v32
  %314 = vmatprep.subr.mxu0 %v20
  %315 = vmatpush1.msra.mxu0 %v19
  %316 = vmatprep.subr.mxu0 0.0
  %317 = vmatpush2.msra.mxu0 0.0
  %318 = vmatprep.subr.mxu0 0.0
  %319 = vmatpush2.msra.mxu0 0.0
  %320 = vmatprep.subr.mxu0 0.0
  %321 = vmatpush2.msra.mxu0 0.0
  %322 = vmatprep.subr.mxu0 0.0
  %323 = vmatpush2.msra.mxu0 0.0
  %324 = vmatprep.subr.mxu0 0.0
  %325 = vmatpush2.msra.mxu0 0.0
  %326 = vmatprep.subr.mxu0 0.0
  %327 = vmatpush2.msra.mxu0 0.0
  %328 = vmatprep.subr.mxu0 0.0
  %329 = vmatpush2.msra.mxu0 0.0
  %330 = vmatprep.subr.mxu0 0.0
  %331 = vmatpush2.msra.mxu0 0.0
  %332 = vmatprep.subr.mxu0 0.0
  %333 = vmatpush2.msra.mxu0 0.0
  %334 = vmatprep.subr.mxu0 0.0
  %335 = vmatpush2.msra.mxu0 0.0
  %336 = vmatprep.subr.mxu0 0.0
  %337 = vmatpush2.msra.mxu0 0.0
  %338 = vmatprep.subr.mxu0 0.0
  %339 = vmatpush2.msra.mxu0 0.0
  %340 = vmatprep.subr.mxu0 0.0
  %341 = vmatpush2.msra.mxu0 0.0
  %342 = vmatprep.subr.mxu0 0.0
  %343 = vmatpush2.msra.mxu0 0.0
  %344 = vmatprep.subr.mxu0 0.0
  %345 = vmatpush2.msra.mxu0 0.0
  %346 = vmatprep.subr.mxu0 0.0
  %347 = vmatpush2.msra.mxu0 0.0
  %348 = vmatprep.mubr.f32.mxu0 0.0
  %349 = vmatmul.mubr.f32.gmra.mxu0 %v140
  %v350 = vpop.f32.mrf.mxu0
  %v351 = vadd.f32 %v136, %v350
  %v352 = vpop.f32.mrf.mxu0
  %v353 = vadd.f32 %v136, %v352
  %354 = vdwg.mxu0
  %355 = vmatprep.subr.mxu0 0.0
  %356 = vmatpush1.msra.mxu0 0.0
  %357 = vmatprep.subr.mxu0 0.0
  %358 = vmatpush1.msra.mxu0 0.0
  %359 = vmatprep.subr.mxu0 0.0
  %360 = vmatpush1.msra.mxu0 0.0
  %361 = vmatprep.subr.mxu0 0.0
  %362 = vmatpush1.msra.mxu0 0.0
  %363 = vmatprep.subr.mxu0 0.0
  %364 = vmatpush1.msra.mxu0 0.0
  %365 = vmatprep.subr.mxu0 0.0
  %366 = vmatpush1.msra.mxu0 0.0
  %367 = vmatprep.subr.mxu0 0.0
  %368 = vmatpush1.msra.mxu0 0.0
  %369 = vmatprep.subr.mxu0 %v126
  %370 = vmatpush1.msra.mxu0 %v125
  %371 = vmatprep.subr.mxu0 %v113
  %372 = vmatpush1.msra.mxu0 %v112
  %373 = vmatprep.subr.mxu0 %v100
  %374 = vmatpush1.msra.mxu0 %v99
  %375 = vmatprep.subr.mxu0 %v87
  %376 = vmatpush1.msra.mxu0 %v86
  %377 = vmatprep.subr.mxu0 %v74
  %378 = vmatpush1.msra.mxu0 %v73
  %379 = vmatprep.subr.mxu0 %v61
  %380 = vmatpush1.msra.mxu0 %v60
  %381 = vmatprep.subr.mxu0 %v48
  %382 = vmatpush1.msra.mxu0 %v47
  %383 = vmatprep.subr.mxu0 %v35
  %384 = vmatpush1.msra.mxu0 %v34
  %385 = vmatprep.subr.mxu0 %v22
  %386 = vmatpush1.msra.mxu0 %v21
  %387 = vmatprep.subr.mxu0 0.0
  %388 = vmatpush2.msra.mxu0 0.0
  %389 = vmatprep.subr.mxu0 0.0
  %390 = vmatpush2.msra.mxu0 0.0
  %391 = vmatprep.subr.mxu0 0.0
  %392 = vmatpush2.msra.mxu0 0.0
  %393 = vmatprep.subr.mxu0 0.0
  %394 = vmatpush2.msra.mxu0 0.0
  %395 = vmatprep.subr.mxu0 0.0
  %396 = vmatpush2.msra.mxu0 0.0
  %397 = vmatprep.subr.mxu0 0.0
  %398 = vmatpush2.msra.mxu0 0.0
  %399 = vmatprep.subr.mxu0 0.0
  %400 = vmatpush2.msra.mxu0 0.0
  %401 = vmatprep.subr.mxu0 0.0
  %402 = vmatpush2.msra.mxu0 0.0
  %403 = vmatprep.subr.mxu0 0.0
  %404 = vmatpush2.msra.mxu0 0.0
  %405 = vmatprep.subr.mxu0 0.0
  %406 = vmatpush2.msra.mxu0 0.0
  %407 = vmatprep.subr.mxu0 0.0
  %408 = vmatpush2.msra.mxu0 0.0
  %409 = vmatprep.subr.mxu0 0.0
  %410 = vmatpush2.msra.mxu0 0.0
  %411 = vmatprep.subr.mxu0 0.0
  %412 = vmatpush2.msra.mxu0 0.0
  %413 = vmatprep.subr.mxu0 0.0
  %414 = vmatpush2.msra.mxu0 0.0
  %415 = vmatprep.subr.mxu0 0.0
  %416 = vmatpush2.msra.mxu0 0.0
  %417 = vmatprep.subr.mxu0 0.0
  %418 = vmatpush2.msra.mxu0 0.0
  %419 = vmatprep.mubr.f32.mxu0 0.0
  %420 = vmatmul.mubr.f32.gmra.mxu0 %v140
  %v421 = vpop.f32.mrf.mxu0
  %v422 = vadd.f32 %v136, %v421
  %v423 = vpop.f32.mrf.mxu0
  %v424 = vadd.f32 %v136, %v423
  %425 = vdwg.mxu0
  %426 = vmatprep.subr.mxu0 0.0
  %427 = vmatpush1.msra.mxu0 0.0
  %428 = vmatprep.subr.mxu0 0.0
  %429 = vmatpush1.msra.mxu0 0.0
  %430 = vmatprep.subr.mxu0 0.0
  %431 = vmatpush1.msra.mxu0 0.0
  %432 = vmatprep.subr.mxu0 0.0
  %433 = vmatpush1.msra.mxu0 0.0
  %434 = vmatprep.subr.mxu0 0.0
  %435 = vmatpush1.msra.mxu0 0.0
  %436 = vmatprep.subr.mxu0 0.0
  %437 = vmatpush1.msra.mxu0 0.0
  %438 = vmatprep.subr.mxu0 0.0
  %439 = vmatpush1.msra.mxu0 0.0
  %440 = vmatprep.subr.mxu0 %v128
  %441 = vmatpush1.msra.mxu0 %v127
  %442 = vmatprep.subr.mxu0 %v115
  %443 = vmatpush1.msra.mxu0 %v114
  %444 = vmatprep.subr.mxu0 %v102
  %445 = vmatpush1.msra.mxu0 %v101
  %446 = vmatprep.subr.mxu0 %v89
  %447 = vmatpush1.msra.mxu0 %v88
  %448 = vmatprep.subr.mxu0 %v76
  %449 = vmatpush1.msra.mxu0 %v75
  %450 = vmatprep.subr.mxu0 %v63
  %451 = vmatpush1.msra.mxu0 %v62
  %452 = vmatprep.subr.mxu0 %v50
  %453 = vmatpush1.msra.mxu0 %v49
  %454 = vmatprep.subr.mxu0 %v37
  %455 = vmatpush1.msra.mxu0 %v36
  %456 = vmatprep.subr.mxu0 %v24
  %457 = vmatpush1.msra.mxu0 %v23
  %458 = vmatprep.subr.mxu0 0.0
  %459 = vmatpush2.msra.mxu0 0.0
  %460 = vmatprep.subr.mxu0 0.0
  %461 = vmatpush2.msra.mxu0 0.0
  %462 = vmatprep.subr.mxu0 0.0
  %463 = vmatpush2.msra.mxu0 0.0
  %464 = vmatprep.subr.mxu0 0.0
  %465 = vmatpush2.msra.mxu0 0.0
  %466 = vmatprep.subr.mxu0 0.0
  %467 = vmatpush2.msra.mxu0 0.0
  %468 = vmatprep.subr.mxu0 0.0
  %469 = vmatpush2.msra.mxu0 0.0
  %470 = vmatprep.subr.mxu0 0.0
  %471 = vmatpush2.msra.mxu0 0.0
  %472 = vmatprep.subr.mxu0 0.0
  %473 = vmatpush2.msra.mxu0 0.0
  %474 = vmatprep.subr.mxu0 0.0
  %475 = vmatpush2.msra.mxu0 0.0
  %476 = vmatprep.subr.mxu0 0.0
  %477 = vmatpush2.msra.mxu0 0.0
  %478 = vmatprep.subr.mxu0 0.0
  %479 = vmatpush2.msra.mxu0 0.0
  %480 = vmatprep.subr.mxu0 0.0
  %481 = vmatpush2.msra.mxu0 0.0
  %482 = vmatprep.subr.mxu0 0.0
  %483 = vmatpush2.msra.mxu0 0.0
  %484 = vmatprep.subr.mxu0 0.0
  %485 = vmatpush2.msra.mxu0 0.0
  %486 = vmatprep.subr.mxu0 0.0
  %487 = vmatpush2.msra.mxu0 0.0
  %488 = vmatprep.subr.mxu0 0.0
  %489 = vmatpush2.msra.mxu0 0.0
  %490 = vmatprep.mubr.f32.mxu0 0.0
  %491 = vmatmul.mubr.f32.gmra.mxu0 %v140
  %v492 = vpop.f32.mrf.mxu0
  %v493 = vadd.f32 %v136, %v492
  %v494 = vpop.f32.mrf.mxu0
  %v495 = vadd.f32 %v136, %v494
  %496 = vdwg.mxu0
  %497 = vmatprep.subr.mxu0 0.0
  %498 = vmatpush1.msra.mxu0 0.0
  %499 = vmatprep.subr.mxu0 0.0
  %500 = vmatpush1.msra.mxu0 0.0
  %501 = vmatprep.subr.mxu0 0.0
  %502 = vmatpush1.msra.mxu0 0.0
  %503 = vmatprep.subr.mxu0 0.0
  %504 = vmatpush1.msra.mxu0 0.0
  %505 = vmatprep.subr.mxu0 0.0
  %506 = vmatpush1.msra.mxu0 0.0
  %507 = vmatprep.subr.mxu0 0.0
  %508 = vmatpush1.msra.mxu0 0.0
  %509 = vmatprep.subr.mxu0 0.0
  %510 = vmatpush1.msra.mxu0 0.0
  %511 = vmatprep.subr.mxu0 %v130
  %512 = vmatpush1.msra.mxu0 %v129
  %513 = vmatprep.subr.mxu0 %v117
  %514 = vmatpush1.msra.mxu0 %v116
  %515 = vmatprep.subr.mxu0 %v104
  %516 = vmatpush1.msra.mxu0 %v103
  %517 = vmatprep.subr.mxu0 %v91
  %518 = vmatpush1.msra.mxu0 %v90
  %519 = vmatprep.subr.mxu0 %v78
  %520 = vmatpush1.msra.mxu0 %v77
  %521 = vmatprep.subr.mxu0 %v65
  %522 = vmatpush1.msra.mxu0 %v64
  %523 = vmatprep.subr.mxu0 %v52
  %524 = vmatpush1.msra.mxu0 %v51
  %525 = vmatprep.subr.mxu0 %v39
  %526 = vmatpush1.msra.mxu0 %v38
  %527 = vmatprep.subr.mxu0 %v26
  %528 = vmatpush1.msra.mxu0 %v25
  %529 = vmatprep.subr.mxu0 0.0
  %530 = vmatpush2.msra.mxu0 0.0
  %531 = vmatprep.subr.mxu0 0.0
  %532 = vmatpush2.msra.mxu0 0.0
  %533 = vmatprep.subr.mxu0 0.0
  %534 = vmatpush2.msra.mxu0 0.0
  %535 = vmatprep.subr.mxu0 0.0
  %536 = vmatpush2.msra.mxu0 0.0
  %537 = vmatprep.subr.mxu0 0.0
  %538 = vmatpush2.msra.mxu0 0.0
  %539 = vmatprep.subr.mxu0 0.0
  %540 = vmatpush2.msra.mxu0 0.0
  %541 = vmatprep.subr.mxu0 0.0
  %542 = vmatpush2.msra.mxu0 0.0
  %543 = vmatprep.subr.mxu0 0.0
  %544 = vmatpush2.msra.mxu0 0.0
  %545 = vmatprep.subr.mxu0 0.0
  %546 = vmatpush2.msra.mxu0 0.0
  %547 = vmatprep.subr.mxu0 0.0
  %548 = vmatpush2.msra.mxu0 0.0
  %549 = vmatprep.subr.mxu0 0.0
  %550 = vmatpush2.msra.mxu0 0.0
  %551 = vmatprep.subr.mxu0 0.0
  %552 = vmatpush2.msra.mxu0 0.0
  %553 = vmatprep.subr.mxu0 0.0
  %554 = vmatpush2.msra.mxu0 0.0
  %555 = vmatprep.subr.mxu0 0.0
  %556 = vmatpush2.msra.mxu0 0.0
  %557 = vmatprep.subr.mxu0 0.0
  %558 = vmatpush2.msra.mxu0 0.0
  %559 = vmatprep.subr.mxu0 0.0
  %560 = vmatpush2.msra.mxu0 0.0
  %561 = vmatprep.mubr.f32.mxu0 0.0
  %562 = vmatmul.mubr.f32.gmra.mxu0 %v140
  %v563 = vpop.f32.mrf.mxu0
  %v564 = vadd.f32 %v136, %v563
  %v565 = vpop.f32.mrf.mxu0
  %v566 = vadd.f32 %v136, %v565
  %567 = vdwg.mxu0
  %568 = vmatprep.subr.mxu0 0.0
  %569 = vmatpush1.msra.mxu0 0.0
  %570 = vmatprep.subr.mxu0 0.0
  %571 = vmatpush1.msra.mxu0 0.0
  %572 = vmatprep.subr.mxu0 0.0
  %573 = vmatpush1.msra.mxu0 0.0
  %574 = vmatprep.subr.mxu0 0.0
  %575 = vmatpush1.msra.mxu0 0.0
  %576 = vmatprep.subr.mxu0 0.0
  %577 = vmatpush1.msra.mxu0 0.0
  %578 = vmatprep.subr.mxu0 0.0
  %579 = vmatpush1.msra.mxu0 0.0
  %580 = vmatprep.subr.mxu0 0.0
  %581 = vmatpush1.msra.mxu0 0.0
  %582 = vmatprep.subr.mxu0 0.0
  %583 = vmatpush1.msra.mxu0 %v131
  %584 = vmatprep.subr.mxu0 0.0
  %585 = vmatpush1.msra.mxu0 %v118
  %586 = vmatprep.subr.mxu0 0.0
  %587 = vmatpush1.msra.mxu0 %v105
  %588 = vmatprep.subr.mxu0 0.0
  %589 = vmatpush1.msra.mxu0 %v92
  %590 = vmatprep.subr.mxu0 0.0
  %591 = vmatpush1.msra.mxu0 %v79
  %592 = vmatprep.subr.mxu0 0.0
  %593 = vmatpush1.msra.mxu0 %v66
  %594 = vmatprep.subr.mxu0 0.0
  %595 = vmatpush1.msra.mxu0 %v53
  %596 = vmatprep.subr.mxu0 0.0
  %597 = vmatpush1.msra.mxu0 %v40
  %598 = vmatprep.subr.mxu0 0.0
  %599 = vmatpush1.msra.mxu0 %v27
  %600 = vmatprep.subr.mxu0 0.0
  %601 = vmatpush2.msra.mxu0 0.0
  %602 = vmatprep.subr.mxu0 0.0
  %603 = vmatpush2.msra.mxu0 0.0
  %604 = vmatprep.subr.mxu0 0.0
  %605 = vmatpush2.msra.mxu0 0.0
  %606 = vmatprep.subr.mxu0 0.0
  %607 = vmatpush2.msra.mxu0 0.0
  %608 = vmatprep.subr.mxu0 0.0
  %609 = vmatpush2.msra.mxu0 0.0
  %610 = vmatprep.subr.mxu0 0.0
  %611 = vmatpush2.msra.mxu0 0.0
  %612 = vmatprep.subr.mxu0 0.0
  %613 = vmatpush2.msra.mxu0 0.0
  %614 = vmatprep.subr.mxu0 0.0
  %615 = vmatpush2.msra.mxu0 0.0
  %616 = vmatprep.subr.mxu0 0.0
  %617 = vmatpush2.msra.mxu0 0.0
  %618 = vmatprep.subr.mxu0 0.0
  %619 = vmatpush2.msra.mxu0 0.0
  %620 = vmatprep.subr.mxu0 0.0
  %621 = vmatpush2.msra.mxu0 0.0
  %622 = vmatprep.subr.mxu0 0.0
  %623 = vmatpush2.msra.mxu0 0.0
  %624 = vmatprep.subr.mxu0 0.0
  %625 = vmatpush2.msra.mxu0 0.0
  %626 = vmatprep.subr.mxu0 0.0
  %627 = vmatpush2.msra.mxu0 0.0
  %628 = vmatprep.subr.mxu0 0.0
  %629 = vmatpush2.msra.mxu0 0.0
  %630 = vmatprep.subr.mxu0 0.0
  %631 = vmatpush2.msra.mxu0 0.0
  %632 = vmatprep.mubr.f32.mxu0 0.0
  %633 = vmatmul.mubr.f32.gmra.mxu0 %v140
  %v634 = vpop.f32.mrf.mxu0
  %v635 = vadd.f32 %v136, %v634
  %v636 = vpop.f32.mrf.mxu0
  %637 = vdwg.mxu0
  %v638 = vxor.u32 %v209, 2147483648
  %v639 = vxor.u32 %v211, 2147483648
  %v640 = vxor.u32 %v280, 2147483648
  %v641 = vxor.u32 %v282, 2147483648
  %v642 = vxor.u32 %v351, 2147483648
  %v643 = vxor.u32 %v353, 2147483648
  %v644 = vxor.u32 %v422, 2147483648
  %v645 = vxor.u32 %v424, 2147483648
  %v646 = vxor.u32 %v493, 2147483648
  %v647 = vxor.u32 %v495, 2147483648
  %v648 = vxor.u32 %v564, 2147483648
  %v649 = vxor.u32 %v566, 2147483648
  %v650 = vxor.u32 %v635, 2147483648
  %v651 = vmul.f32 %v638, 1.442695
  %v652 = vpow.pop %v651
  %v653 = vmul.f32 %v639, 1.442695
  %v654 = vpow.pop %v653
  %v655 = vmul.f32 %v640, 1.442695
  %v656 = vpow.pop %v655
  %v657 = vmul.f32 %v641, 1.442695
  %v658 = vpow.pop %v657
  %v659 = vmul.f32 %v642, 1.442695
  %v660 = vpow.pop %v659
  %v661 = vmul.f32 %v643, 1.442695
  %v662 = vpow.pop %v661
  %v663 = vmul.f32 %v644, 1.442695
  %v664 = vpow.pop %v663
  %v665 = vmul.f32 %v645, 1.442695
  %v666 = vpow.pop %v665
  %v667 = vmul.f32 %v646, 1.442695
  %v668 = vpow.pop %v667
  %v669 = vmul.f32 %v647, 1.442695
  %v670 = vpow.pop %v669
  %v671 = vmul.f32 %v648, 1.442695
  %v672 = vpow.pop %v671
  %v673 = vmul.f32 %v649, 1.442695
  %v674 = vpow.pop %v673
  %v675 = vmul.f32 %v650, 1.442695
  %v676 = vpow.pop %v675
  %v677 = vadd.f32 %v652, 1.0
  %v678 = vadd.f32 %v654, 1.0
  %v679 = vadd.f32 %v656, 1.0
  %v680 = vadd.f32 %v658, 1.0
  %v681 = vadd.f32 %v660, 1.0
  %v682 = vadd.f32 %v662, 1.0
  %v683 = vadd.f32 %v664, 1.0
  %v684 = vadd.f32 %v666, 1.0
  %v685 = vadd.f32 %v668, 1.0
  %v686 = vadd.f32 %v670, 1.0
  %v687 = vadd.f32 %v672, 1.0
  %v688 = vadd.f32 %v674, 1.0
  %v689 = vadd.f32 %v676, 1.0
  %v690 = vrcp.pop %v677
  %v691 = vmul.f32 1.0, %v690
  %v692 = vrcp.pop %v678
  %v693 = vmul.f32 1.0, %v692
  %v694 = vrcp.pop %v679
  %v695 = vmul.f32 1.0, %v694
  %v696 = vrcp.pop %v680
  %v697 = vmul.f32 1.0, %v696
  %v698 = vrcp.pop %v681
  %v699 = vmul.f32 1.0, %v698
  %v700 = vrcp.pop %v682
  %v701 = vmul.f32 1.0, %v700
  %v702 = vrcp.pop %v683
  %v703 = vmul.f32 1.0, %v702
  %v704 = vrcp.pop %v684
  %v705 = vmul.f32 1.0, %v704
  %v706 = vrcp.pop %v685
  %v707 = vmul.f32 1.0, %v706
  %v708 = vrcp.pop %v686
  %v709 = vmul.f32 1.0, %v708
  %v710 = vrcp.pop %v687
  %v711 = vmul.f32 1.0, %v710
  %v712 = vrcp.pop %v688
  %v713 = vmul.f32 1.0, %v712
  %v714 = vrcp.pop %v689
  %v715 = vmul.f32 1.0, %v714
  %v728 = vcombine.low %v691, %v693
  %v729 = vcombine.low %v695, %v697
  %v730 = vcombine.low %v699, %v701
  %v731 = vcombine.low %v703, %v705
  %v732 = vcombine.low %v707, %v709
  %v733 = vcombine.low %v711, %v713
  %740 = vst [vmem:[%s3] sm:$0x77] %v728
  %741 = vst [vmem:[%s3 + $0x8] sm:$0x77] %v729
  %742 = vst [vmem:[%s3 + $0x10] sm:$0x77] %v730
  %743 = vst [vmem:[%s3 + $0x18] sm:$0x77] %v731
  %744 = vst [vmem:[%s3 + $0x20] sm:$0x77] %v732
  %745 = vst [vmem:[%s3 + $0x28] sm:$0x77] %v733
  %vm746 = vcmask 256000
  %747 = vst.msk [vmem:[%s3 + $0x30] sm:$0x7] %vm746, %v715
  // Predicated region
  $region14: #{autoencoder_forward.15} parent=0 // pred_check
    _
  $region15: #{autoencoder_forward.15} parent=0 // pred_check_branch
    %749 = sbr.rel (0) target = $region17
  $region16: #{autoencoder_forward.15} parent=0 // pred_region
    _
  $region17: #{autoencoder_forward.15} parent=0 // pred_fallthru
    _
  // Predicated region
  $region18: #{autoencoder_forward.15} parent=0 // pred_check
    _
  $region19: #{autoencoder_forward.15} parent=0 // pred_check_branch
    %751 = sbr.rel (0) target = $region21
  $region20: #{autoencoder_forward.15} parent=0 // pred_region
    _
  $region21: #{autoencoder_forward.15} parent=0 // pred_fallthru
    _

</llo_original>
